<compile_context>
chip_gen: v5e
topology: v5e:2x2
jax: 0.10.0
libtpu: 0.0.40
codegen_flags: <defaults>
</compile_context>

<pallas_src>
import numpy as np
import jax
import jax.numpy as jnp
from jax.experimental import pallas as pl
from jax.experimental.pallas import tpu as pltpu


# Halo (zero row padding) for the shifted 3x3-tap reads; >= W+1, multiple of 8.
_PAD16, _PAD8, _PAD4 = 24, 16, 8
_CIN1 = 8  # conv1 input channels, padded: [spatial RGB | temporal RGB | 2 zero]


# ----------------------------------------------------------------------------
# Pallas kernel: the entire network for ONE image pair per grid step
# ----------------------------------------------------------------------------
def _two_stream_kernel(
    x_ref,                           # (256, 8)   row-linear pixels, both streams
    w1_ref, b1_ref,                  # (72, 32)   folded-tap block-diag conv1
    w2_ref, b2_ref,                  # (288, 64)
    w3_ref, b3_ref,                  # (576, 128)
    wf1_ref, bf1_ref,                # (128, 64)  1x1 fusion conv
    wf2_ref, bf2_ref,                # (576, 1)   final 3x3 conv (folded taps)
    m1_ref, m2_ref, m3_ref, mf_ref,  # full-lane 0/1 tap-validity masks
    bmat_ref,                        # (256, 16)  bilinear x4 (single image)
    out_ref,                         # (256, 1)
    pin1, pin2, pin3, pinf,          # halo'd VMEM feature maps
    pool1, pool2):                   # pooling scratch

    def zero_halo(ref, pad, rows):
        z = jnp.zeros((pad, ref.shape[1]), ref.dtype)
        ref[pl.ds(0, pad), :] = z
        ref[pl.ds(pad + rows, pad), :] = z

    # Halos must be finite (masked taps still read them; 0 * NaN != 0).
    # Interiors are fully overwritten each step, so only halos are zeroed.
    zero_halo(pin1, _PAD16, 256)
    zero_halo(pin2, _PAD8, 64)
    zero_halo(pin3, _PAD4, 16)
    zero_halo(pinf, _PAD16, 256)

    def conv3x3(src, pad, rows, width, w_ref, b_ref, m_ref):
        """3x3 conv with all 9 taps folded into the matmul K dim (one MXU push).

        src is a halo'd (pad + rows + pad, Cin) row-linear feature map; the
        full-lane mask zeroes taps whose shifted source pixel is outside the
        image (== PyTorch zero padding)."""
        taps = [src[pl.ds(pad + (t // 3 - 1) * width + (t % 3 - 1), rows), :]
                for t in range(9)]
        slab = jnp.concatenate(taps, axis=1) * m_ref[...]       # (rows, 9*Cin)
        return jnp.dot(slab, w_ref[...],
                       preferred_element_type=jnp.float32) + b_ref[...]

    def maxpool2x2(act, scr, dst, dst_pad, h, w):
        """2x2/stride-2 max pool of a (h*w, C) row-linear map, written straight
        into the destination's interior (no concatenation)."""
        rows, wo = h * w, w // 2
        scr[pl.ds(0, rows), :] = act
        # horizontal pair-max: hm row k corresponds to (y = k // wo, xo = k % wo)
        hm = jnp.maximum(scr[pl.ds(0, rows // 2, stride=2), :],
                         scr[pl.ds(1, rows // 2, stride=2), :])
        scr[pl.ds(0, rows // 2), :] = hm
        # vertical pair-max over adjacent y-blocks, aligned reads/writes
        for yo in range(h // 2):
            top = scr[pl.ds((2 * yo) * wo, wo), :]
            bot = scr[pl.ds((2 * yo + 1) * wo, wo), :]
            dst[pl.ds(dst_pad + yo * wo, wo), :] = jnp.maximum(top, bot)

    # ---- both conv streams, channel-stacked (block-diagonal folded weights) --
    pin1[pl.ds(_PAD16, 256), :] = x_ref[...]
    a1 = jnp.maximum(conv3x3(pin1, _PAD16, 256, 16, w1_ref, b1_ref, m1_ref), 0.0)
    maxpool2x2(a1, pool1, pin2, _PAD8, 16, 16)                    # (64, 32)

    a2 = jnp.maximum(conv3x3(pin2, _PAD8, 64, 8, w2_ref, b2_ref, m2_ref), 0.0)
    maxpool2x2(a2, pool2, pin3, _PAD4, 8, 8)                      # (16, 64)

    feat = jnp.maximum(conv3x3(pin3, _PAD4, 16, 4, w3_ref, b3_ref, m3_ref), 0.0)
    # feat: (16, 128) = [spatial 64 | temporal 64]

    # ---- fusion head: 1x1 conv + ReLU, exact bilinear x4, final 3x3 + sigmoid
    t1 = jnp.dot(feat, wf1_ref[...],
                 preferred_element_type=jnp.float32) + bf1_ref[...]
    t1 = jnp.maximum(t1, 0.0)                                     # (16, 64)
    pinf[pl.ds(_PAD16, 256), :] = jnp.dot(
        bmat_ref[...], t1, preferred_element_type=jnp.float32)    # (256, 64)

    o = conv3x3(pinf, _PAD16, 256, 16, wf2_ref, bf2_ref, mf_ref)  # (256, 1)
    out_ref[...] = jax.nn.sigmoid(o)


# ----------------------------------------------------------------------------
# pallas_call wrapper
# ----------------------------------------------------------------------------
def two_stream_forward(spatial_nchw, temporal_nchw, packed):
    n, c, h, w = spatial_nchw.shape
    assert (c, h, w) == (3, 16, 16) and temporal_nchw.shape == spatial_nchw.shape
    (w1, b1, w2, b2, w3, b3, wf1, bf1, wf2, bf2, m1, m2, m3, mf, bmat) = packed

    # NCHW -> NHWC -> row-linear pixels; channel-stack the two streams and pad
    # the channel count to 8 so every im2col tap piece is sublane-friendly.
    sp = jnp.transpose(spatial_nchw, (0, 2, 3, 1)).reshape(n * 256, 3)
    tp = jnp.transpose(temporal_nchw, (0, 2, 3, 1)).reshape(n * 256, 3)
    x = jnp.concatenate(
        [sp, tp, jnp.zeros((n * 256, _CIN1 - 6), jnp.float32)], axis=1)

    consts = (w1, b1, w2, b2, w3, b3, wf1, bf1, wf2, bf2, m1, m2, m3, mf, bmat)

    flops = 2 * n * (256 * 72 * 32 + 64 * 288 * 64 + 16 * 576 * 128
                     + 16 * 128 * 64 + 256 * 16 * 64 + 256 * 576)
    bytes_accessed = int(x.size * 4 + sum(a.size for a in consts) * 4
                         + n * 256 * 4)

    out = pl.pallas_call(
        _two_stream_kernel,
        out_shape=jax.ShapeDtypeStruct((n * 256, 1), jnp.float32),
        grid=(n,),
        in_specs=[pl.BlockSpec((256, _CIN1), lambda b: (b, 0))]
                 + [pl.BlockSpec(a.shape, lambda b: (0, 0)) for a in consts],
        out_specs=pl.BlockSpec((256, 1), lambda b: (b, 0)),
        scratch_shapes=[
            pltpu.VMEM((2 * _PAD16 + 256, _CIN1), jnp.float32),   # pin1 (halo'd)
            pltpu.VMEM((2 * _PAD8 + 64, 32), jnp.float32),        # pin2 (halo'd)
            pltpu.VMEM((2 * _PAD4 + 16, 64), jnp.float32),        # pin3 (halo'd)
            pltpu.VMEM((2 * _PAD16 + 256, 64), jnp.float32),      # pinf (halo'd)
            pltpu.VMEM((256, 32), jnp.float32),                   # pool1 scratch
            pltpu.VMEM((64, 64), jnp.float32),                    # pool2 scratch
        ],
        compiler_params=pltpu.CompilerParams(
            dimension_semantics=("parallel",),                    # 2 TCs on v7x
            vmem_limit_bytes=32 * 1024 * 1024),
        cost_estimate=pl.CostEstimate(flops=flops, transcendentals=n * 256,
                                      bytes_accessed=bytes_accessed),
    )(x, *consts)
    return out.reshape(n, 1, 16, 16)


# ----------------------------------------------------------------------------
# Host-side parameter / constant packing
# ----------------------------------------------------------------------------
def make_conv_params(key, cout, cin, k):
    kw_, kb_ = jax.random.split(key)
    fan_in = cin * k * k
    wgt = jax.random.normal(kw_, (cout, cin, k, k), jnp.float32) / np.sqrt(fan_in)
    b = 0.01 * jax.random.normal(kb_, (cout,), jnp.float32)
    return wgt, b


def init_params(key):
    keys = jax.random.split(key, 8)
    return {
        "s1": make_conv_params(keys[0], 16, 3, 3),
        "s2": make_conv_params(keys[1], 32, 16, 3),
        "s3": make_conv_params(keys[2], 64, 32, 3),
        "t1": make_conv_params(keys[3], 16, 3, 3),
        "t2": make_conv_params(keys[4], 32, 16, 3),
        "t3": make_conv_params(keys[5], 64, 32, 3),
        "f1": make_conv_params(keys[6], 64, 128, 1),
        "f2": make_conv_params(keys[7], 1, 64, 3),
    }


def _fold_taps(w_oihw):
    """Torch conv weight (Cout, Cin, 3, 3) -> per-tap GEMM blocks (9, Cin, Cout)."""
    cout, cin = w_oihw.shape[:2]
    return np.transpose(np.asarray(w_oihw), (2, 3, 1, 0)).reshape(9, cin, cout)


def _pack_pair(w_sp, w_tp, b_sp, b_tp, cin_total=None):
    """Stack both streams into one block-diagonal, tap-folded GEMM weight."""
    cout, cin = w_sp.shape[:2]
    cin_total = 2 * cin if cin_total is None else cin_total
    taps = np.zeros((9, cin_total, 2 * cout), np.float32)
    taps[:, :cin, :cout] = _fold_taps(w_sp)
    taps[:, cin:2 * cin, cout:] = _fold_taps(w_tp)
    wgt = jnp.asarray(taps.reshape(9 * cin_total, 2 * cout))
    bias = jnp.concatenate([b_sp, b_tp]).reshape(1, -1)
    return wgt, bias


def _make_full_mask(h, w, cin_total):
    """(h*w, 9*cin_total) 0/1 mask: all lanes of tap t are zero where the
    shifted source pixel is outside the image (emulates conv zero padding)."""
    ys = np.arange(h)[:, None]
    xs = np.arange(w)[None, :]
    cols = []
    for t in range(9):
        dy, dx = t // 3 - 1, t % 3 - 1
        ok = ((ys + dy >= 0) & (ys + dy < h) &
              (xs + dx >= 0) & (xs + dx < w)).astype(np.float32).reshape(-1)
        cols.append(np.repeat(ok[:, None], cin_total, axis=1))
    return jnp.asarray(np.concatenate(cols, axis=1))


def bilinear_matrix(in_size, out_size):
    """PyTorch Upsample(mode='bilinear', align_corners=False) 1-D interp matrix."""
    scale = in_size / out_size
    mat = np.zeros((out_size, in_size), np.float32)
    for d in range(out_size):
        src = max((d + 0.5) * scale - 0.5, 0.0)
        i0 = min(int(np.floor(src)), in_size - 1)
        i1 = min(i0 + 1, in_size - 1)
        frac = src - i0
        mat[d, i0] += 1.0 - frac
        mat[d, i1] += frac
    return mat


def pack_params(params):
    w1, b1 = _pack_pair(params["s1"][0], params["t1"][0],
                        params["s1"][1], params["t1"][1], cin_total=_CIN1)
    w2, b2 = _pack_pair(params["s2"][0], params["t2"][0],
                        params["s2"][1], params["t2"][1])
    w3, b3 = _pack_pair(params["s3"][0], params["t3"][0],
                        params["s3"][1], params["t3"][1])

    wf1 = jnp.asarray(np.transpose(np.asarray(params["f1"][0]),
                                   (2, 3, 1, 0)).reshape(128, 64))
    bf1 = params["f1"][1].reshape(1, 64)
    wf2 = jnp.asarray(_fold_taps(params["f2"][0]).reshape(9 * 64, 1))
    bf2 = params["f2"][1].reshape(1, 1)

    m1 = _make_full_mask(16, 16, _CIN1)       # (256, 72)
    m2 = _make_full_mask(8, 8, 32)            # (64, 288)
    m3 = _make_full_mask(4, 4, 64)            # (16, 576)
    mf = _make_full_mask(16, 16, 64)          # (256, 576)

    b1d = bilinear_matrix(4, 16)
    bmat = jnp.asarray(np.kron(b1d, b1d))     # (256, 16), per image
    return (w1, b1, w2, b2, w3, b3, wf1, bf1, wf2, bf2, m1, m2, m3, mf, bmat)


# ----------------------------------------------------------------------------
# Pure-JAX/XLA reference of the original module (in-script correctness check)
# ----------------------------------------------------------------------------
def reference_forward(spatial_nchw, temporal_nchw, params):
    hp = jax.lax.Precision.HIGHEST

    def conv(x, wgt, b, padding):
        wh = jnp.transpose(wgt, (2, 3, 1, 0))     # HWIO
        y = jax.lax.conv_general_dilated(
            x, wh, (1, 1), padding,
            dimension_numbers=("NHWC", "HWIO", "NHWC"), precision=hp)
        return y + b.reshape(1, 1, 1, -1)

    def maxpool(x):
        return jax.lax.reduce_window(x, -jnp.inf, jax.lax.max,
                                     (1, 2, 2, 1), (1, 2, 2, 1), "VALID")

    def stream(x, p1, p2, p3):
        hh = maxpool(jax.nn.relu(conv(x, *p1, "SAME")))
        hh = maxpool(jax.nn.relu(conv(hh, *p2, "SAME")))
        return jax.nn.relu(conv(hh, *p3, "SAME"))

    sp = stream(jnp.transpose(spatial_nchw, (0, 2, 3, 1)),
                params["s1"], params["s2"], params["s3"])
    tp = stream(jnp.transpose(temporal_nchw, (0, 2, 3, 1)),
                params["t1"], params["t2"], params["t3"])
    fused = jnp.concatenate([sp, tp], axis=-1)
    t = jax.nn.relu(conv(fused, *params["f1"], "SAME"))            # (n,4,4,64)

    n = t.shape[0]
    b1d = bilinear_matrix(4, 16)
    bmat1 = jnp.asarray(np.kron(b1d, b1d))                         # (256, 16)
    up = jnp.einsum("oi,nic->noc", bmat1, t.reshape(n, 16, 64),
                    precision=hp).reshape(n, 16, 16, 64)
    m = jax.nn.sigmoid(conv(up, *params["f2"], "SAME"))
    return jnp.transpose(m, (0, 3, 1, 2))


# ----------------------------------------------------------------------------
if __name__ == "__main__":
    n_batch, chans, height, width = 2, 3, 16, 16

    key = jax.random.PRNGKey(0)
    k_sp, k_tp = jax.random.split(key)
    spatial_input = jax.random.normal(k_sp, (n_batch, chans, height, width),
                                      jnp.float32)
    temporal_input = jax.random.normal(k_tp, (n_batch, chans, height, width),
                                       jnp.float32)

    params = init_params(jax.random.PRNGKey(42))
    packed = pack_params(params)

    fwd = jax.jit(two_stream_forward)
    mask = jax.block_until_ready(fwd(spatial_input, temporal_input, packed))

    assert mask.shape == (n_batch, 1, height, width), mask.shape
    assert bool(jnp.all(jnp.isfinite(mask)))
    assert bool(jnp.all((mask >= 0.0) & (mask <= 1.0)))

    ref = reference_forward(spatial_input, temporal_input, params)
    max_err = float(jnp.max(jnp.abs(mask - ref)))
    assert max_err < 2e-3, f"kernel/reference mismatch: {max_err}"

    print("KERNEL_OK")
</pallas_src>

<mosaic_0001>
module attributes {stable_mosaic.version = 11 : i64} {
  func.func @_two_stream_kernel(%arg0: i32, %arg1: memref<256x8xf32, #tpu.memory_space<vmem>>, %arg2: memref<72x32xf32, #tpu.memory_space<vmem>>, %arg3: memref<1x32xf32, #tpu.memory_space<vmem>>, %arg4: memref<288x64xf32, #tpu.memory_space<vmem>>, %arg5: memref<1x64xf32, #tpu.memory_space<vmem>>, %arg6: memref<576x128xf32, #tpu.memory_space<vmem>>, %arg7: memref<1x128xf32, #tpu.memory_space<vmem>>, %arg8: memref<128x64xf32, #tpu.memory_space<vmem>>, %arg9: memref<1x64xf32, #tpu.memory_space<vmem>>, %arg10: memref<576x1xf32, #tpu.memory_space<vmem>>, %arg11: memref<1x1xf32, #tpu.memory_space<vmem>>, %arg12: memref<256x72xf32, #tpu.memory_space<vmem>>, %arg13: memref<64x288xf32, #tpu.memory_space<vmem>>, %arg14: memref<16x576xf32, #tpu.memory_space<vmem>>, %arg15: memref<256x576xf32, #tpu.memory_space<vmem>>, %arg16: memref<256x16xf32, #tpu.memory_space<vmem>>, %arg17: memref<256x1xf32, #tpu.memory_space<vmem>>, %arg18: memref<304x8xf32, #tpu.memory_space<vmem>>, %arg19: memref<96x32xf32, #tpu.memory_space<vmem>>, %arg20: memref<32x64xf32, #tpu.memory_space<vmem>>, %arg21: memref<304x64xf32, #tpu.memory_space<vmem>>, %arg22: memref<256x32xf32, #tpu.memory_space<vmem>>, %arg23: memref<64x64xf32, #tpu.memory_space<vmem>>) attributes {dimension_semantics = [#tpu.dimension_semantics<parallel>], iteration_bounds = array<i64: 2>, scalar_prefetch = 0 : i64, scratch_operands = 6 : i64, tpu.core_type = #tpu.core_type<tc>, window_params = [{transform_indices = @transform_0, window_bounds = array<i64: 256, 8>}, {pipeline_mode = #tpu.pipeline_mode<synchronous>, transform_indices = @transform_1, window_bounds = array<i64: 72, 32>}, {pipeline_mode = #tpu.pipeline_mode<synchronous>, transform_indices = @transform_2, window_bounds = array<i64: 1, 32>}, {pipeline_mode = #tpu.pipeline_mode<synchronous>, transform_indices = @transform_3, window_bounds = array<i64: 288, 64>}, {pipeline_mode = #tpu.pipeline_mode<synchronous>, transform_indices = @transform_4, window_bounds = array<i64: 1, 64>}, {pipeline_mode = #tpu.pipeline_mode<synchronous>, transform_indices = @transform_5, window_bounds = array<i64: 576, 128>}, {pipeline_mode = #tpu.pipeline_mode<synchronous>, transform_indices = @transform_6, window_bounds = array<i64: 1, 128>}, {pipeline_mode = #tpu.pipeline_mode<synchronous>, transform_indices = @transform_7, window_bounds = array<i64: 128, 64>}, {pipeline_mode = #tpu.pipeline_mode<synchronous>, transform_indices = @transform_8, window_bounds = array<i64: 1, 64>}, {pipeline_mode = #tpu.pipeline_mode<synchronous>, transform_indices = @transform_9, window_bounds = array<i64: 576, 1>}, {pipeline_mode = #tpu.pipeline_mode<synchronous>, transform_indices = @transform_10, window_bounds = array<i64: 1, 1>}, {pipeline_mode = #tpu.pipeline_mode<synchronous>, transform_indices = @transform_11, window_bounds = array<i64: 256, 72>}, {pipeline_mode = #tpu.pipeline_mode<synchronous>, transform_indices = @transform_12, window_bounds = array<i64: 64, 288>}, {pipeline_mode = #tpu.pipeline_mode<synchronous>, transform_indices = @transform_13, window_bounds = array<i64: 16, 576>}, {pipeline_mode = #tpu.pipeline_mode<synchronous>, transform_indices = @transform_14, window_bounds = array<i64: 256, 576>}, {pipeline_mode = #tpu.pipeline_mode<synchronous>, transform_indices = @transform_15, window_bounds = array<i64: 256, 16>}, {transform_indices = @transform_16, window_bounds = array<i64: 256, 1>}]} {
    %cst = arith.constant 0.000000e+00 : f32
    %0 = vector.broadcast %cst : f32 to vector<24x8xf32>
    %c0 = arith.constant 0 : index
    %c0_0 = arith.constant 0 : index
    %1 = vector.load %arg18[%c0, %c0_0] : memref<304x8xf32, #tpu.memory_space<vmem>>, vector<24x8xf32>
    tpu.vector_store %arg18[%c0, %c0_0], %0 {strides = array<i32>} : memref<304x8xf32, #tpu.memory_space<vmem>>, vector<24x8xf32>,
    %c280 = arith.constant 280 : index
    %c0_1 = arith.constant 0 : index
    %2 = vector.load %arg18[%c280, %c0_1] : memref<304x8xf32, #tpu.memory_space<vmem>>, vector<24x8xf32>
    tpu.vector_store %arg18[%c280, %c0_1], %0 {strides = array<i32>} : memref<304x8xf32, #tpu.memory_space<vmem>>, vector<24x8xf32>,
    %cst_2 = arith.constant 0.000000e+00 : f32
    %3 = vector.broadcast %cst_2 : f32 to vector<16x32xf32>
    %c0_3 = arith.constant 0 : index
    %c0_4 = arith.constant 0 : index
    %4 = vector.load %arg19[%c0_3, %c0_4] : memref<96x32xf32, #tpu.memory_space<vmem>>, vector<16x32xf32>
    tpu.vector_store %arg19[%c0_3, %c0_4], %3 {strides = array<i32>} : memref<96x32xf32, #tpu.memory_space<vmem>>, vector<16x32xf32>,
    %c80 = arith.constant 80 : index
    %c0_5 = arith.constant 0 : index
    %5 = vector.load %arg19[%c80, %c0_5] : memref<96x32xf32, #tpu.memory_space<vmem>>, vector<16x32xf32>
    tpu.vector_store %arg19[%c80, %c0_5], %3 {strides = array<i32>} : memref<96x32xf32, #tpu.memory_space<vmem>>, vector<16x32xf32>,
    %cst_6 = arith.constant 0.000000e+00 : f32
    %6 = vector.broadcast %cst_6 : f32 to vector<8x64xf32>
    %c0_7 = arith.constant 0 : index
    %c0_8 = arith.constant 0 : index
    %7 = vector.load %arg20[%c0_7, %c0_8] : memref<32x64xf32, #tpu.memory_space<vmem>>, vector<8x64xf32>
    tpu.vector_store %arg20[%c0_7, %c0_8], %6 {strides = array<i32>} : memref<32x64xf32, #tpu.memory_space<vmem>>, vector<8x64xf32>,
    %c24 = arith.constant 24 : index
    %c0_9 = arith.constant 0 : index
    %8 = vector.load %arg20[%c24, %c0_9] : memref<32x64xf32, #tpu.memory_space<vmem>>, vector<8x64xf32>
    tpu.vector_store %arg20[%c24, %c0_9], %6 {strides = array<i32>} : memref<32x64xf32, #tpu.memory_space<vmem>>, vector<8x64xf32>,
    %cst_10 = arith.constant 0.000000e+00 : f32
    %9 = vector.broadcast %cst_10 : f32 to vector<24x64xf32>
    %c0_11 = arith.constant 0 : index
    %c0_12 = arith.constant 0 : index
    %10 = vector.load %arg21[%c0_11, %c0_12] : memref<304x64xf32, #tpu.memory_space<vmem>>, vector<24x64xf32>
    tpu.vector_store %arg21[%c0_11, %c0_12], %9 {strides = array<i32>} : memref<304x64xf32, #tpu.memory_space<vmem>>, vector<24x64xf32>,
    %c280_13 = arith.constant 280 : index
    %c0_14 = arith.constant 0 : index
    %11 = vector.load %arg21[%c280_13, %c0_14] : memref<304x64xf32, #tpu.memory_space<vmem>>, vector<24x64xf32>
    tpu.vector_store %arg21[%c280_13, %c0_14], %9 {strides = array<i32>} : memref<304x64xf32, #tpu.memory_space<vmem>>, vector<24x64xf32>,
    %c0_15 = arith.constant 0 : index
    %c0_16 = arith.constant 0 : index
    %12 = vector.load %arg1[%c0_15, %c0_16] : memref<256x8xf32, #tpu.memory_space<vmem>>, vector<256x8xf32>
    %c24_17 = arith.constant 24 : index
    %c0_18 = arith.constant 0 : index
    %13 = vector.load %arg18[%c24_17, %c0_18] : memref<304x8xf32, #tpu.memory_space<vmem>>, vector<256x8xf32>
    tpu.vector_store %arg18[%c24_17, %c0_18], %12 {strides = array<i32>} : memref<304x8xf32, #tpu.memory_space<vmem>>, vector<256x8xf32>,
    %c7 = arith.constant 7 : index
    %c0_19 = arith.constant 0 : index
    %14 = vector.load %arg18[%c7, %c0_19] : memref<304x8xf32, #tpu.memory_space<vmem>>, vector<256x8xf32>
    %c8 = arith.constant 8 : index
    %c0_20 = arith.constant 0 : index
    %15 = vector.load %arg18[%c8, %c0_20] : memref<304x8xf32, #tpu.memory_space<vmem>>, vector<256x8xf32>
    %c9 = arith.constant 9 : index
    %c0_21 = arith.constant 0 : index
    %16 = vector.load %arg18[%c9, %c0_21] : memref<304x8xf32, #tpu.memory_space<vmem>>, vector<256x8xf32>
    %c23 = arith.constant 23 : index
    %c0_22 = arith.constant 0 : index
    %17 = vector.load %arg18[%c23, %c0_22] : memref<304x8xf32, #tpu.memory_space<vmem>>, vector<256x8xf32>
    %c24_23 = arith.constant 24 : index
    %c0_24 = arith.constant 0 : index
    %18 = vector.load %arg18[%c24_23, %c0_24] : memref<304x8xf32, #tpu.memory_space<vmem>>, vector<256x8xf32>
    %c25 = arith.constant 25 : index
    %c0_25 = arith.constant 0 : index
    %19 = vector.load %arg18[%c25, %c0_25] : memref<304x8xf32, #tpu.memory_space<vmem>>, vector<256x8xf32>
    %c39 = arith.constant 39 : index
    %c0_26 = arith.constant 0 : index
    %20 = vector.load %arg18[%c39, %c0_26] : memref<304x8xf32, #tpu.memory_space<vmem>>, vector<256x8xf32>
    %c40 = arith.constant 40 : index
    %c0_27 = arith.constant 0 : index
    %21 = vector.load %arg18[%c40, %c0_27] : memref<304x8xf32, #tpu.memory_space<vmem>>, vector<256x8xf32>
    %c41 = arith.constant 41 : index
    %c0_28 = arith.constant 0 : index
    %22 = vector.load %arg18[%c41, %c0_28] : memref<304x8xf32, #tpu.memory_space<vmem>>, vector<256x8xf32>
    %23 = tpu.concatenate %14, %15, %16, %17, %18, %19, %20, %21, %22 in 1 : vector<256x8xf32>, vector<256x8xf32>, vector<256x8xf32>, vector<256x8xf32>, vector<256x8xf32>, vector<256x8xf32>, vector<256x8xf32>, vector<256x8xf32>, vector<256x8xf32> -> vector<256x72xf32>
    %c0_29 = arith.constant 0 : index
    %c0_30 = arith.constant 0 : index
    %24 = vector.load %arg12[%c0_29, %c0_30] : memref<256x72xf32, #tpu.memory_space<vmem>>, vector<256x72xf32>
    %25 = arith.mulf %23, %24 : vector<256x72xf32>
    %c0_31 = arith.constant 0 : index
    %c0_32 = arith.constant 0 : index
    %26 = vector.load %arg2[%c0_31, %c0_32] : memref<72x32xf32, #tpu.memory_space<vmem>>, vector<72x32xf32>
    %cst_33 = arith.constant dense<0.000000e+00> : vector<256x32xf32>
    %27 = tpu.matmul %25, %26, %cst_33 {dimension_numbers = #tpu.dot_dimension_numbers<[1], [0], [0], [1], [0, 0, 1, 1], [], []>} : vector<256x72xf32>, vector<72x32xf32>, vector<256x32xf32> -> vector<256x32xf32>
    %c0_34 = arith.constant 0 : index
    %c0_35 = arith.constant 0 : index
    %28 = vector.load %arg3[%c0_34, %c0_35] : memref<1x32xf32, #tpu.memory_space<vmem>>, vector<1x32xf32>
    %29 = vector.broadcast %28 : vector<1x32xf32> to vector<256x32xf32>
    %30 = arith.addf %27, %29 : vector<256x32xf32>
    %cst_36 = arith.constant 0.000000e+00 : f32
    %31 = vector.broadcast %cst_36 : f32 to vector<256x32xf32>
    %32 = arith.maximumf %30, %31 : vector<256x32xf32>
    %c0_37 = arith.constant 0 : index
    %c0_38 = arith.constant 0 : index
    %33 = vector.load %arg22[%c0_37, %c0_38] : memref<256x32xf32, #tpu.memory_space<vmem>>, vector<256x32xf32>
    tpu.vector_store %arg22[%c0_37, %c0_38], %32 {strides = array<i32>} : memref<256x32xf32, #tpu.memory_space<vmem>>, vector<256x32xf32>,
    %c0_39 = arith.constant 0 : index
    %c0_40 = arith.constant 0 : index
    %34 = tpu.strided_load %arg22[%c0_39, %c0_40] {strides = array<i32: 2, 1>} : memref<256x32xf32, #tpu.memory_space<vmem>>, vector<128x32xf32>
    %c1 = arith.constant 1 : index
    %c0_41 = arith.constant 0 : index
    %35 = tpu.strided_load %arg22[%c1, %c0_41] {strides = array<i32: 2, 1>} : memref<256x32xf32, #tpu.memory_space<vmem>>, vector<128x32xf32>
    %36 = arith.maximumf %34, %35 : vector<128x32xf32>
    %c0_42 = arith.constant 0 : index
    %c0_43 = arith.constant 0 : index
    %37 = vector.load %arg22[%c0_42, %c0_43] : memref<256x32xf32, #tpu.memory_space<vmem>>, vector<128x32xf32>
    tpu.vector_store %arg22[%c0_42, %c0_43], %36 {strides = array<i32>} : memref<256x32xf32, #tpu.memory_space<vmem>>, vector<128x32xf32>,
    %c0_44 = arith.constant 0 : index
    %c0_45 = arith.constant 0 : index
    %38 = vector.load %arg22[%c0_44, %c0_45] : memref<256x32xf32, #tpu.memory_space<vmem>>, vector<8x32xf32>
    %c8_46 = arith.constant 8 : index
    %c0_47 = arith.constant 0 : index
    %39 = vector.load %arg22[%c8_46, %c0_47] : memref<256x32xf32, #tpu.memory_space<vmem>>, vector<8x32xf32>
    %40 = arith.maximumf %38, %39 : vector<8x32xf32>
    %c16 = arith.constant 16 : index
    %c0_48 = arith.constant 0 : index
    %41 = vector.load %arg19[%c16, %c0_48] : memref<96x32xf32, #tpu.memory_space<vmem>>, vector<8x32xf32>
    tpu.vector_store %arg19[%c16, %c0_48], %40 {strides = array<i32>} : memref<96x32xf32, #tpu.memory_space<vmem>>, vector<8x32xf32>,
    %c16_49 = arith.constant 16 : index
    %c0_50 = arith.constant 0 : index
    %42 = vector.load %arg22[%c16_49, %c0_50] : memref<256x32xf32, #tpu.memory_space<vmem>>, vector<8x32xf32>
    %c24_51 = arith.constant 24 : index
    %c0_52 = arith.constant 0 : index
    %43 = vector.load %arg22[%c24_51, %c0_52] : memref<256x32xf32, #tpu.memory_space<vmem>>, vector<8x32xf32>
    %44 = arith.maximumf %42, %43 : vector<8x32xf32>
    %c24_53 = arith.constant 24 : index
    %c0_54 = arith.constant 0 : index
    %45 = vector.load %arg19[%c24_53, %c0_54] : memref<96x32xf32, #tpu.memory_space<vmem>>, vector<8x32xf32>
    tpu.vector_store %arg19[%c24_53, %c0_54], %44 {strides = array<i32>} : memref<96x32xf32, #tpu.memory_space<vmem>>, vector<8x32xf32>,
    %c32 = arith.constant 32 : index
    %c0_55 = arith.constant 0 : index
    %46 = vector.load %arg22[%c32, %c0_55] : memref<256x32xf32, #tpu.memory_space<vmem>>, vector<8x32xf32>
    %c40_56 = arith.constant 40 : index
    %c0_57 = arith.constant 0 : index
    %47 = vector.load %arg22[%c40_56, %c0_57] : memref<256x32xf32, #tpu.memory_space<vmem>>, vector<8x32xf32>
    %48 = arith.maximumf %46, %47 : vector<8x32xf32>
    %c32_58 = arith.constant 32 : index
    %c0_59 = arith.constant 0 : index
    %49 = vector.load %arg19[%c32_58, %c0_59] : memref<96x32xf32, #tpu.memory_space<vmem>>, vector<8x32xf32>
    tpu.vector_store %arg19[%c32_58, %c0_59], %48 {strides = array<i32>} : memref<96x32xf32, #tpu.memory_space<vmem>>, vector<8x32xf32>,
    %c48 = arith.constant 48 : index
    %c0_60 = arith.constant 0 : index
    %50 = vector.load %arg22[%c48, %c0_60] : memref<256x32xf32, #tpu.memory_space<vmem>>, vector<8x32xf32>
    %c56 = arith.constant 56 : index
    %c0_61 = arith.constant 0 : index
    %51 = vector.load %arg22[%c56, %c0_61] : memref<256x32xf32, #tpu.memory_space<vmem>>, vector<8x32xf32>
    %52 = arith.maximumf %50, %51 : vector<8x32xf32>
    %c40_62 = arith.constant 40 : index
    %c0_63 = arith.constant 0 : index
    %53 = vector.load %arg19[%c40_62, %c0_63] : memref<96x32xf32, #tpu.memory_space<vmem>>, vector<8x32xf32>
    tpu.vector_store %arg19[%c40_62, %c0_63], %52 {strides = array<i32>} : memref<96x32xf32, #tpu.memory_space<vmem>>, vector<8x32xf32>,
    %c64 = arith.constant 64 : index
    %c0_64 = arith.constant 0 : index
    %54 = vector.load %arg22[%c64, %c0_64] : memref<256x32xf32, #tpu.memory_space<vmem>>, vector<8x32xf32>
    %c72 = arith.constant 72 : index
    %c0_65 = arith.constant 0 : index
    %55 = vector.load %arg22[%c72, %c0_65] : memref<256x32xf32, #tpu.memory_space<vmem>>, vector<8x32xf32>
    %56 = arith.maximumf %54, %55 : vector<8x32xf32>
    %c48_66 = arith.constant 48 : index
    %c0_67 = arith.constant 0 : index
    %57 = vector.load %arg19[%c48_66, %c0_67] : memref<96x32xf32, #tpu.memory_space<vmem>>, vector<8x32xf32>
    tpu.vector_store %arg19[%c48_66, %c0_67], %56 {strides = array<i32>} : memref<96x32xf32, #tpu.memory_space<vmem>>, vector<8x32xf32>,
    %c80_68 = arith.constant 80 : index
    %c0_69 = arith.constant 0 : index
    %58 = vector.load %arg22[%c80_68, %c0_69] : memref<256x32xf32, #tpu.memory_space<vmem>>, vector<8x32xf32>
    %c88 = arith.constant 88 : index
    %c0_70 = arith.constant 0 : index
    %59 = vector.load %arg22[%c88, %c0_70] : memref<256x32xf32, #tpu.memory_space<vmem>>, vector<8x32xf32>
    %60 = arith.maximumf %58, %59 : vector<8x32xf32>
    %c56_71 = arith.constant 56 : index
    %c0_72 = arith.constant 0 : index
    %61 = vector.load %arg19[%c56_71, %c0_72] : memref<96x32xf32, #tpu.memory_space<vmem>>, vector<8x32xf32>
    tpu.vector_store %arg19[%c56_71, %c0_72], %60 {strides = array<i32>} : memref<96x32xf32, #tpu.memory_space<vmem>>, vector<8x32xf32>,
    %c96 = arith.constant 96 : index
    %c0_73 = arith.constant 0 : index
    %62 = vector.load %arg22[%c96, %c0_73] : memref<256x32xf32, #tpu.memory_space<vmem>>, vector<8x32xf32>
    %c104 = arith.constant 104 : index
    %c0_74 = arith.constant 0 : index
    %63 = vector.load %arg22[%c104, %c0_74] : memref<256x32xf32, #tpu.memory_space<vmem>>, vector<8x32xf32>
    %64 = arith.maximumf %62, %63 : vector<8x32xf32>
    %c64_75 = arith.constant 64 : index
    %c0_76 = arith.constant 0 : index
    %65 = vector.load %arg19[%c64_75, %c0_76] : memref<96x32xf32, #tpu.memory_space<vmem>>, vector<8x32xf32>
    tpu.vector_store %arg19[%c64_75, %c0_76], %64 {strides = array<i32>} : memref<96x32xf32, #tpu.memory_space<vmem>>, vector<8x32xf32>,
    %c112 = arith.constant 112 : index
    %c0_77 = arith.constant 0 : index
    %66 = vector.load %arg22[%c112, %c0_77] : memref<256x32xf32, #tpu.memory_space<vmem>>, vector<8x32xf32>
    %c120 = arith.constant 120 : index
    %c0_78 = arith.constant 0 : index
    %67 = vector.load %arg22[%c120, %c0_78] : memref<256x32xf32, #tpu.memory_space<vmem>>, vector<8x32xf32>
    %68 = arith.maximumf %66, %67 : vector<8x32xf32>
    %c72_79 = arith.constant 72 : index
    %c0_80 = arith.constant 0 : index
    %69 = vector.load %arg19[%c72_79, %c0_80] : memref<96x32xf32, #tpu.memory_space<vmem>>, vector<8x32xf32>
    tpu.vector_store %arg19[%c72_79, %c0_80], %68 {strides = array<i32>} : memref<96x32xf32, #tpu.memory_space<vmem>>, vector<8x32xf32>,
    %c7_81 = arith.constant 7 : index
    %c0_82 = arith.constant 0 : index
    %70 = vector.load %arg19[%c7_81, %c0_82] : memref<96x32xf32, #tpu.memory_space<vmem>>, vector<64x32xf32>
    %c8_83 = arith.constant 8 : index
    %c0_84 = arith.constant 0 : index
    %71 = vector.load %arg19[%c8_83, %c0_84] : memref<96x32xf32, #tpu.memory_space<vmem>>, vector<64x32xf32>
    %c9_85 = arith.constant 9 : index
    %c0_86 = arith.constant 0 : index
    %72 = vector.load %arg19[%c9_85, %c0_86] : memref<96x32xf32, #tpu.memory_space<vmem>>, vector<64x32xf32>
    %c15 = arith.constant 15 : index
    %c0_87 = arith.constant 0 : index
    %73 = vector.load %arg19[%c15, %c0_87] : memref<96x32xf32, #tpu.memory_space<vmem>>, vector<64x32xf32>
    %c16_88 = arith.constant 16 : index
    %c0_89 = arith.constant 0 : index
    %74 = vector.load %arg19[%c16_88, %c0_89] : memref<96x32xf32, #tpu.memory_space<vmem>>, vector<64x32xf32>
    %c17 = arith.constant 17 : index
    %c0_90 = arith.constant 0 : index
    %75 = vector.load %arg19[%c17, %c0_90] : memref<96x32xf32, #tpu.memory_space<vmem>>, vector<64x32xf32>
    %c23_91 = arith.constant 23 : index
    %c0_92 = arith.constant 0 : index
    %76 = vector.load %arg19[%c23_91, %c0_92] : memref<96x32xf32, #tpu.memory_space<vmem>>, vector<64x32xf32>
    %c24_93 = arith.constant 24 : index
    %c0_94 = arith.constant 0 : index
    %77 = vector.load %arg19[%c24_93, %c0_94] : memref<96x32xf32, #tpu.memory_space<vmem>>, vector<64x32xf32>
    %c25_95 = arith.constant 25 : index
    %c0_96 = arith.constant 0 : index
    %78 = vector.load %arg19[%c25_95, %c0_96] : memref<96x32xf32, #tpu.memory_space<vmem>>, vector<64x32xf32>
    %79 = tpu.concatenate %70, %71, %72, %73, %74, %75, %76, %77, %78 in 1 : vector<64x32xf32>, vector<64x32xf32>, vector<64x32xf32>, vector<64x32xf32>, vector<64x32xf32>, vector<64x32xf32>, vector<64x32xf32>, vector<64x32xf32>, vector<64x32xf32> -> vector<64x288xf32>
    %c0_97 = arith.constant 0 : index
    %c0_98 = arith.constant 0 : index
    %80 = vector.load %arg13[%c0_97, %c0_98] : memref<64x288xf32, #tpu.memory_space<vmem>>, vector<64x288xf32>
    %81 = arith.mulf %79, %80 : vector<64x288xf32>
    %c0_99 = arith.constant 0 : index
    %c0_100 = arith.constant 0 : index
    %82 = vector.load %arg4[%c0_99, %c0_100] : memref<288x64xf32, #tpu.memory_space<vmem>>, vector<288x64xf32>
    %cst_101 = arith.constant dense<0.000000e+00> : vector<64x64xf32>
    %83 = tpu.matmul %81, %82, %cst_101 {dimension_numbers = #tpu.dot_dimension_numbers<[1], [0], [0], [1], [0, 0, 1, 1], [], []>} : vector<64x288xf32>, vector<288x64xf32>, vector<64x64xf32> -> vector<64x64xf32>
    %c0_102 = arith.constant 0 : index
    %c0_103 = arith.constant 0 : index
    %84 = vector.load %arg5[%c0_102, %c0_103] : memref<1x64xf32, #tpu.memory_space<vmem>>, vector<1x64xf32>
    %85 = vector.broadcast %84 : vector<1x64xf32> to vector<64x64xf32>
    %86 = arith.addf %83, %85 : vector<64x64xf32>
    %cst_104 = arith.constant 0.000000e+00 : f32
    %87 = vector.broadcast %cst_104 : f32 to vector<64x64xf32>
    %88 = arith.maximumf %86, %87 : vector<64x64xf32>
    %c0_105 = arith.constant 0 : index
    %c0_106 = arith.constant 0 : index
    %89 = vector.load %arg23[%c0_105, %c0_106] : memref<64x64xf32, #tpu.memory_space<vmem>>, vector<64x64xf32>
    tpu.vector_store %arg23[%c0_105, %c0_106], %88 {strides = array<i32>} : memref<64x64xf32, #tpu.memory_space<vmem>>, vector<64x64xf32>,
    %c0_107 = arith.constant 0 : index
    %c0_108 = arith.constant 0 : index
    %90 = tpu.strided_load %arg23[%c0_107, %c0_108] {strides = array<i32: 2, 1>} : memref<64x64xf32, #tpu.memory_space<vmem>>, vector<32x64xf32>
    %c1_109 = arith.constant 1 : index
    %c0_110 = arith.constant 0 : index
    %91 = tpu.strided_load %arg23[%c1_109, %c0_110] {strides = array<i32: 2, 1>} : memref<64x64xf32, #tpu.memory_space<vmem>>, vector<32x64xf32>
    %92 = arith.maximumf %90, %91 : vector<32x64xf32>
    %c0_111 = arith.constant 0 : index
    %c0_112 = arith.constant 0 : index
    %93 = vector.load %arg23[%c0_111, %c0_112] : memref<64x64xf32, #tpu.memory_space<vmem>>, vector<32x64xf32>
    tpu.vector_store %arg23[%c0_111, %c0_112], %92 {strides = array<i32>} : memref<64x64xf32, #tpu.memory_space<vmem>>, vector<32x64xf32>,
    %c0_113 = arith.constant 0 : index
    %c0_114 = arith.constant 0 : index
    %94 = vector.load %arg23[%c0_113, %c0_114] : memref<64x64xf32, #tpu.memory_space<vmem>>, vector<4x64xf32>
    %c4 = arith.constant 4 : index
    %c0_115 = arith.constant 0 : index
    %95 = vector.load %arg23[%c4, %c0_115] : memref<64x64xf32, #tpu.memory_space<vmem>>, vector<4x64xf32>
    %96 = arith.maximumf %94, %95 : vector<4x64xf32>
    %c8_116 = arith.constant 8 : index
    %c0_117 = arith.constant 0 : index
    %97 = vector.load %arg20[%c8_116, %c0_117] : memref<32x64xf32, #tpu.memory_space<vmem>>, vector<4x64xf32>
    tpu.vector_store %arg20[%c8_116, %c0_117], %96 {strides = array<i32>} : memref<32x64xf32, #tpu.memory_space<vmem>>, vector<4x64xf32>,
    %c8_118 = arith.constant 8 : index
    %c0_119 = arith.constant 0 : index
    %98 = vector.load %arg23[%c8_118, %c0_119] : memref<64x64xf32, #tpu.memory_space<vmem>>, vector<4x64xf32>
    %c12 = arith.constant 12 : index
    %c0_120 = arith.constant 0 : index
    %99 = vector.load %arg23[%c12, %c0_120] : memref<64x64xf32, #tpu.memory_space<vmem>>, vector<4x64xf32>
    %100 = arith.maximumf %98, %99 : vector<4x64xf32>
    %c12_121 = arith.constant 12 : index
    %c0_122 = arith.constant 0 : index
    %101 = vector.load %arg20[%c12_121, %c0_122] : memref<32x64xf32, #tpu.memory_space<vmem>>, vector<4x64xf32>
    tpu.vector_store %arg20[%c12_121, %c0_122], %100 {strides = array<i32>} : memref<32x64xf32, #tpu.memory_space<vmem>>, vector<4x64xf32>,
    %c16_123 = arith.constant 16 : index
    %c0_124 = arith.constant 0 : index
    %102 = vector.load %arg23[%c16_123, %c0_124] : memref<64x64xf32, #tpu.memory_space<vmem>>, vector<4x64xf32>
    %c20 = arith.constant 20 : index
    %c0_125 = arith.constant 0 : index
    %103 = vector.load %arg23[%c20, %c0_125] : memref<64x64xf32, #tpu.memory_space<vmem>>, vector<4x64xf32>
    %104 = arith.maximumf %102, %103 : vector<4x64xf32>
    %c16_126 = arith.constant 16 : index
    %c0_127 = arith.constant 0 : index
    %105 = vector.load %arg20[%c16_126, %c0_127] : memref<32x64xf32, #tpu.memory_space<vmem>>, vector<4x64xf32>
    tpu.vector_store %arg20[%c16_126, %c0_127], %104 {strides = array<i32>} : memref<32x64xf32, #tpu.memory_space<vmem>>, vector<4x64xf32>,
    %c24_128 = arith.constant 24 : index
    %c0_129 = arith.constant 0 : index
    %106 = vector.load %arg23[%c24_128, %c0_129] : memref<64x64xf32, #tpu.memory_space<vmem>>, vector<4x64xf32>
    %c28 = arith.constant 28 : index
    %c0_130 = arith.constant 0 : index
    %107 = vector.load %arg23[%c28, %c0_130] : memref<64x64xf32, #tpu.memory_space<vmem>>, vector<4x64xf32>
    %108 = arith.maximumf %106, %107 : vector<4x64xf32>
    %c20_131 = arith.constant 20 : index
    %c0_132 = arith.constant 0 : index
    %109 = vector.load %arg20[%c20_131, %c0_132] : memref<32x64xf32, #tpu.memory_space<vmem>>, vector<4x64xf32>
    tpu.vector_store %arg20[%c20_131, %c0_132], %108 {strides = array<i32>} : memref<32x64xf32, #tpu.memory_space<vmem>>, vector<4x64xf32>,
    %c3 = arith.constant 3 : index
    %c0_133 = arith.constant 0 : index
    %110 = vector.load %arg20[%c3, %c0_133] : memref<32x64xf32, #tpu.memory_space<vmem>>, vector<16x64xf32>
    %c4_134 = arith.constant 4 : index
    %c0_135 = arith.constant 0 : index
    %111 = vector.load %arg20[%c4_134, %c0_135] : memref<32x64xf32, #tpu.memory_space<vmem>>, vector<16x64xf32>
    %c5 = arith.constant 5 : index
    %c0_136 = arith.constant 0 : index
    %112 = vector.load %arg20[%c5, %c0_136] : memref<32x64xf32, #tpu.memory_space<vmem>>, vector<16x64xf32>
    %c7_137 = arith.constant 7 : index
    %c0_138 = arith.constant 0 : index
    %113 = vector.load %arg20[%c7_137, %c0_138] : memref<32x64xf32, #tpu.memory_space<vmem>>, vector<16x64xf32>
    %c8_139 = arith.constant 8 : index
    %c0_140 = arith.constant 0 : index
    %114 = vector.load %arg20[%c8_139, %c0_140] : memref<32x64xf32, #tpu.memory_space<vmem>>, vector<16x64xf32>
    %c9_141 = arith.constant 9 : index
    %c0_142 = arith.constant 0 : index
    %115 = vector.load %arg20[%c9_141, %c0_142] : memref<32x64xf32, #tpu.memory_space<vmem>>, vector<16x64xf32>
    %c11 = arith.constant 11 : index
    %c0_143 = arith.constant 0 : index
    %116 = vector.load %arg20[%c11, %c0_143] : memref<32x64xf32, #tpu.memory_space<vmem>>, vector<16x64xf32>
    %c12_144 = arith.constant 12 : index
    %c0_145 = arith.constant 0 : index
    %117 = vector.load %arg20[%c12_144, %c0_145] : memref<32x64xf32, #tpu.memory_space<vmem>>, vector<16x64xf32>
    %c13 = arith.constant 13 : index
    %c0_146 = arith.constant 0 : index
    %118 = vector.load %arg20[%c13, %c0_146] : memref<32x64xf32, #tpu.memory_space<vmem>>, vector<16x64xf32>
    %119 = tpu.concatenate %110, %111, %112, %113, %114, %115, %116, %117, %118 in 1 : vector<16x64xf32>, vector<16x64xf32>, vector<16x64xf32>, vector<16x64xf32>, vector<16x64xf32>, vector<16x64xf32>, vector<16x64xf32>, vector<16x64xf32>, vector<16x64xf32> -> vector<16x576xf32>
    %c0_147 = arith.constant 0 : index
    %c0_148 = arith.constant 0 : index
    %120 = vector.load %arg14[%c0_147, %c0_148] : memref<16x576xf32, #tpu.memory_space<vmem>>, vector<16x576xf32>
    %121 = arith.mulf %119, %120 : vector<16x576xf32>
    %c0_149 = arith.constant 0 : index
    %c0_150 = arith.constant 0 : index
    %122 = vector.load %arg6[%c0_149, %c0_150] : memref<576x128xf32, #tpu.memory_space<vmem>>, vector<576x128xf32>
    %cst_151 = arith.constant dense<0.000000e+00> : vector<16x128xf32>
    %123 = tpu.matmul %121, %122, %cst_151 {dimension_numbers = #tpu.dot_dimension_numbers<[1], [0], [0], [1], [0, 0, 1, 1], [], []>} : vector<16x576xf32>, vector<576x128xf32>, vector<16x128xf32> -> vector<16x128xf32>
    %c0_152 = arith.constant 0 : index
    %c0_153 = arith.constant 0 : index
    %124 = vector.load %arg7[%c0_152, %c0_153] : memref<1x128xf32, #tpu.memory_space<vmem>>, vector<1x128xf32>
    %125 = vector.broadcast %124 : vector<1x128xf32> to vector<16x128xf32>
    %126 = arith.addf %123, %125 : vector<16x128xf32>
    %cst_154 = arith.constant 0.000000e+00 : f32
    %127 = vector.broadcast %cst_154 : f32 to vector<16x128xf32>
    %128 = arith.maximumf %126, %127 : vector<16x128xf32>
    %c0_155 = arith.constant 0 : index
    %c0_156 = arith.constant 0 : index
    %129 = vector.load %arg8[%c0_155, %c0_156] : memref<128x64xf32, #tpu.memory_space<vmem>>, vector<128x64xf32>
    %cst_157 = arith.constant dense<0.000000e+00> : vector<16x64xf32>
    %130 = tpu.matmul %128, %129, %cst_157 {dimension_numbers = #tpu.dot_dimension_numbers<[1], [0], [0], [1], [0, 0, 1, 1], [], []>} : vector<16x128xf32>, vector<128x64xf32>, vector<16x64xf32> -> vector<16x64xf32>
    %c0_158 = arith.constant 0 : index
    %c0_159 = arith.constant 0 : index
    %131 = vector.load %arg9[%c0_158, %c0_159] : memref<1x64xf32, #tpu.memory_space<vmem>>, vector<1x64xf32>
    %132 = vector.broadcast %131 : vector<1x64xf32> to vector<16x64xf32>
    %133 = arith.addf %130, %132 : vector<16x64xf32>
    %cst_160 = arith.constant 0.000000e+00 : f32
    %134 = vector.broadcast %cst_160 : f32 to vector<16x64xf32>
    %135 = arith.maximumf %133, %134 : vector<16x64xf32>
    %c0_161 = arith.constant 0 : index
    %c0_162 = arith.constant 0 : index
    %136 = vector.load %arg16[%c0_161, %c0_162] : memref<256x16xf32, #tpu.memory_space<vmem>>, vector<256x16xf32>
    %cst_163 = arith.constant dense<0.000000e+00> : vector<256x64xf32>
    %137 = tpu.matmul %136, %135, %cst_163 {dimension_numbers = #tpu.dot_dimension_numbers<[1], [0], [0], [1], [0, 0, 1, 1], [], []>} : vector<256x16xf32>, vector<16x64xf32>, vector<256x64xf32> -> vector<256x64xf32>
    %c24_164 = arith.constant 24 : index
    %c0_165 = arith.constant 0 : index
    %138 = vector.load %arg21[%c24_164, %c0_165] : memref<304x64xf32, #tpu.memory_space<vmem>>, vector<256x64xf32>
    tpu.vector_store %arg21[%c24_164, %c0_165], %137 {strides = array<i32>} : memref<304x64xf32, #tpu.memory_space<vmem>>, vector<256x64xf32>,
    %c7_166 = arith.constant 7 : index
    %c0_167 = arith.constant 0 : index
    %139 = vector.load %arg21[%c7_166, %c0_167] : memref<304x64xf32, #tpu.memory_space<vmem>>, vector<256x64xf32>
    %c8_168 = arith.constant 8 : index
    %c0_169 = arith.constant 0 : index
    %140 = vector.load %arg21[%c8_168, %c0_169] : memref<304x64xf32, #tpu.memory_space<vmem>>, vector<256x64xf32>
    %c9_170 = arith.constant 9 : index
    %c0_171 = arith.constant 0 : index
    %141 = vector.load %arg21[%c9_170, %c0_171] : memref<304x64xf32, #tpu.memory_space<vmem>>, vector<256x64xf32>
    %c23_172 = arith.constant 23 : index
    %c0_173 = arith.constant 0 : index
    %142 = vector.load %arg21[%c23_172, %c0_173] : memref<304x64xf32, #tpu.memory_space<vmem>>, vector<256x64xf32>
    %c24_174 = arith.constant 24 : index
    %c0_175 = arith.constant 0 : index
    %143 = vector.load %arg21[%c24_174, %c0_175] : memref<304x64xf32, #tpu.memory_space<vmem>>, vector<256x64xf32>
    %c25_176 = arith.constant 25 : index
    %c0_177 = arith.constant 0 : index
    %144 = vector.load %arg21[%c25_176, %c0_177] : memref<304x64xf32, #tpu.memory_space<vmem>>, vector<256x64xf32>
    %c39_178 = arith.constant 39 : index
    %c0_179 = arith.constant 0 : index
    %145 = vector.load %arg21[%c39_178, %c0_179] : memref<304x64xf32, #tpu.memory_space<vmem>>, vector<256x64xf32>
    %c40_180 = arith.constant 40 : index
    %c0_181 = arith.constant 0 : index
    %146 = vector.load %arg21[%c40_180, %c0_181] : memref<304x64xf32, #tpu.memory_space<vmem>>, vector<256x64xf32>
    %c41_182 = arith.constant 41 : index
    %c0_183 = arith.constant 0 : index
    %147 = vector.load %arg21[%c41_182, %c0_183] : memref<304x64xf32, #tpu.memory_space<vmem>>, vector<256x64xf32>
    %148 = tpu.concatenate %139, %140, %141, %142, %143, %144, %145, %146, %147 in 1 : vector<256x64xf32>, vector<256x64xf32>, vector<256x64xf32>, vector<256x64xf32>, vector<256x64xf32>, vector<256x64xf32>, vector<256x64xf32>, vector<256x64xf32>, vector<256x64xf32> -> vector<256x576xf32>
    %c0_184 = arith.constant 0 : index
    %c0_185 = arith.constant 0 : index
    %149 = vector.load %arg15[%c0_184, %c0_185] : memref<256x576xf32, #tpu.memory_space<vmem>>, vector<256x576xf32>
    %150 = arith.mulf %148, %149 : vector<256x576xf32>
    %c0_186 = arith.constant 0 : index
    %c0_187 = arith.constant 0 : index
    %151 = vector.load %arg10[%c0_186, %c0_187] : memref<576x1xf32, #tpu.memory_space<vmem>>, vector<576x1xf32>
    %cst_188 = arith.constant dense<0.000000e+00> : vector<256x1xf32>
    %152 = tpu.matmul %150, %151, %cst_188 {dimension_numbers = #tpu.dot_dimension_numbers<[1], [0], [0], [1], [0, 0, 1, 1], [], []>} : vector<256x576xf32>, vector<576x1xf32>, vector<256x1xf32> -> vector<256x1xf32>
    %c0_189 = arith.constant 0 : index
    %c0_190 = arith.constant 0 : index
    %153 = vector.load %arg11[%c0_189, %c0_190] : memref<1x1xf32, #tpu.memory_space<vmem>>, vector<1x1xf32>
    %154 = vector.broadcast %153 : vector<1x1xf32> to vector<256x1xf32>
    %155 = arith.addf %152, %154 : vector<256x1xf32>
    %156 = arith.negf %155 : vector<256x1xf32>
    %157 = math.exp %156 : vector<256x1xf32>
    %cst_191 = arith.constant 1.000000e+00 : f32
    %158 = vector.broadcast %cst_191 : f32 to vector<256x1xf32>
    %159 = arith.addf %158, %157 : vector<256x1xf32>
    %160 = arith.divf %158, %159 : vector<256x1xf32>
    %c0_192 = arith.constant 0 : index
    %c0_193 = arith.constant 0 : index
    %161 = vector.load %arg17[%c0_192, %c0_193] : memref<256x1xf32, #tpu.memory_space<vmem>>, vector<256x1xf32>
    tpu.vector_store %arg17[%c0_192, %c0_193], %160 {strides = array<i32>} : memref<256x1xf32, #tpu.memory_space<vmem>>, vector<256x1xf32>,
    return
  }
  func.func @transform_0(%arg0: i32) -> (i32, i32) {
    %c0_i32 = arith.constant 0 : i32
    %c0_i32_0 = arith.constant 0 : i32
    return %arg0, %c0_i32 : i32, i32
  }
  func.func @transform_1(%arg0: i32) -> (i32, i32) {
    %c0_i32 = arith.constant 0 : i32
    %c0_i32_0 = arith.constant 0 : i32
    %c0_i32_1 = arith.constant 0 : i32
    return %c0_i32, %c0_i32_0 : i32, i32
  }
  func.func @transform_2(%arg0: i32) -> (i32, i32) {
    %c0_i32 = arith.constant 0 : i32
    %c0_i32_0 = arith.constant 0 : i32
    %c0_i32_1 = arith.constant 0 : i32
    return %c0_i32, %c0_i32_0 : i32, i32
  }
  func.func @transform_3(%arg0: i32) -> (i32, i32) {
    %c0_i32 = arith.constant 0 : i32
    %c0_i32_0 = arith.constant 0 : i32
    %c0_i32_1 = arith.constant 0 : i32
    return %c0_i32, %c0_i32_0 : i32, i32
  }
  func.func @transform_4(%arg0: i32) -> (i32, i32) {
    %c0_i32 = arith.constant 0 : i32
    %c0_i32_0 = arith.constant 0 : i32
    %c0_i32_1 = arith.constant 0 : i32
    return %c0_i32, %c0_i32_0 : i32, i32
  }
  func.func @transform_5(%arg0: i32) -> (i32, i32) {
    %c0_i32 = arith.constant 0 : i32
    %c0_i32_0 = arith.constant 0 : i32
    %c0_i32_1 = arith.constant 0 : i32
    return %c0_i32, %c0_i32_0 : i32, i32
  }
  func.func @transform_6(%arg0: i32) -> (i32, i32) {
    %c0_i32 = arith.constant 0 : i32
    %c0_i32_0 = arith.constant 0 : i32
    %c0_i32_1 = arith.constant 0 : i32
    return %c0_i32, %c0_i32_0 : i32, i32
  }
  func.func @transform_7(%arg0: i32) -> (i32, i32) {
    %c0_i32 = arith.constant 0 : i32
    %c0_i32_0 = arith.constant 0 : i32
    %c0_i32_1 = arith.constant 0 : i32
    return %c0_i32, %c0_i32_0 : i32, i32
  }
  func.func @transform_8(%arg0: i32) -> (i32, i32) {
    %c0_i32 = arith.constant 0 : i32
    %c0_i32_0 = arith.constant 0 : i32
    %c0_i32_1 = arith.constant 0 : i32
    return %c0_i32, %c0_i32_0 : i32, i32
  }
  func.func @transform_9(%arg0: i32) -> (i32, i32) {
    %c0_i32 = arith.constant 0 : i32
    %c0_i32_0 = arith.constant 0 : i32
    %c0_i32_1 = arith.constant 0 : i32
    return %c0_i32, %c0_i32_0 : i32, i32
  }
  func.func @transform_10(%arg0: i32) -> (i32, i32) {
    %c0_i32 = arith.constant 0 : i32
    %c0_i32_0 = arith.constant 0 : i32
    %c0_i32_1 = arith.constant 0 : i32
    return %c0_i32, %c0_i32_0 : i32, i32
  }
  func.func @transform_11(%arg0: i32) -> (i32, i32) {
    %c0_i32 = arith.constant 0 : i32
    %c0_i32_0 = arith.constant 0 : i32
    %c0_i32_1 = arith.constant 0 : i32
    return %c0_i32, %c0_i32_0 : i32, i32
  }
  func.func @transform_12(%arg0: i32) -> (i32, i32) {
    %c0_i32 = arith.constant 0 : i32
    %c0_i32_0 = arith.constant 0 : i32
    %c0_i32_1 = arith.constant 0 : i32
    return %c0_i32, %c0_i32_0 : i32, i32
  }
  func.func @transform_13(%arg0: i32) -> (i32, i32) {
    %c0_i32 = arith.constant 0 : i32
    %c0_i32_0 = arith.constant 0 : i32
    %c0_i32_1 = arith.constant 0 : i32
    return %c0_i32, %c0_i32_0 : i32, i32
  }
  func.func @transform_14(%arg0: i32) -> (i32, i32) {
    %c0_i32 = arith.constant 0 : i32
    %c0_i32_0 = arith.constant 0 : i32
    %c0_i32_1 = arith.constant 0 : i32
    return %c0_i32, %c0_i32_0 : i32, i32
  }
  func.func @transform_15(%arg0: i32) -> (i32, i32) {
    %c0_i32 = arith.constant 0 : i32
    %c0_i32_0 = arith.constant 0 : i32
    %c0_i32_1 = arith.constant 0 : i32
    return %c0_i32, %c0_i32_0 : i32, i32
  }
  func.func @transform_16(%arg0: i32) -> (i32, i32) {
    %c0_i32 = arith.constant 0 : i32
    %c0_i32_0 = arith.constant 0 : i32
    return %arg0, %c0_i32 : i32, i32
  }
}

</mosaic_0001>

<llo_original>
// kernel: two_stream_forward.1
$region0: #{two_stream_forward.1}
  #allocation0 [shape = 'u32[]', space=smem, size = 0x4, offset = 0x4, fixed_abs, tag = 'smem constant byte address 0x4 - core index']
  #allocation1 [shape = 'u32[72,128]{1,0:T(1,128)}', space=vmem, size = 0x9000, scoped, tag = 'internal scratch']
  #allocation2 [shape = 'f32[304,8]{1,0:T(8,128)}', space=vmem, size = 0x26000, scoped, tag = 'scratch operand']
  #allocation3 [shape = 'f32[96,32]{1,0:T(8,128)}', space=vmem, size = 0xc000, scoped, tag = 'scratch operand']
  #allocation4 [shape = 'f32[32,64]{1,0:T(8,128)}', space=vmem, size = 0x4000, scoped, tag = 'scratch operand']
  #allocation5 [shape = 'f32[304,64]{1,0:T(8,128)}', space=vmem, size = 0x26000, scoped, tag = 'scratch operand']
  #allocation6 [shape = 'f32[256,32]{1,0:T(8,128)}', space=vmem, size = 0x20000, scoped, tag = 'scratch operand']
  #allocation7 [shape = 'f32[64,64]{1,0:T(8,128)}', space=vmem, size = 0x8000, scoped, tag = 'scratch operand']
  #allocation8 [shape = 'f32[1,1]{1,0:T(1,128)S(1)}', space=vmem, size = 0x200, scoped, tag = 'scoped memory for two_stream_forward.1']
  %s0 = inlined_call_operand.vmem [shape: f32[512,8], index: 0, kind: input, shape index: {}]
  %s1 = inlined_call_operand.vmem [shape: f32[72,32], index: 1, kind: input, shape index: {}]
  %s2 = inlined_call_operand.vmem [shape: f32[1,32], index: 2, kind: input, shape index: {}]
  %s3 = inlined_call_operand.vmem [shape: f32[288,64], index: 3, kind: input, shape index: {}]
  %s4 = inlined_call_operand.vmem [shape: f32[1,64], index: 4, kind: input, shape index: {}]
  %s5 = inlined_call_operand.vmem [shape: f32[576,128], index: 5, kind: input, shape index: {}]
  %s6 = inlined_call_operand.vmem [shape: f32[1,128], index: 6, kind: input, shape index: {}]
  %s7 = inlined_call_operand.vmem [shape: f32[128,64], index: 7, kind: input, shape index: {}]
  %s8 = inlined_call_operand.vmem [shape: f32[1,64], index: 8, kind: input, shape index: {}]
  %s9 = inlined_call_operand.vmem [shape: f32[576,1], index: 9, kind: input, shape index: {}]
  %s10 = inlined_call_operand.<no memory space> [shape: f32[1,1], index: 10, kind: input, shape index: {}]
  %s11 = inlined_call_operand.vmem [shape: f32[256,72], index: 11, kind: input, shape index: {}]
  %s12 = inlined_call_operand.vmem [shape: f32[64,288], index: 12, kind: input, shape index: {}]
  %s13 = inlined_call_operand.vmem [shape: f32[16,576], index: 13, kind: input, shape index: {}]
  %s14 = inlined_call_operand.vmem [shape: f32[256,576], index: 14, kind: input, shape index: {}]
  %s15 = inlined_call_operand.vmem [shape: f32[256,16], index: 15, kind: input, shape index: {}]
  %s16 = inlined_call_operand.vmem [shape: f32[512,1], index: 16, kind: output, shape index: {}]
  %s17 = sld [smem:[#allocation0]]
  $region97: #{two_stream_forward.1} parent=0
    _
  %s19 = ssub.s32 1, %s17
  %s20 = scalar_select 0, %s19, %s17
  %v21 = vstv %s10
  %22 = vst [vmem:[#allocation8] sm:$0x1] %v21
  loop: start=0, step=1, limit=4
  $region2: #{two_stream_forward.1} parent=0 // loop_pre_header
    _
  $region3: #{two_stream_forward.1} parent=0 // loop_header
    %s24 = sphi 0, %s28
    %p25 = scmp.ge.s32.totalorder %s24, 4
    %s34 = sphi 0, %s36
    %s37 = sphi 0, %s34
    %s38 = sphi 0, %s37
    %s54 = sphi 0, %s38
    %s58 = sphi 0, %s58
    %s60 = sphi 0, %s58
    %s61 = sphi 0, %s60
    %s75 = sphi 0, %s61
    %s79 = sphi 0, %s79
    %s81 = sphi 0, %s79
    %s82 = sphi 0, %s81
    %s96 = sphi 0, %s82
    %s100 = sphi 0, %s100
    %s102 = sphi 0, %s100
    %s103 = sphi 0, %s102
    %s117 = sphi 0, %s103
    %s121 = sphi 0, %s121
    %s123 = sphi 0, %s121
    %s124 = sphi 0, %s123
    %s138 = sphi 0, %s124
    %s142 = sphi 0, %s142
    %s144 = sphi 0, %s142
    %s145 = sphi 0, %s144
    %s159 = sphi 0, %s145
    %s163 = sphi 0, %s163
    %s165 = sphi 0, %s163
    %s166 = sphi 0, %s165
    %s180 = sphi 0, %s166
    %s184 = sphi 0, %s184
    %s186 = sphi 0, %s184
    %s187 = sphi 0, %s186
    %s201 = sphi 0, %s187
    %s205 = sphi 0, %s205
    %s207 = sphi 0, %s205
    %s208 = sphi 0, %s207
    %s222 = sphi 0, %s208
    %s226 = sphi 0, %s226
    %s228 = sphi 0, %s226
    %s229 = sphi 0, %s228
    %s243 = sphi 0, %s229
    %s247 = sphi 0, %s247
    %s249 = sphi 0, %s247
    %s250 = sphi 0, %s249
    %s264 = sphi 0, %s250
    %s268 = sphi 0, %s268
    %s270 = sphi 0, %s268
    %s271 = sphi 0, %s270
    %s285 = sphi 0, %s271
    %s289 = sphi 0, %s289
    %s291 = sphi 0, %s289
    %s292 = sphi 0, %s291
    %s306 = sphi 0, %s292
    %s310 = sphi 0, %s310
    %s312 = sphi 0, %s310
    %s313 = sphi 0, %s312
    %s327 = sphi 0, %s313
    %s331 = sphi 0, %s331
    %s333 = sphi 0, %s331
    %s334 = sphi 0, %s333
    %s348 = sphi 0, %s334
    %s352 = sphi 0, %s352
    %s354 = sphi 0, %s352
    %s355 = sphi 0, %s354
    %s369 = sphi 0, %s355
    %s375 = sphi 0, %s377
    %s378 = sphi 0, %s375
    %s379 = sphi 0, %s378
    %s395 = sphi 0, %s379
  $region4: #{two_stream_forward.1} parent=0 // loop_header_branch
    %27 = sbr.rel (%p25) target = $region8
  $region5: #{two_stream_forward.1} parent=0 // loop_body
    %s29 = ssub.s32 %s24, 1
    %s30 = ssub.s32 %s24, 2
    %s31 = sadd.s32 %s24, 1
    %s32 = ssub.s32 %s24, %s31
    %p33 = scmp.eq.s32.totalorder %s32, 0
    %s35 = sadd.s32 %s34, 1
    %s36 = scalar_select %p33, %s34, %s35
    %p39 = pneg %p33
    %p40 = scmp.eq.s32.totalorder %s24, 1
    %p41 = por %p39, %p40
    %p42 = scmp.ne.s32.totalorder %s34, %s37
    %p43 = scmp.eq.s32.totalorder %s24, 0
    %p44 = por %p42, %p43
    %p45 = scmp.ne.s32.totalorder %s34, %s37
    %p46 = scmp.eq.s32.totalorder %s29, 1
    %p47 = por %p45, %p46
    %p48 = scmp.ne.s32.totalorder %s37, %s38
    %p49 = scmp.eq.s32.totalorder %s29, 0
    %p50 = por %p48, %p49
    %p51 = scmp.ne.s32.totalorder %s37, %s38
    %p52 = scmp.eq.s32.totalorder %s30, 1
    %p53 = por %p51, %p52
    %p55 = scmp.ne.s32.totalorder %s38, %s54
    %p56 = scmp.eq.s32.totalorder %s30, 0
    %p57 = por %p55, %p56
    %s59 = sadd.s32 %s58, 1
    %p62 = scmp.eq.s32.totalorder %s24, 1
    %p63 = scmp.ne.s32.totalorder %s58, %s60
    %p64 = scmp.eq.s32.totalorder %s24, 0
    %p65 = por %p63, %p64
    %p66 = scmp.ne.s32.totalorder %s58, %s60
    %p67 = scmp.eq.s32.totalorder %s29, 1
    %p68 = por %p66, %p67
    %p69 = scmp.ne.s32.totalorder %s60, %s61
    %p70 = scmp.eq.s32.totalorder %s29, 0
    %p71 = por %p69, %p70
    %p72 = scmp.ne.s32.totalorder %s60, %s61
    %p73 = scmp.eq.s32.totalorder %s30, 1
    %p74 = por %p72, %p73
    %p76 = scmp.ne.s32.totalorder %s61, %s75
    %p77 = scmp.eq.s32.totalorder %s30, 0
    %p78 = por %p76, %p77
    %s80 = sadd.s32 %s79, 1
    %p83 = scmp.eq.s32.totalorder %s24, 1
    %p84 = scmp.ne.s32.totalorder %s79, %s81
    %p85 = scmp.eq.s32.totalorder %s24, 0
    %p86 = por %p84, %p85
    %p87 = scmp.ne.s32.totalorder %s79, %s81
    %p88 = scmp.eq.s32.totalorder %s29, 1
    %p89 = por %p87, %p88
    %p90 = scmp.ne.s32.totalorder %s81, %s82
    %p91 = scmp.eq.s32.totalorder %s29, 0
    %p92 = por %p90, %p91
    %p93 = scmp.ne.s32.totalorder %s81, %s82
    %p94 = scmp.eq.s32.totalorder %s30, 1
    %p95 = por %p93, %p94
    %p97 = scmp.ne.s32.totalorder %s82, %s96
    %p98 = scmp.eq.s32.totalorder %s30, 0
    %p99 = por %p97, %p98
    %s101 = sadd.s32 %s100, 1
    %p104 = scmp.eq.s32.totalorder %s24, 1
    %p105 = scmp.ne.s32.totalorder %s100, %s102
    %p106 = scmp.eq.s32.totalorder %s24, 0
    %p107 = por %p105, %p106
    %p108 = scmp.ne.s32.totalorder %s100, %s102
    %p109 = scmp.eq.s32.totalorder %s29, 1
    %p110 = por %p108, %p109
    %p111 = scmp.ne.s32.totalorder %s102, %s103
    %p112 = scmp.eq.s32.totalorder %s29, 0
    %p113 = por %p111, %p112
    %p114 = scmp.ne.s32.totalorder %s102, %s103
    %p115 = scmp.eq.s32.totalorder %s30, 1
    %p116 = por %p114, %p115
    %p118 = scmp.ne.s32.totalorder %s103, %s117
    %p119 = scmp.eq.s32.totalorder %s30, 0
    %p120 = por %p118, %p119
    %s122 = sadd.s32 %s121, 1
    %p125 = scmp.eq.s32.totalorder %s24, 1
    %p126 = scmp.ne.s32.totalorder %s121, %s123
    %p127 = scmp.eq.s32.totalorder %s24, 0
    %p128 = por %p126, %p127
    %p129 = scmp.ne.s32.totalorder %s121, %s123
    %p130 = scmp.eq.s32.totalorder %s29, 1
    %p131 = por %p129, %p130
    %p132 = scmp.ne.s32.totalorder %s123, %s124
    %p133 = scmp.eq.s32.totalorder %s29, 0
    %p134 = por %p132, %p133
    %p135 = scmp.ne.s32.totalorder %s123, %s124
    %p136 = scmp.eq.s32.totalorder %s30, 1
    %p137 = por %p135, %p136
    %p139 = scmp.ne.s32.totalorder %s124, %s138
    %p140 = scmp.eq.s32.totalorder %s30, 0
    %p141 = por %p139, %p140
    %s143 = sadd.s32 %s142, 1
    %p146 = scmp.eq.s32.totalorder %s24, 1
    %p147 = scmp.ne.s32.totalorder %s142, %s144
    %p148 = scmp.eq.s32.totalorder %s24, 0
    %p149 = por %p147, %p148
    %p150 = scmp.ne.s32.totalorder %s142, %s144
    %p151 = scmp.eq.s32.totalorder %s29, 1
    %p152 = por %p150, %p151
    %p153 = scmp.ne.s32.totalorder %s144, %s145
    %p154 = scmp.eq.s32.totalorder %s29, 0
    %p155 = por %p153, %p154
    %p156 = scmp.ne.s32.totalorder %s144, %s145
    %p157 = scmp.eq.s32.totalorder %s30, 1
    %p158 = por %p156, %p157
    %p160 = scmp.ne.s32.totalorder %s145, %s159
    %p161 = scmp.eq.s32.totalorder %s30, 0
    %p162 = por %p160, %p161
    %s164 = sadd.s32 %s163, 1
    %p167 = scmp.eq.s32.totalorder %s24, 1
    %p168 = scmp.ne.s32.totalorder %s163, %s165
    %p169 = scmp.eq.s32.totalorder %s24, 0
    %p170 = por %p168, %p169
    %p171 = scmp.ne.s32.totalorder %s163, %s165
    %p172 = scmp.eq.s32.totalorder %s29, 1
    %p173 = por %p171, %p172
    %p174 = scmp.ne.s32.totalorder %s165, %s166
    %p175 = scmp.eq.s32.totalorder %s29, 0
    %p176 = por %p174, %p175
    %p177 = scmp.ne.s32.totalorder %s165, %s166
    %p178 = scmp.eq.s32.totalorder %s30, 1
    %p179 = por %p177, %p178
    %p181 = scmp.ne.s32.totalorder %s166, %s180
    %p182 = scmp.eq.s32.totalorder %s30, 0
    %p183 = por %p181, %p182
    %s185 = sadd.s32 %s184, 1
    %p188 = scmp.eq.s32.totalorder %s24, 1
    %p189 = scmp.ne.s32.totalorder %s184, %s186
    %p190 = scmp.eq.s32.totalorder %s24, 0
    %p191 = por %p189, %p190
    %p192 = scmp.ne.s32.totalorder %s184, %s186
    %p193 = scmp.eq.s32.totalorder %s29, 1
    %p194 = por %p192, %p193
    %p195 = scmp.ne.s32.totalorder %s186, %s187
    %p196 = scmp.eq.s32.totalorder %s29, 0
    %p197 = por %p195, %p196
    %p198 = scmp.ne.s32.totalorder %s186, %s187
    %p199 = scmp.eq.s32.totalorder %s30, 1
    %p200 = por %p198, %p199
    %p202 = scmp.ne.s32.totalorder %s187, %s201
    %p203 = scmp.eq.s32.totalorder %s30, 0
    %p204 = por %p202, %p203
    %s206 = sadd.s32 %s205, 1
    %p209 = scmp.eq.s32.totalorder %s24, 1
    %p210 = scmp.ne.s32.totalorder %s205, %s207
    %p211 = scmp.eq.s32.totalorder %s24, 0
    %p212 = por %p210, %p211
    %p213 = scmp.ne.s32.totalorder %s205, %s207
    %p214 = scmp.eq.s32.totalorder %s29, 1
    %p215 = por %p213, %p214
    %p216 = scmp.ne.s32.totalorder %s207, %s208
    %p217 = scmp.eq.s32.totalorder %s29, 0
    %p218 = por %p216, %p217
    %p219 = scmp.ne.s32.totalorder %s207, %s208
    %p220 = scmp.eq.s32.totalorder %s30, 1
    %p221 = por %p219, %p220
    %p223 = scmp.ne.s32.totalorder %s208, %s222
    %p224 = scmp.eq.s32.totalorder %s30, 0
    %p225 = por %p223, %p224
    %s227 = sadd.s32 %s226, 1
    %p230 = scmp.eq.s32.totalorder %s24, 1
    %p231 = scmp.ne.s32.totalorder %s226, %s228
    %p232 = scmp.eq.s32.totalorder %s24, 0
    %p233 = por %p231, %p232
    %p234 = scmp.ne.s32.totalorder %s226, %s228
    %p235 = scmp.eq.s32.totalorder %s29, 1
    %p236 = por %p234, %p235
    %p237 = scmp.ne.s32.totalorder %s228, %s229
    %p238 = scmp.eq.s32.totalorder %s29, 0
    %p239 = por %p237, %p238
    %p240 = scmp.ne.s32.totalorder %s228, %s229
    %p241 = scmp.eq.s32.totalorder %s30, 1
    %p242 = por %p240, %p241
    %p244 = scmp.ne.s32.totalorder %s229, %s243
    %p245 = scmp.eq.s32.totalorder %s30, 0
    %p246 = por %p244, %p245
    %s248 = sadd.s32 %s247, 1
    %p251 = scmp.eq.s32.totalorder %s24, 1
    %p252 = scmp.ne.s32.totalorder %s247, %s249
    %p253 = scmp.eq.s32.totalorder %s24, 0
    %p254 = por %p252, %p253
    %p255 = scmp.ne.s32.totalorder %s247, %s249
    %p256 = scmp.eq.s32.totalorder %s29, 1
    %p257 = por %p255, %p256
    %p258 = scmp.ne.s32.totalorder %s249, %s250
    %p259 = scmp.eq.s32.totalorder %s29, 0
    %p260 = por %p258, %p259
    %p261 = scmp.ne.s32.totalorder %s249, %s250
    %p262 = scmp.eq.s32.totalorder %s30, 1
    %p263 = por %p261, %p262
    %p265 = scmp.ne.s32.totalorder %s250, %s264
    %p266 = scmp.eq.s32.totalorder %s30, 0
    %p267 = por %p265, %p266
    %s269 = sadd.s32 %s268, 1
    %p272 = scmp.eq.s32.totalorder %s24, 1
    %p273 = scmp.ne.s32.totalorder %s268, %s270
    %p274 = scmp.eq.s32.totalorder %s24, 0
    %p275 = por %p273, %p274
    %p276 = scmp.ne.s32.totalorder %s268, %s270
    %p277 = scmp.eq.s32.totalorder %s29, 1
    %p278 = por %p276, %p277
    %p279 = scmp.ne.s32.totalorder %s270, %s271
    %p280 = scmp.eq.s32.totalorder %s29, 0
    %p281 = por %p279, %p280
    %p282 = scmp.ne.s32.totalorder %s270, %s271
    %p283 = scmp.eq.s32.totalorder %s30, 1
    %p284 = por %p282, %p283
    %p286 = scmp.ne.s32.totalorder %s271, %s285
    %p287 = scmp.eq.s32.totalorder %s30, 0
    %p288 = por %p286, %p287
    %s290 = sadd.s32 %s289, 1
    %p293 = scmp.eq.s32.totalorder %s24, 1
    %p294 = scmp.ne.s32.totalorder %s289, %s291
    %p295 = scmp.eq.s32.totalorder %s24, 0
    %p296 = por %p294, %p295
    %p297 = scmp.ne.s32.totalorder %s289, %s291
    %p298 = scmp.eq.s32.totalorder %s29, 1
    %p299 = por %p297, %p298
    %p300 = scmp.ne.s32.totalorder %s291, %s292
    %p301 = scmp.eq.s32.totalorder %s29, 0
    %p302 = por %p300, %p301
    %p303 = scmp.ne.s32.totalorder %s291, %s292
    %p304 = scmp.eq.s32.totalorder %s30, 1
    %p305 = por %p303, %p304
    %p307 = scmp.ne.s32.totalorder %s292, %s306
    %p308 = scmp.eq.s32.totalorder %s30, 0
    %p309 = por %p307, %p308
    %s311 = sadd.s32 %s310, 1
    %p314 = scmp.eq.s32.totalorder %s24, 1
    %p315 = scmp.ne.s32.totalorder %s310, %s312
    %p316 = scmp.eq.s32.totalorder %s24, 0
    %p317 = por %p315, %p316
    %p318 = scmp.ne.s32.totalorder %s310, %s312
    %p319 = scmp.eq.s32.totalorder %s29, 1
    %p320 = por %p318, %p319
    %p321 = scmp.ne.s32.totalorder %s312, %s313
    %p322 = scmp.eq.s32.totalorder %s29, 0
    %p323 = por %p321, %p322
    %p324 = scmp.ne.s32.totalorder %s312, %s313
    %p325 = scmp.eq.s32.totalorder %s30, 1
    %p326 = por %p324, %p325
    %p328 = scmp.ne.s32.totalorder %s313, %s327
    %p329 = scmp.eq.s32.totalorder %s30, 0
    %p330 = por %p328, %p329
    %s332 = sadd.s32 %s331, 1
    %p335 = scmp.eq.s32.totalorder %s24, 1
    %p336 = scmp.ne.s32.totalorder %s331, %s333
    %p337 = scmp.eq.s32.totalorder %s24, 0
    %p338 = por %p336, %p337
    %p339 = scmp.ne.s32.totalorder %s331, %s333
    %p340 = scmp.eq.s32.totalorder %s29, 1
    %p341 = por %p339, %p340
    %p342 = scmp.ne.s32.totalorder %s333, %s334
    %p343 = scmp.eq.s32.totalorder %s29, 0
    %p344 = por %p342, %p343
    %p345 = scmp.ne.s32.totalorder %s333, %s334
    %p346 = scmp.eq.s32.totalorder %s30, 1
    %p347 = por %p345, %p346
    %p349 = scmp.ne.s32.totalorder %s334, %s348
    %p350 = scmp.eq.s32.totalorder %s30, 0
    %p351 = por %p349, %p350
    %s353 = sadd.s32 %s352, 1
    %p356 = scmp.eq.s32.totalorder %s24, 1
    %p357 = scmp.ne.s32.totalorder %s352, %s354
    %p358 = scmp.eq.s32.totalorder %s24, 0
    %p359 = por %p357, %p358
    %p360 = scmp.ne.s32.totalorder %s352, %s354
    %p361 = scmp.eq.s32.totalorder %s29, 1
    %p362 = por %p360, %p361
    %p363 = scmp.ne.s32.totalorder %s354, %s355
    %p364 = scmp.eq.s32.totalorder %s29, 0
    %p365 = por %p363, %p364
    %p366 = scmp.ne.s32.totalorder %s354, %s355
    %p367 = scmp.eq.s32.totalorder %s30, 1
    %p368 = por %p366, %p367
    %p370 = scmp.ne.s32.totalorder %s355, %s369
    %p371 = scmp.eq.s32.totalorder %s30, 0
    %p372 = por %p370, %p371
    %s373 = ssub.s32 %s24, %s31
    %p374 = scmp.eq.s32.totalorder %s373, 0
    %s376 = sadd.s32 %s375, 1
    %s377 = scalar_select %p374, %s375, %s376
    %p380 = pneg %p374
    %p381 = scmp.eq.s32.totalorder %s24, 1
    %p382 = por %p380, %p381
    %p383 = scmp.ne.s32.totalorder %s375, %s378
    %p384 = scmp.eq.s32.totalorder %s24, 0
    %p385 = por %p383, %p384
    %p386 = scmp.ne.s32.totalorder %s375, %s378
    %p387 = scmp.eq.s32.totalorder %s29, 1
    %p388 = por %p386, %p387
    %p389 = scmp.ne.s32.totalorder %s378, %s379
    %p390 = scmp.eq.s32.totalorder %s29, 0
    %p391 = por %p389, %p390
    %p392 = scmp.ne.s32.totalorder %s378, %s379
    %p393 = scmp.eq.s32.totalorder %s30, 1
    %p394 = por %p392, %p393
    %p396 = scmp.ne.s32.totalorder %s379, %s395
    %p397 = scmp.eq.s32.totalorder %s30, 0
    %p398 = por %p396, %p397
    %p399 = scmp.le.s32.totalorder 1, %s24
    %p400 = scmp.lt.s32.totalorder %s24, 3
    %p401 = pnand %p399, %p400
    %p402 = pneg %p401
    // Predicated region
    $region9: #{two_stream_forward.1} parent=5 // pred_check
      _
    $region10: #{two_stream_forward.1} parent=5 // pred_check_branch
      %404 = sbr.rel (%p401) target = $region12
    $region11: #{two_stream_forward.1} parent=5 // pred_region
      %s405 = ssub.s32 %s24, 1
      // Predicated region
      $region13: #{two_stream_forward.1} parent=11 // pred_check
        %p406 = pneg %p71
      $region14: #{two_stream_forward.1} parent=11 // pred_check_branch
        %408 = sbr.rel (%p406) target = $region16
      $region15: #{two_stream_forward.1} parent=11 // pred_region
        _
      $region16: #{two_stream_forward.1} parent=11 // pred_fallthru
        _
      // Predicated region
      $region17: #{two_stream_forward.1} parent=11 // pred_check
        %p409 = pneg %p92
      $region18: #{two_stream_forward.1} parent=11 // pred_check_branch
        %411 = sbr.rel (%p409) target = $region20
      $region19: #{two_stream_forward.1} parent=11 // pred_region
        _
      $region20: #{two_stream_forward.1} parent=11 // pred_fallthru
        _
      // Predicated region
      $region21: #{two_stream_forward.1} parent=11 // pred_check
        %p412 = pneg %p113
      $region22: #{two_stream_forward.1} parent=11 // pred_check_branch
        %414 = sbr.rel (%p412) target = $region24
      $region23: #{two_stream_forward.1} parent=11 // pred_region
        _
      $region24: #{two_stream_forward.1} parent=11 // pred_fallthru
        _
      // Predicated region
      $region25: #{two_stream_forward.1} parent=11 // pred_check
        %p415 = pneg %p134
      $region26: #{two_stream_forward.1} parent=11 // pred_check_branch
        %417 = sbr.rel (%p415) target = $region28
      $region27: #{two_stream_forward.1} parent=11 // pred_region
        _
      $region28: #{two_stream_forward.1} parent=11 // pred_fallthru
        _
      // Predicated region
      $region29: #{two_stream_forward.1} parent=11 // pred_check
        %p418 = pneg %p155
      $region30: #{two_stream_forward.1} parent=11 // pred_check_branch
        %420 = sbr.rel (%p418) target = $region32
      $region31: #{two_stream_forward.1} parent=11 // pred_region
        _
      $region32: #{two_stream_forward.1} parent=11 // pred_fallthru
        _
      // Predicated region
      $region33: #{two_stream_forward.1} parent=11 // pred_check
        %p421 = pneg %p176
      $region34: #{two_stream_forward.1} parent=11 // pred_check_branch
        %423 = sbr.rel (%p421) target = $region36
      $region35: #{two_stream_forward.1} parent=11 // pred_region
        _
      $region36: #{two_stream_forward.1} parent=11 // pred_fallthru
        _
      // Predicated region
      $region37: #{two_stream_forward.1} parent=11 // pred_check
        %p424 = pneg %p197
      $region38: #{two_stream_forward.1} parent=11 // pred_check_branch
        %426 = sbr.rel (%p424) target = $region40
      $region39: #{two_stream_forward.1} parent=11 // pred_region
        _
      $region40: #{two_stream_forward.1} parent=11 // pred_fallthru
        _
      // Predicated region
      $region41: #{two_stream_forward.1} parent=11 // pred_check
        %p427 = pneg %p218
      $region42: #{two_stream_forward.1} parent=11 // pred_check_branch
        %429 = sbr.rel (%p427) target = $region44
      $region43: #{two_stream_forward.1} parent=11 // pred_region
        _
      $region44: #{two_stream_forward.1} parent=11 // pred_fallthru
        _
      // Predicated region
      $region45: #{two_stream_forward.1} parent=11 // pred_check
        %p430 = pneg %p239
      $region46: #{two_stream_forward.1} parent=11 // pred_check_branch
        %432 = sbr.rel (%p430) target = $region48
      $region47: #{two_stream_forward.1} parent=11 // pred_region
        _
      $region48: #{two_stream_forward.1} parent=11 // pred_fallthru
        _
      // Predicated region
      $region49: #{two_stream_forward.1} parent=11 // pred_check
        %p433 = pneg %p260
      $region50: #{two_stream_forward.1} parent=11 // pred_check_branch
        %435 = sbr.rel (%p433) target = $region52
      $region51: #{two_stream_forward.1} parent=11 // pred_region
        _
      $region52: #{two_stream_forward.1} parent=11 // pred_fallthru
        _
      // Predicated region
      $region53: #{two_stream_forward.1} parent=11 // pred_check
        %p436 = pneg %p281
      $region54: #{two_stream_forward.1} parent=11 // pred_check_branch
        %438 = sbr.rel (%p436) target = $region56
      $region55: #{two_stream_forward.1} parent=11 // pred_region
        _
      $region56: #{two_stream_forward.1} parent=11 // pred_fallthru
        _
      // Predicated region
      $region57: #{two_stream_forward.1} parent=11 // pred_check
        %p439 = pneg %p302
      $region58: #{two_stream_forward.1} parent=11 // pred_check_branch
        %441 = sbr.rel (%p439) target = $region60
      $region59: #{two_stream_forward.1} parent=11 // pred_region
        _
      $region60: #{two_stream_forward.1} parent=11 // pred_fallthru
        _
      // Predicated region
      $region61: #{two_stream_forward.1} parent=11 // pred_check
        %p442 = pneg %p323
      $region62: #{two_stream_forward.1} parent=11 // pred_check_branch
        %444 = sbr.rel (%p442) target = $region64
      $region63: #{two_stream_forward.1} parent=11 // pred_region
        _
      $region64: #{two_stream_forward.1} parent=11 // pred_fallthru
        _
      // Predicated region
      $region65: #{two_stream_forward.1} parent=11 // pred_check
        %p445 = pneg %p344
      $region66: #{two_stream_forward.1} parent=11 // pred_check_branch
        %447 = sbr.rel (%p445) target = $region68
      $region67: #{two_stream_forward.1} parent=11 // pred_region
        _
      $region68: #{two_stream_forward.1} parent=11 // pred_fallthru
        _
      // Predicated region
      $region69: #{two_stream_forward.1} parent=11 // pred_check
        %p448 = pneg %p365
      $region70: #{two_stream_forward.1} parent=11 // pred_check_branch
        %450 = sbr.rel (%p448) target = $region72
      $region71: #{two_stream_forward.1} parent=11 // pred_region
        _
      $region72: #{two_stream_forward.1} parent=11 // pred_fallthru
        _
    $region12: #{two_stream_forward.1} parent=5 // pred_fallthru
      _
    %p451 = scmp.lt.s32.totalorder %s24, 2
    // Predicated region
    $region73: #{two_stream_forward.1} parent=5 // pred_check
      %p452 = pneg %p451
    $region74: #{two_stream_forward.1} parent=5 // pred_check_branch
      %454 = sbr.rel (%p452) target = $region76
    $region75: #{two_stream_forward.1} parent=5 // pred_region
      // Predicated region
      $region77: #{two_stream_forward.1} parent=75 // pred_check
        %p455 = pneg %p44
      $region78: #{two_stream_forward.1} parent=75 // pred_check_branch
        %457 = sbr.rel (%p455) target = $region80
      $region79: #{two_stream_forward.1} parent=75 // pred_region
        %s458 = smul.u32 32, %s24
        %p459 = scmp.lt.s32.totalorder %s458, 63
        %s460 = scalar_select %p459, %s458, 63
        %s461 = smul.addr %s460, 8
        %s462 = scalar_lea.vmem %s0, %s461
        %s463 = smul.u32 32, %s24
      $region80: #{two_stream_forward.1} parent=75 // pred_fallthru
        _
    $region76: #{two_stream_forward.1} parent=5 // pred_fallthru
      _
    %p464 = scmp.le.s32.totalorder 1, %s24
    %p465 = scmp.lt.s32.totalorder %s24, 3
    %p466 = pnand %p464, %p465
    %p467 = pneg %p466
    // Predicated region
    $region81: #{two_stream_forward.1} parent=5 // pred_check
      _
    $region82: #{two_stream_forward.1} parent=5 // pred_check_branch
      %469 = sbr.rel (%p466) target = $region84
    $region83: #{two_stream_forward.1} parent=5 // pred_region
      %s470 = ssub.s32 %s24, 1
      %s471 = smul.u32 32, %s29
      %p472 = scmp.lt.s32.totalorder %s471, 63
      %s473 = scalar_select %p472, %s471, 63
      %s474 = smul.addr %s473, 8
      %s475 = scalar_lea.vmem %s0, %s474
      %p476 = pneg %p50
      %p477 = pneg %p47
      %p478 = pneg %p71
      %p479 = pneg %p68
      %p480 = pneg %p92
      %p481 = pneg %p89
      %p482 = pneg %p113
      %p483 = pneg %p110
      %p484 = pneg %p134
      %p485 = pneg %p131
      %p486 = pneg %p155
      %p487 = pneg %p152
      %p488 = pneg %p176
      %p489 = pneg %p173
      %p490 = pneg %p197
      %p491 = pneg %p194
      %p492 = pneg %p218
      %p493 = pneg %p215
      %p494 = pneg %p239
      %p495 = pneg %p236
      %p496 = pneg %p260
      %p497 = pneg %p257
      %p498 = pneg %p281
      %p499 = pneg %p278
      %p500 = pneg %p302
      %p501 = pneg %p299
      %p502 = pneg %p323
      %p503 = pneg %p320
      %p504 = pneg %p344
      %p505 = pneg %p341
      %p506 = pneg %p365
      %p507 = pneg %p362
      %p508 = pneg %p391
      %p509 = pneg %p388
      %s510 = smul.u32 32, %s29
      %p511 = scmp.lt.s32.totalorder %s510, 63
      %s512 = scalar_select %p511, %s510, 63
      %s513 = smul.addr %s512, 8
      %s514 = scalar_lea.vmem %s16, %s513
      %s515 = smul.u32 32, %s29
      %p516 = scmp.lt.s32.totalorder %s515, 63
      %s517 = scalar_select %p516, %s515, 63
      %s518 = smul.addr %s517, 8
      %s519 = scalar_lea.vmem %s0, %s518
      %s520 = smul.u32 32, %s29
      %s521 = smul.u32 32, %s29
      %p522 = scmp.lt.s32.totalorder %s521, 63
      %s523 = scalar_select %p522, %s521, 63
      %s524 = smul.addr %s523, 8
      %s525 = scalar_lea.vmem %s16, %s524
      %s526 = smul.u32 32, %s29
      %vm527 = vcmask 64512
      %528 = vst.msk [vmem:[#allocation2] sm:$0xff] %vm527, 0.0
      %529 = vst.msk [vmem:[#allocation2 + $0x8] sm:$0xff] %vm527, 0.0
      %530 = vst.msk [vmem:[#allocation2 + $0x10] sm:$0xff] %vm527, 0.0
      %531 = vst.msk [vmem:[#allocation2 + $0x118] sm:$0xff] %vm527, 0.0
      %532 = vst.msk [vmem:[#allocation2 + $0x120] sm:$0xff] %vm527, 0.0
      %533 = vst.msk [vmem:[#allocation2 + $0x128] sm:$0xff] %vm527, 0.0
      %vm534 = vcmask 261120
      %535 = vst.msk [vmem:[#allocation3] sm:$0xff] %vm534, 0.0
      %536 = vst.msk [vmem:[#allocation3 + $0x8] sm:$0xff] %vm534, 0.0
      %537 = vst.msk [vmem:[#allocation3 + $0x50] sm:$0xff] %vm534, 0.0
      %538 = vst.msk [vmem:[#allocation3 + $0x58] sm:$0xff] %vm534, 0.0
      %vm539 = vcmask 523264
      %540 = vst.msk [vmem:[#allocation4] sm:$0xff] %vm539, 0.0
      %541 = vst.msk [vmem:[#allocation4 + $0x18] sm:$0xff] %vm539, 0.0
      %542 = vst.msk [vmem:[#allocation5] sm:$0xff] %vm539, 0.0
      %543 = vst.msk [vmem:[#allocation5 + $0x8] sm:$0xff] %vm539, 0.0
      %544 = vst.msk [vmem:[#allocation5 + $0x10] sm:$0xff] %vm539, 0.0
      %545 = vst.msk [vmem:[#allocation5 + $0x118] sm:$0xff] %vm539, 0.0
      %546 = vst.msk [vmem:[#allocation5 + $0x120] sm:$0xff] %vm539, 0.0
      %547 = vst.msk [vmem:[#allocation5 + $0x128] sm:$0xff] %vm539, 0.0
      %v548 = vld [vmem:[%s519] sm:$0xff]
      %v549 = vld [vmem:[%s519 + $0x8] sm:$0xff]
      %v550 = vld [vmem:[%s519 + $0x10] sm:$0xff]
      %v551 = vld [vmem:[%s519 + $0x18] sm:$0xff]
      %v552 = vld [vmem:[%s519 + $0x20] sm:$0xff]
      %v553 = vld [vmem:[%s519 + $0x28] sm:$0xff]
      %v554 = vld [vmem:[%s519 + $0x30] sm:$0xff]
      %v555 = vld [vmem:[%s519 + $0x38] sm:$0xff]
      %v556 = vld [vmem:[%s519 + $0x40] sm:$0xff]
      %v557 = vld [vmem:[%s519 + $0x48] sm:$0xff]
      %v558 = vld [vmem:[%s519 + $0x50] sm:$0xff]
      %v559 = vld [vmem:[%s519 + $0x58] sm:$0xff]
      %v560 = vld [vmem:[%s519 + $0x60] sm:$0xff]
      %v561 = vld [vmem:[%s519 + $0x68] sm:$0xff]
      %v562 = vld [vmem:[%s519 + $0x70] sm:$0xff]
      %v563 = vld [vmem:[%s519 + $0x78] sm:$0xff]
      %v564 = vld [vmem:[%s519 + $0x80] sm:$0xff]
      %v565 = vld [vmem:[%s519 + $0x88] sm:$0xff]
      %v566 = vld [vmem:[%s519 + $0x90] sm:$0xff]
      %v567 = vld [vmem:[%s519 + $0x98] sm:$0xff]
      %v568 = vld [vmem:[%s519 + $0xa0] sm:$0xff]
      %v569 = vld [vmem:[%s519 + $0xa8] sm:$0xff]
      %v570 = vld [vmem:[%s519 + $0xb0] sm:$0xff]
      %v571 = vld [vmem:[%s519 + $0xb8] sm:$0xff]
      %v572 = vld [vmem:[%s519 + $0xc0] sm:$0xff]
      %v573 = vld [vmem:[%s519 + $0xc8] sm:$0xff]
      %v574 = vld [vmem:[%s519 + $0xd0] sm:$0xff]
      %v575 = vld [vmem:[%s519 + $0xd8] sm:$0xff]
      %v576 = vld [vmem:[%s519 + $0xe0] sm:$0xff]
      %v577 = vld [vmem:[%s519 + $0xe8] sm:$0xff]
      %v578 = vld [vmem:[%s519 + $0xf0] sm:$0xff]
      %v579 = vld [vmem:[%s519 + $0xf8] sm:$0xff]
      %580 = vst.msk [vmem:[#allocation2 + $0x18] sm:$0xff] %vm527, %v548
      %581 = vst.msk [vmem:[#allocation2 + $0x20] sm:$0xff] %vm527, %v549
      %582 = vst.msk [vmem:[#allocation2 + $0x28] sm:$0xff] %vm527, %v550
      %583 = vst.msk [vmem:[#allocation2 + $0x30] sm:$0xff] %vm527, %v551
      %584 = vst.msk [vmem:[#allocation2 + $0x38] sm:$0xff] %vm527, %v552
      %585 = vst.msk [vmem:[#allocation2 + $0x40] sm:$0xff] %vm527, %v553
      %586 = vst.msk [vmem:[#allocation2 + $0x48] sm:$0xff] %vm527, %v554
      %587 = vst.msk [vmem:[#allocation2 + $0x50] sm:$0xff] %vm527, %v555
      %588 = vst.msk [vmem:[#allocation2 + $0x58] sm:$0xff] %vm527, %v556
      %589 = vst.msk [vmem:[#allocation2 + $0x60] sm:$0xff] %vm527, %v557
      %590 = vst.msk [vmem:[#allocation2 + $0x68] sm:$0xff] %vm527, %v558
      %591 = vst.msk [vmem:[#allocation2 + $0x70] sm:$0xff] %vm527, %v559
      %592 = vst.msk [vmem:[#allocation2 + $0x78] sm:$0xff] %vm527, %v560
      %593 = vst.msk [vmem:[#allocation2 + $0x80] sm:$0xff] %vm527, %v561
      %594 = vst.msk [vmem:[#allocation2 + $0x88] sm:$0xff] %vm527, %v562
      %595 = vst.msk [vmem:[#allocation2 + $0x90] sm:$0xff] %vm527, %v563
      %596 = vst.msk [vmem:[#allocation2 + $0x98] sm:$0xff] %vm527, %v564
      %597 = vst.msk [vmem:[#allocation2 + $0xa0] sm:$0xff] %vm527, %v565
      %598 = vst.msk [vmem:[#allocation2 + $0xa8] sm:$0xff] %vm527, %v566
      %599 = vst.msk [vmem:[#allocation2 + $0xb0] sm:$0xff] %vm527, %v567
      %600 = vst.msk [vmem:[#allocation2 + $0xb8] sm:$0xff] %vm527, %v568
      %601 = vst.msk [vmem:[#allocation2 + $0xc0] sm:$0xff] %vm527, %v569
      %602 = vst.msk [vmem:[#allocation2 + $0xc8] sm:$0xff] %vm527, %v570
      %603 = vst.msk [vmem:[#allocation2 + $0xd0] sm:$0xff] %vm527, %v571
      %604 = vst.msk [vmem:[#allocation2 + $0xd8] sm:$0xff] %vm527, %v572
      %605 = vst.msk [vmem:[#allocation2 + $0xe0] sm:$0xff] %vm527, %v573
      %606 = vst.msk [vmem:[#allocation2 + $0xe8] sm:$0xff] %vm527, %v574
      %607 = vst.msk [vmem:[#allocation2 + $0xf0] sm:$0xff] %vm527, %v575
      %608 = vst.msk [vmem:[#allocation2 + $0xf8] sm:$0xff] %vm527, %v576
      %609 = vst.msk [vmem:[#allocation2 + $0x100] sm:$0xff] %vm527, %v577
      %610 = vst.msk [vmem:[#allocation2 + $0x108] sm:$0xff] %vm527, %v578
      %611 = vst.msk [vmem:[#allocation2 + $0x110] sm:$0xff] %vm527, %v579
      %v612 = vld [vmem:[#allocation2 + $0x7] sm:$0xff]
      %v613 = vld [vmem:[#allocation2 + $0xf] sm:$0xff]
      %v614 = vld [vmem:[#allocation2 + $0x17] sm:$0xff]
      %v615 = vld [vmem:[#allocation2 + $0x1f] sm:$0xff]
      %v616 = vld [vmem:[#allocation2 + $0x27] sm:$0xff]
      %v617 = vld [vmem:[#allocation2 + $0x2f] sm:$0xff]
      %v618 = vld [vmem:[#allocation2 + $0x37] sm:$0xff]
      %v619 = vld [vmem:[#allocation2 + $0x3f] sm:$0xff]
      %v620 = vld [vmem:[#allocation2 + $0x47] sm:$0xff]
      %v621 = vld [vmem:[#allocation2 + $0x4f] sm:$0xff]
      %v622 = vld [vmem:[#allocation2 + $0x57] sm:$0xff]
      %v623 = vld [vmem:[#allocation2 + $0x5f] sm:$0xff]
      %v624 = vld [vmem:[#allocation2 + $0x67] sm:$0xff]
      %v625 = vld [vmem:[#allocation2 + $0x6f] sm:$0xff]
      %v626 = vld [vmem:[#allocation2 + $0x77] sm:$0xff]
      %v627 = vld [vmem:[#allocation2 + $0x7f] sm:$0xff]
      %v628 = vld [vmem:[#allocation2 + $0x87] sm:$0xff]
      %v629 = vld [vmem:[#allocation2 + $0x8f] sm:$0xff]
      %v630 = vld [vmem:[#allocation2 + $0x97] sm:$0xff]
      %v631 = vld [vmem:[#allocation2 + $0x9f] sm:$0xff]
      %v632 = vld [vmem:[#allocation2 + $0xa7] sm:$0xff]
      %v633 = vld [vmem:[#allocation2 + $0xaf] sm:$0xff]
      %v634 = vld [vmem:[#allocation2 + $0xb7] sm:$0xff]
      %v635 = vld [vmem:[#allocation2 + $0xbf] sm:$0xff]
      %v636 = vld [vmem:[#allocation2 + $0xc7] sm:$0xff]
      %v637 = vld [vmem:[#allocation2 + $0xcf] sm:$0xff]
      %v638 = vld [vmem:[#allocation2 + $0xd7] sm:$0xff]
      %v639 = vld [vmem:[#allocation2 + $0xdf] sm:$0xff]
      %v640 = vld [vmem:[#allocation2 + $0xe7] sm:$0xff]
      %v641 = vld [vmem:[#allocation2 + $0xef] sm:$0xff]
      %v642 = vld [vmem:[#allocation2 + $0xf7] sm:$0xff]
      %v643 = vld [vmem:[#allocation2 + $0xff] sm:$0xff]
      %v644 = vld [vmem:[#allocation2 + $0x8] sm:$0xff]
      %v645 = vld [vmem:[#allocation2 + $0x10] sm:$0xff]
      %v646 = vld [vmem:[#allocation2 + $0x18] sm:$0xff]
      %v647 = vld [vmem:[#allocation2 + $0x20] sm:$0xff]
      %v648 = vld [vmem:[#allocation2 + $0x28] sm:$0xff]
      %v649 = vld [vmem:[#allocation2 + $0x30] sm:$0xff]
      %v650 = vld [vmem:[#allocation2 + $0x38] sm:$0xff]
      %v651 = vld [vmem:[#allocation2 + $0x40] sm:$0xff]
      %v652 = vld [vmem:[#allocation2 + $0x48] sm:$0xff]
      %v653 = vld [vmem:[#allocation2 + $0x50] sm:$0xff]
      %v654 = vld [vmem:[#allocation2 + $0x58] sm:$0xff]
      %v655 = vld [vmem:[#allocation2 + $0x60] sm:$0xff]
      %v656 = vld [vmem:[#allocation2 + $0x68] sm:$0xff]
      %v657 = vld [vmem:[#allocation2 + $0x70] sm:$0xff]
      %v658 = vld [vmem:[#allocation2 + $0x78] sm:$0xff]
      %v659 = vld [vmem:[#allocation2 + $0x80] sm:$0xff]
      %v660 = vld [vmem:[#allocation2 + $0x88] sm:$0xff]
      %v661 = vld [vmem:[#allocation2 + $0x90] sm:$0xff]
      %v662 = vld [vmem:[#allocation2 + $0x98] sm:$0xff]
      %v663 = vld [vmem:[#allocation2 + $0xa0] sm:$0xff]
      %v664 = vld [vmem:[#allocation2 + $0xa8] sm:$0xff]
      %v665 = vld [vmem:[#allocation2 + $0xb0] sm:$0xff]
      %v666 = vld [vmem:[#allocation2 + $0xb8] sm:$0xff]
      %v667 = vld [vmem:[#allocation2 + $0xc0] sm:$0xff]
      %v668 = vld [vmem:[#allocation2 + $0xc8] sm:$0xff]
      %v669 = vld [vmem:[#allocation2 + $0xd0] sm:$0xff]
      %v670 = vld [vmem:[#allocation2 + $0xd8] sm:$0xff]
      %v671 = vld [vmem:[#allocation2 + $0xe0] sm:$0xff]
      %v672 = vld [vmem:[#allocation2 + $0xe8] sm:$0xff]
      %v673 = vld [vmem:[#allocation2 + $0xf0] sm:$0xff]
      %v674 = vld [vmem:[#allocation2 + $0xf8] sm:$0xff]
      %v675 = vld [vmem:[#allocation2 + $0x100] sm:$0xff]
      %v676 = vld [vmem:[#allocation2 + $0x9] sm:$0xff]
      %v677 = vld [vmem:[#allocation2 + $0x11] sm:$0xff]
      %v678 = vld [vmem:[#allocation2 + $0x19] sm:$0xff]
      %v679 = vld [vmem:[#allocation2 + $0x21] sm:$0xff]
      %v680 = vld [vmem:[#allocation2 + $0x29] sm:$0xff]
      %v681 = vld [vmem:[#allocation2 + $0x31] sm:$0xff]
      %v682 = vld [vmem:[#allocation2 + $0x39] sm:$0xff]
      %v683 = vld [vmem:[#allocation2 + $0x41] sm:$0xff]
      %v684 = vld [vmem:[#allocation2 + $0x49] sm:$0xff]
      %v685 = vld [vmem:[#allocation2 + $0x51] sm:$0xff]
      %v686 = vld [vmem:[#allocation2 + $0x59] sm:$0xff]
      %v687 = vld [vmem:[#allocation2 + $0x61] sm:$0xff]
      %v688 = vld [vmem:[#allocation2 + $0x69] sm:$0xff]
      %v689 = vld [vmem:[#allocation2 + $0x71] sm:$0xff]
      %v690 = vld [vmem:[#allocation2 + $0x79] sm:$0xff]
      %v691 = vld [vmem:[#allocation2 + $0x81] sm:$0xff]
      %v692 = vld [vmem:[#allocation2 + $0x89] sm:$0xff]
      %v693 = vld [vmem:[#allocation2 + $0x91] sm:$0xff]
      %v694 = vld [vmem:[#allocation2 + $0x99] sm:$0xff]
      %v695 = vld [vmem:[#allocation2 + $0xa1] sm:$0xff]
      %v696 = vld [vmem:[#allocation2 + $0xa9] sm:$0xff]
      %v697 = vld [vmem:[#allocation2 + $0xb1] sm:$0xff]
      %v698 = vld [vmem:[#allocation2 + $0xb9] sm:$0xff]
      %v699 = vld [vmem:[#allocation2 + $0xc1] sm:$0xff]
      %v700 = vld [vmem:[#allocation2 + $0xc9] sm:$0xff]
      %v701 = vld [vmem:[#allocation2 + $0xd1] sm:$0xff]
      %v702 = vld [vmem:[#allocation2 + $0xd9] sm:$0xff]
      %v703 = vld [vmem:[#allocation2 + $0xe1] sm:$0xff]
      %v704 = vld [vmem:[#allocation2 + $0xe9] sm:$0xff]
      %v705 = vld [vmem:[#allocation2 + $0xf1] sm:$0xff]
      %v706 = vld [vmem:[#allocation2 + $0xf9] sm:$0xff]
      %v707 = vld [vmem:[#allocation2 + $0x101] sm:$0xff]
      %v708 = vld [vmem:[#allocation2 + $0x107] sm:$0xff]
      %v709 = vld [vmem:[#allocation2 + $0x10f] sm:$0xff]
      %v710 = vld [vmem:[#allocation2 + $0x108] sm:$0xff]
      %v711 = vld [vmem:[#allocation2 + $0x110] sm:$0xff]
      %v712 = vld [vmem:[#allocation2 + $0x109] sm:$0xff]
      %v713 = vld [vmem:[#allocation2 + $0x111] sm:$0xff]
      %v714 = vld [vmem:[#allocation2 + $0x117] sm:$0xff]
      %v715 = vld [vmem:[#allocation2 + $0x11f] sm:$0xff]
      %v716 = vld [vmem:[#allocation2 + $0x118] sm:$0xff]
      %v717 = vld [vmem:[#allocation2 + $0x120] sm:$0xff]
      %v718 = vld [vmem:[#allocation2 + $0x119] sm:$0xff]
      %v719 = vld [vmem:[#allocation2 + $0x121] sm:$0xff]
      %752 = vrot.lane.b32.xlu0 %v644, 8
      %v753 = vpop.permute.xlu0 %752
      %754 = vrot.lane.b32.xlu0 %v645, 8
      %v755 = vpop.permute.xlu0 %754
      %756 = vrot.lane.b32.xlu0 %v646, 8
      %v757 = vpop.permute.xlu0 %756
      %758 = vrot.lane.b32.xlu0 %v647, 8
      %v759 = vpop.permute.xlu0 %758
      %760 = vrot.lane.b32.xlu0 %v648, 8
      %v761 = vpop.permute.xlu0 %760
      %762 = vrot.lane.b32.xlu0 %v649, 8
      %v763 = vpop.permute.xlu0 %762
      %764 = vrot.lane.b32.xlu0 %v650, 8
      %v765 = vpop.permute.xlu0 %764
      %766 = vrot.lane.b32.xlu0 %v651, 8
      %v767 = vpop.permute.xlu0 %766
      %768 = vrot.lane.b32.xlu0 %v652, 8
      %v769 = vpop.permute.xlu0 %768
      %770 = vrot.lane.b32.xlu0 %v653, 8
      %v771 = vpop.permute.xlu0 %770
      %772 = vrot.lane.b32.xlu0 %v654, 8
      %v773 = vpop.permute.xlu0 %772
      %774 = vrot.lane.b32.xlu0 %v655, 8
      %v775 = vpop.permute.xlu0 %774
      %776 = vrot.lane.b32.xlu0 %v656, 8
      %v777 = vpop.permute.xlu0 %776
      %778 = vrot.lane.b32.xlu0 %v657, 8
      %v779 = vpop.permute.xlu0 %778
      %780 = vrot.lane.b32.xlu0 %v658, 8
      %v781 = vpop.permute.xlu0 %780
      %782 = vrot.lane.b32.xlu0 %v659, 8
      %v783 = vpop.permute.xlu0 %782
      %784 = vrot.lane.b32.xlu0 %v660, 8
      %v785 = vpop.permute.xlu0 %784
      %786 = vrot.lane.b32.xlu0 %v661, 8
      %v787 = vpop.permute.xlu0 %786
      %788 = vrot.lane.b32.xlu0 %v662, 8
      %v789 = vpop.permute.xlu0 %788
      %790 = vrot.lane.b32.xlu0 %v663, 8
      %v791 = vpop.permute.xlu0 %790
      %792 = vrot.lane.b32.xlu0 %v664, 8
      %v793 = vpop.permute.xlu0 %792
      %794 = vrot.lane.b32.xlu0 %v665, 8
      %v795 = vpop.permute.xlu0 %794
      %796 = vrot.lane.b32.xlu0 %v666, 8
      %v797 = vpop.permute.xlu0 %796
      %798 = vrot.lane.b32.xlu0 %v667, 8
      %v799 = vpop.permute.xlu0 %798
      %800 = vrot.lane.b32.xlu0 %v668, 8
      %v801 = vpop.permute.xlu0 %800
      %802 = vrot.lane.b32.xlu0 %v669, 8
      %v803 = vpop.permute.xlu0 %802
      %804 = vrot.lane.b32.xlu0 %v670, 8
      %v805 = vpop.permute.xlu0 %804
      %806 = vrot.lane.b32.xlu0 %v671, 8
      %v807 = vpop.permute.xlu0 %806
      %808 = vrot.lane.b32.xlu0 %v672, 8
      %v809 = vpop.permute.xlu0 %808
      %810 = vrot.lane.b32.xlu0 %v673, 8
      %v811 = vpop.permute.xlu0 %810
      %812 = vrot.lane.b32.xlu0 %v674, 8
      %v813 = vpop.permute.xlu0 %812
      %814 = vrot.lane.b32.xlu0 %v675, 8
      %v815 = vpop.permute.xlu0 %814
      %880 = vrot.lane.b32.xlu0 %v676, 16
      %v881 = vpop.permute.xlu0 %880
      %882 = vrot.lane.b32.xlu0 %v677, 16
      %v883 = vpop.permute.xlu0 %882
      %884 = vrot.lane.b32.xlu0 %v678, 16
      %v885 = vpop.permute.xlu0 %884
      %886 = vrot.lane.b32.xlu0 %v679, 16
      %v887 = vpop.permute.xlu0 %886
      %888 = vrot.lane.b32.xlu0 %v680, 16
      %v889 = vpop.permute.xlu0 %888
      %890 = vrot.lane.b32.xlu0 %v681, 16
      %v891 = vpop.permute.xlu0 %890
      %892 = vrot.lane.b32.xlu0 %v682, 16
      %v893 = vpop.permute.xlu0 %892
      %894 = vrot.lane.b32.xlu0 %v683, 16
      %v895 = vpop.permute.xlu0 %894
      %896 = vrot.lane.b32.xlu0 %v684, 16
      %v897 = vpop.permute.xlu0 %896
      %898 = vrot.lane.b32.xlu0 %v685, 16
      %v899 = vpop.permute.xlu0 %898
      %900 = vrot.lane.b32.xlu0 %v686, 16
      %v901 = vpop.permute.xlu0 %900
      %902 = vrot.lane.b32.xlu0 %v687, 16
      %v903 = vpop.permute.xlu0 %902
      %904 = vrot.lane.b32.xlu0 %v688, 16
      %v905 = vpop.permute.xlu0 %904
      %906 = vrot.lane.b32.xlu0 %v689, 16
      %v907 = vpop.permute.xlu0 %906
      %908 = vrot.lane.b32.xlu0 %v690, 16
      %v909 = vpop.permute.xlu0 %908
      %910 = vrot.lane.b32.xlu0 %v691, 16
      %v911 = vpop.permute.xlu0 %910
      %912 = vrot.lane.b32.xlu0 %v692, 16
      %v913 = vpop.permute.xlu0 %912
      %914 = vrot.lane.b32.xlu0 %v693, 16
      %v915 = vpop.permute.xlu0 %914
      %916 = vrot.lane.b32.xlu0 %v694, 16
      %v917 = vpop.permute.xlu0 %916
      %918 = vrot.lane.b32.xlu0 %v695, 16
      %v919 = vpop.permute.xlu0 %918
      %920 = vrot.lane.b32.xlu0 %v696, 16
      %v921 = vpop.permute.xlu0 %920
      %922 = vrot.lane.b32.xlu0 %v697, 16
      %v923 = vpop.permute.xlu0 %922
      %924 = vrot.lane.b32.xlu0 %v698, 16
      %v925 = vpop.permute.xlu0 %924
      %926 = vrot.lane.b32.xlu0 %v699, 16
      %v927 = vpop.permute.xlu0 %926
      %928 = vrot.lane.b32.xlu0 %v700, 16
      %v929 = vpop.permute.xlu0 %928
      %930 = vrot.lane.b32.xlu0 %v701, 16
      %v931 = vpop.permute.xlu0 %930
      %932 = vrot.lane.b32.xlu0 %v702, 16
      %v933 = vpop.permute.xlu0 %932
      %934 = vrot.lane.b32.xlu0 %v703, 16
      %v935 = vpop.permute.xlu0 %934
      %936 = vrot.lane.b32.xlu0 %v704, 16
      %v937 = vpop.permute.xlu0 %936
      %938 = vrot.lane.b32.xlu0 %v705, 16
      %v939 = vpop.permute.xlu0 %938
      %940 = vrot.lane.b32.xlu0 %v706, 16
      %v941 = vpop.permute.xlu0 %940
      %942 = vrot.lane.b32.xlu0 %v707, 16
      %v943 = vpop.permute.xlu0 %942
      %1008 = vrot.lane.b32.xlu0 %v614, 24
      %v1009 = vpop.permute.xlu0 %1008
      %1010 = vrot.lane.b32.xlu0 %v615, 24
      %v1011 = vpop.permute.xlu0 %1010
      %1012 = vrot.lane.b32.xlu0 %v616, 24
      %v1013 = vpop.permute.xlu0 %1012
      %1014 = vrot.lane.b32.xlu0 %v617, 24
      %v1015 = vpop.permute.xlu0 %1014
      %1016 = vrot.lane.b32.xlu0 %v618, 24
      %v1017 = vpop.permute.xlu0 %1016
      %1018 = vrot.lane.b32.xlu0 %v619, 24
      %v1019 = vpop.permute.xlu0 %1018
      %1020 = vrot.lane.b32.xlu0 %v620, 24
      %v1021 = vpop.permute.xlu0 %1020
      %1022 = vrot.lane.b32.xlu0 %v621, 24
      %v1023 = vpop.permute.xlu0 %1022
      %1024 = vrot.lane.b32.xlu0 %v622, 24
      %v1025 = vpop.permute.xlu0 %1024
      %1026 = vrot.lane.b32.xlu0 %v623, 24
      %v1027 = vpop.permute.xlu0 %1026
      %1028 = vrot.lane.b32.xlu0 %v624, 24
      %v1029 = vpop.permute.xlu0 %1028
      %1030 = vrot.lane.b32.xlu0 %v625, 24
      %v1031 = vpop.permute.xlu0 %1030
      %1032 = vrot.lane.b32.xlu0 %v626, 24
      %v1033 = vpop.permute.xlu0 %1032
      %1034 = vrot.lane.b32.xlu0 %v627, 24
      %v1035 = vpop.permute.xlu0 %1034
      %1036 = vrot.lane.b32.xlu0 %v628, 24
      %v1037 = vpop.permute.xlu0 %1036
      %1038 = vrot.lane.b32.xlu0 %v629, 24
      %v1039 = vpop.permute.xlu0 %1038
      %1040 = vrot.lane.b32.xlu0 %v630, 24
      %v1041 = vpop.permute.xlu0 %1040
      %1042 = vrot.lane.b32.xlu0 %v631, 24
      %v1043 = vpop.permute.xlu0 %1042
      %1044 = vrot.lane.b32.xlu0 %v632, 24
      %v1045 = vpop.permute.xlu0 %1044
      %1046 = vrot.lane.b32.xlu0 %v633, 24
      %v1047 = vpop.permute.xlu0 %1046
      %1048 = vrot.lane.b32.xlu0 %v634, 24
      %v1049 = vpop.permute.xlu0 %1048
      %1050 = vrot.lane.b32.xlu0 %v635, 24
      %v1051 = vpop.permute.xlu0 %1050
      %1052 = vrot.lane.b32.xlu0 %v636, 24
      %v1053 = vpop.permute.xlu0 %1052
      %1054 = vrot.lane.b32.xlu0 %v637, 24
      %v1055 = vpop.permute.xlu0 %1054
      %1056 = vrot.lane.b32.xlu0 %v638, 24
      %v1057 = vpop.permute.xlu0 %1056
      %1058 = vrot.lane.b32.xlu0 %v639, 24
      %v1059 = vpop.permute.xlu0 %1058
      %1060 = vrot.lane.b32.xlu0 %v640, 24
      %v1061 = vpop.permute.xlu0 %1060
      %1062 = vrot.lane.b32.xlu0 %v641, 24
      %v1063 = vpop.permute.xlu0 %1062
      %1064 = vrot.lane.b32.xlu0 %v642, 24
      %v1065 = vpop.permute.xlu0 %1064
      %1066 = vrot.lane.b32.xlu0 %v643, 24
      %v1067 = vpop.permute.xlu0 %1066
      %1068 = vrot.lane.b32.xlu0 %v708, 24
      %v1069 = vpop.permute.xlu0 %1068
      %1070 = vrot.lane.b32.xlu0 %v709, 24
      %v1071 = vpop.permute.xlu0 %1070
      %1106 = vrot.lane.b32.xlu0 %v646, 32
      %v1107 = vpop.permute.xlu0 %1106
      %1108 = vrot.lane.b32.xlu0 %v647, 32
      %v1109 = vpop.permute.xlu0 %1108
      %1110 = vrot.lane.b32.xlu0 %v648, 32
      %v1111 = vpop.permute.xlu0 %1110
      %1112 = vrot.lane.b32.xlu0 %v649, 32
      %v1113 = vpop.permute.xlu0 %1112
      %1114 = vrot.lane.b32.xlu0 %v650, 32
      %v1115 = vpop.permute.xlu0 %1114
      %1116 = vrot.lane.b32.xlu0 %v651, 32
      %v1117 = vpop.permute.xlu0 %1116
      %1118 = vrot.lane.b32.xlu0 %v652, 32
      %v1119 = vpop.permute.xlu0 %1118
      %1120 = vrot.lane.b32.xlu0 %v653, 32
      %v1121 = vpop.permute.xlu0 %1120
      %1122 = vrot.lane.b32.xlu0 %v654, 32
      %v1123 = vpop.permute.xlu0 %1122
      %1124 = vrot.lane.b32.xlu0 %v655, 32
      %v1125 = vpop.permute.xlu0 %1124
      %1126 = vrot.lane.b32.xlu0 %v656, 32
      %v1127 = vpop.permute.xlu0 %1126
      %1128 = vrot.lane.b32.xlu0 %v657, 32
      %v1129 = vpop.permute.xlu0 %1128
      %1130 = vrot.lane.b32.xlu0 %v658, 32
      %v1131 = vpop.permute.xlu0 %1130
      %1132 = vrot.lane.b32.xlu0 %v659, 32
      %v1133 = vpop.permute.xlu0 %1132
      %1134 = vrot.lane.b32.xlu0 %v660, 32
      %v1135 = vpop.permute.xlu0 %1134
      %1136 = vrot.lane.b32.xlu0 %v661, 32
      %v1137 = vpop.permute.xlu0 %1136
      %1138 = vrot.lane.b32.xlu0 %v662, 32
      %v1139 = vpop.permute.xlu0 %1138
      %1140 = vrot.lane.b32.xlu0 %v663, 32
      %v1141 = vpop.permute.xlu0 %1140
      %1142 = vrot.lane.b32.xlu0 %v664, 32
      %v1143 = vpop.permute.xlu0 %1142
      %1144 = vrot.lane.b32.xlu0 %v665, 32
      %v1145 = vpop.permute.xlu0 %1144
      %1146 = vrot.lane.b32.xlu0 %v666, 32
      %v1147 = vpop.permute.xlu0 %1146
      %1148 = vrot.lane.b32.xlu0 %v667, 32
      %v1149 = vpop.permute.xlu0 %1148
      %1150 = vrot.lane.b32.xlu0 %v668, 32
      %v1151 = vpop.permute.xlu0 %1150
      %1152 = vrot.lane.b32.xlu0 %v669, 32
      %v1153 = vpop.permute.xlu0 %1152
      %1154 = vrot.lane.b32.xlu0 %v670, 32
      %v1155 = vpop.permute.xlu0 %1154
      %1156 = vrot.lane.b32.xlu0 %v671, 32
      %v1157 = vpop.permute.xlu0 %1156
      %1158 = vrot.lane.b32.xlu0 %v672, 32
      %v1159 = vpop.permute.xlu0 %1158
      %1160 = vrot.lane.b32.xlu0 %v673, 32
      %v1161 = vpop.permute.xlu0 %1160
      %1162 = vrot.lane.b32.xlu0 %v674, 32
      %v1163 = vpop.permute.xlu0 %1162
      %1164 = vrot.lane.b32.xlu0 %v675, 32
      %v1165 = vpop.permute.xlu0 %1164
      %1166 = vrot.lane.b32.xlu0 %v710, 32
      %v1167 = vpop.permute.xlu0 %1166
      %1168 = vrot.lane.b32.xlu0 %v711, 32
      %v1169 = vpop.permute.xlu0 %1168
      %1204 = vrot.lane.b32.xlu0 %v678, 40
      %v1205 = vpop.permute.xlu0 %1204
      %1206 = vrot.lane.b32.xlu0 %v679, 40
      %v1207 = vpop.permute.xlu0 %1206
      %1208 = vrot.lane.b32.xlu0 %v680, 40
      %v1209 = vpop.permute.xlu0 %1208
      %1210 = vrot.lane.b32.xlu0 %v681, 40
      %v1211 = vpop.permute.xlu0 %1210
      %1212 = vrot.lane.b32.xlu0 %v682, 40
      %v1213 = vpop.permute.xlu0 %1212
      %1214 = vrot.lane.b32.xlu0 %v683, 40
      %v1215 = vpop.permute.xlu0 %1214
      %1216 = vrot.lane.b32.xlu0 %v684, 40
      %v1217 = vpop.permute.xlu0 %1216
      %1218 = vrot.lane.b32.xlu0 %v685, 40
      %v1219 = vpop.permute.xlu0 %1218
      %1220 = vrot.lane.b32.xlu0 %v686, 40
      %v1221 = vpop.permute.xlu0 %1220
      %1222 = vrot.lane.b32.xlu0 %v687, 40
      %v1223 = vpop.permute.xlu0 %1222
      %1224 = vrot.lane.b32.xlu0 %v688, 40
      %v1225 = vpop.permute.xlu0 %1224
      %1226 = vrot.lane.b32.xlu0 %v689, 40
      %v1227 = vpop.permute.xlu0 %1226
      %1228 = vrot.lane.b32.xlu0 %v690, 40
      %v1229 = vpop.permute.xlu0 %1228
      %1230 = vrot.lane.b32.xlu0 %v691, 40
      %v1231 = vpop.permute.xlu0 %1230
      %1232 = vrot.lane.b32.xlu0 %v692, 40
      %v1233 = vpop.permute.xlu0 %1232
      %1234 = vrot.lane.b32.xlu0 %v693, 40
      %v1235 = vpop.permute.xlu0 %1234
      %1236 = vrot.lane.b32.xlu0 %v694, 40
      %v1237 = vpop.permute.xlu0 %1236
      %1238 = vrot.lane.b32.xlu0 %v695, 40
      %v1239 = vpop.permute.xlu0 %1238
      %1240 = vrot.lane.b32.xlu0 %v696, 40
      %v1241 = vpop.permute.xlu0 %1240
      %1242 = vrot.lane.b32.xlu0 %v697, 40
      %v1243 = vpop.permute.xlu0 %1242
      %1244 = vrot.lane.b32.xlu0 %v698, 40
      %v1245 = vpop.permute.xlu0 %1244
      %1246 = vrot.lane.b32.xlu0 %v699, 40
      %v1247 = vpop.permute.xlu0 %1246
      %1248 = vrot.lane.b32.xlu0 %v700, 40
      %v1249 = vpop.permute.xlu0 %1248
      %1250 = vrot.lane.b32.xlu0 %v701, 40
      %v1251 = vpop.permute.xlu0 %1250
      %1252 = vrot.lane.b32.xlu0 %v702, 40
      %v1253 = vpop.permute.xlu0 %1252
      %1254 = vrot.lane.b32.xlu0 %v703, 40
      %v1255 = vpop.permute.xlu0 %1254
      %1256 = vrot.lane.b32.xlu0 %v704, 40
      %v1257 = vpop.permute.xlu0 %1256
      %1258 = vrot.lane.b32.xlu0 %v705, 40
      %v1259 = vpop.permute.xlu0 %1258
      %1260 = vrot.lane.b32.xlu0 %v706, 40
      %v1261 = vpop.permute.xlu0 %1260
      %1262 = vrot.lane.b32.xlu0 %v707, 40
      %v1263 = vpop.permute.xlu0 %1262
      %1264 = vrot.lane.b32.xlu0 %v712, 40
      %v1265 = vpop.permute.xlu0 %1264
      %1266 = vrot.lane.b32.xlu0 %v713, 40
      %v1267 = vpop.permute.xlu0 %1266
      %1302 = vrot.lane.b32.xlu0 %v616, 48
      %v1303 = vpop.permute.xlu0 %1302
      %1304 = vrot.lane.b32.xlu0 %v617, 48
      %v1305 = vpop.permute.xlu0 %1304
      %1306 = vrot.lane.b32.xlu0 %v618, 48
      %v1307 = vpop.permute.xlu0 %1306
      %1308 = vrot.lane.b32.xlu0 %v619, 48
      %v1309 = vpop.permute.xlu0 %1308
      %1310 = vrot.lane.b32.xlu0 %v620, 48
      %v1311 = vpop.permute.xlu0 %1310
      %1312 = vrot.lane.b32.xlu0 %v621, 48
      %v1313 = vpop.permute.xlu0 %1312
      %1314 = vrot.lane.b32.xlu0 %v622, 48
      %v1315 = vpop.permute.xlu0 %1314
      %1316 = vrot.lane.b32.xlu0 %v623, 48
      %v1317 = vpop.permute.xlu0 %1316
      %1318 = vrot.lane.b32.xlu0 %v624, 48
      %v1319 = vpop.permute.xlu0 %1318
      %1320 = vrot.lane.b32.xlu0 %v625, 48
      %v1321 = vpop.permute.xlu0 %1320
      %1322 = vrot.lane.b32.xlu0 %v626, 48
      %v1323 = vpop.permute.xlu0 %1322
      %1324 = vrot.lane.b32.xlu0 %v627, 48
      %v1325 = vpop.permute.xlu0 %1324
      %1326 = vrot.lane.b32.xlu0 %v628, 48
      %v1327 = vpop.permute.xlu0 %1326
      %1328 = vrot.lane.b32.xlu0 %v629, 48
      %v1329 = vpop.permute.xlu0 %1328
      %1330 = vrot.lane.b32.xlu0 %v630, 48
      %v1331 = vpop.permute.xlu0 %1330
      %1332 = vrot.lane.b32.xlu0 %v631, 48
      %v1333 = vpop.permute.xlu0 %1332
      %1334 = vrot.lane.b32.xlu0 %v632, 48
      %v1335 = vpop.permute.xlu0 %1334
      %1336 = vrot.lane.b32.xlu0 %v633, 48
      %v1337 = vpop.permute.xlu0 %1336
      %1338 = vrot.lane.b32.xlu0 %v634, 48
      %v1339 = vpop.permute.xlu0 %1338
      %1340 = vrot.lane.b32.xlu0 %v635, 48
      %v1341 = vpop.permute.xlu0 %1340
      %1342 = vrot.lane.b32.xlu0 %v636, 48
      %v1343 = vpop.permute.xlu0 %1342
      %1344 = vrot.lane.b32.xlu0 %v637, 48
      %v1345 = vpop.permute.xlu0 %1344
      %1346 = vrot.lane.b32.xlu0 %v638, 48
      %v1347 = vpop.permute.xlu0 %1346
      %1348 = vrot.lane.b32.xlu0 %v639, 48
      %v1349 = vpop.permute.xlu0 %1348
      %1350 = vrot.lane.b32.xlu0 %v640, 48
      %v1351 = vpop.permute.xlu0 %1350
      %1352 = vrot.lane.b32.xlu0 %v641, 48
      %v1353 = vpop.permute.xlu0 %1352
      %1354 = vrot.lane.b32.xlu0 %v642, 48
      %v1355 = vpop.permute.xlu0 %1354
      %1356 = vrot.lane.b32.xlu0 %v643, 48
      %v1357 = vpop.permute.xlu0 %1356
      %1358 = vrot.lane.b32.xlu0 %v708, 48
      %v1359 = vpop.permute.xlu0 %1358
      %1360 = vrot.lane.b32.xlu0 %v709, 48
      %v1361 = vpop.permute.xlu0 %1360
      %1362 = vrot.lane.b32.xlu0 %v714, 48
      %v1363 = vpop.permute.xlu0 %1362
      %1364 = vrot.lane.b32.xlu0 %v715, 48
      %v1365 = vpop.permute.xlu0 %1364
      %1400 = vrot.lane.b32.xlu0 %v648, 56
      %v1401 = vpop.permute.xlu0 %1400
      %1402 = vrot.lane.b32.xlu0 %v649, 56
      %v1403 = vpop.permute.xlu0 %1402
      %1404 = vrot.lane.b32.xlu0 %v650, 56
      %v1405 = vpop.permute.xlu0 %1404
      %1406 = vrot.lane.b32.xlu0 %v651, 56
      %v1407 = vpop.permute.xlu0 %1406
      %1408 = vrot.lane.b32.xlu0 %v652, 56
      %v1409 = vpop.permute.xlu0 %1408
      %1410 = vrot.lane.b32.xlu0 %v653, 56
      %v1411 = vpop.permute.xlu0 %1410
      %1412 = vrot.lane.b32.xlu0 %v654, 56
      %v1413 = vpop.permute.xlu0 %1412
      %1414 = vrot.lane.b32.xlu0 %v655, 56
      %v1415 = vpop.permute.xlu0 %1414
      %1416 = vrot.lane.b32.xlu0 %v656, 56
      %v1417 = vpop.permute.xlu0 %1416
      %1418 = vrot.lane.b32.xlu0 %v657, 56
      %v1419 = vpop.permute.xlu0 %1418
      %1420 = vrot.lane.b32.xlu0 %v658, 56
      %v1421 = vpop.permute.xlu0 %1420
      %1422 = vrot.lane.b32.xlu0 %v659, 56
      %v1423 = vpop.permute.xlu0 %1422
      %1424 = vrot.lane.b32.xlu0 %v660, 56
      %v1425 = vpop.permute.xlu0 %1424
      %1426 = vrot.lane.b32.xlu0 %v661, 56
      %v1427 = vpop.permute.xlu0 %1426
      %1428 = vrot.lane.b32.xlu0 %v662, 56
      %v1429 = vpop.permute.xlu0 %1428
      %1430 = vrot.lane.b32.xlu0 %v663, 56
      %v1431 = vpop.permute.xlu0 %1430
      %1432 = vrot.lane.b32.xlu0 %v664, 56
      %v1433 = vpop.permute.xlu0 %1432
      %1434 = vrot.lane.b32.xlu0 %v665, 56
      %v1435 = vpop.permute.xlu0 %1434
      %1436 = vrot.lane.b32.xlu0 %v666, 56
      %v1437 = vpop.permute.xlu0 %1436
      %1438 = vrot.lane.b32.xlu0 %v667, 56
      %v1439 = vpop.permute.xlu0 %1438
      %1440 = vrot.lane.b32.xlu0 %v668, 56
      %v1441 = vpop.permute.xlu0 %1440
      %1442 = vrot.lane.b32.xlu0 %v669, 56
      %v1443 = vpop.permute.xlu0 %1442
      %1444 = vrot.lane.b32.xlu0 %v670, 56
      %v1445 = vpop.permute.xlu0 %1444
      %1446 = vrot.lane.b32.xlu0 %v671, 56
      %v1447 = vpop.permute.xlu0 %1446
      %1448 = vrot.lane.b32.xlu0 %v672, 56
      %v1449 = vpop.permute.xlu0 %1448
      %1450 = vrot.lane.b32.xlu0 %v673, 56
      %v1451 = vpop.permute.xlu0 %1450
      %1452 = vrot.lane.b32.xlu0 %v674, 56
      %v1453 = vpop.permute.xlu0 %1452
      %1454 = vrot.lane.b32.xlu0 %v675, 56
      %v1455 = vpop.permute.xlu0 %1454
      %1456 = vrot.lane.b32.xlu0 %v710, 56
      %v1457 = vpop.permute.xlu0 %1456
      %1458 = vrot.lane.b32.xlu0 %v711, 56
      %v1459 = vpop.permute.xlu0 %1458
      %1460 = vrot.lane.b32.xlu0 %v716, 56
      %v1461 = vpop.permute.xlu0 %1460
      %1462 = vrot.lane.b32.xlu0 %v717, 56
      %v1463 = vpop.permute.xlu0 %1462
      %1498 = vrot.lane.b32.xlu0 %v680, 64
      %v1499 = vpop.permute.xlu0 %1498
      %1500 = vrot.lane.b32.xlu0 %v681, 64
      %v1501 = vpop.permute.xlu0 %1500
      %1502 = vrot.lane.b32.xlu0 %v682, 64
      %v1503 = vpop.permute.xlu0 %1502
      %1504 = vrot.lane.b32.xlu0 %v683, 64
      %v1505 = vpop.permute.xlu0 %1504
      %1506 = vrot.lane.b32.xlu0 %v684, 64
      %v1507 = vpop.permute.xlu0 %1506
      %1508 = vrot.lane.b32.xlu0 %v685, 64
      %v1509 = vpop.permute.xlu0 %1508
      %1510 = vrot.lane.b32.xlu0 %v686, 64
      %v1511 = vpop.permute.xlu0 %1510
      %1512 = vrot.lane.b32.xlu0 %v687, 64
      %v1513 = vpop.permute.xlu0 %1512
      %1514 = vrot.lane.b32.xlu0 %v688, 64
      %v1515 = vpop.permute.xlu0 %1514
      %1516 = vrot.lane.b32.xlu0 %v689, 64
      %v1517 = vpop.permute.xlu0 %1516
      %1518 = vrot.lane.b32.xlu0 %v690, 64
      %v1519 = vpop.permute.xlu0 %1518
      %1520 = vrot.lane.b32.xlu0 %v691, 64
      %v1521 = vpop.permute.xlu0 %1520
      %1522 = vrot.lane.b32.xlu0 %v692, 64
      %v1523 = vpop.permute.xlu0 %1522
      %1524 = vrot.lane.b32.xlu0 %v693, 64
      %v1525 = vpop.permute.xlu0 %1524
      %1526 = vrot.lane.b32.xlu0 %v694, 64
      %v1527 = vpop.permute.xlu0 %1526
      %1528 = vrot.lane.b32.xlu0 %v695, 64
      %v1529 = vpop.permute.xlu0 %1528
      %1530 = vrot.lane.b32.xlu0 %v696, 64
      %v1531 = vpop.permute.xlu0 %1530
      %1532 = vrot.lane.b32.xlu0 %v697, 64
      %v1533 = vpop.permute.xlu0 %1532
      %1534 = vrot.lane.b32.xlu0 %v698, 64
      %v1535 = vpop.permute.xlu0 %1534
      %1536 = vrot.lane.b32.xlu0 %v699, 64
      %v1537 = vpop.permute.xlu0 %1536
      %1538 = vrot.lane.b32.xlu0 %v700, 64
      %v1539 = vpop.permute.xlu0 %1538
      %1540 = vrot.lane.b32.xlu0 %v701, 64
      %v1541 = vpop.permute.xlu0 %1540
      %1542 = vrot.lane.b32.xlu0 %v702, 64
      %v1543 = vpop.permute.xlu0 %1542
      %1544 = vrot.lane.b32.xlu0 %v703, 64
      %v1545 = vpop.permute.xlu0 %1544
      %1546 = vrot.lane.b32.xlu0 %v704, 64
      %v1547 = vpop.permute.xlu0 %1546
      %1548 = vrot.lane.b32.xlu0 %v705, 64
      %v1549 = vpop.permute.xlu0 %1548
      %1550 = vrot.lane.b32.xlu0 %v706, 64
      %v1551 = vpop.permute.xlu0 %1550
      %1552 = vrot.lane.b32.xlu0 %v707, 64
      %v1553 = vpop.permute.xlu0 %1552
      %1554 = vrot.lane.b32.xlu0 %v712, 64
      %v1555 = vpop.permute.xlu0 %1554
      %1556 = vrot.lane.b32.xlu0 %v713, 64
      %v1557 = vpop.permute.xlu0 %1556
      %1558 = vrot.lane.b32.xlu0 %v718, 64
      %v1559 = vpop.permute.xlu0 %1558
      %1560 = vrot.lane.b32.xlu0 %v719, 64
      %v1561 = vpop.permute.xlu0 %1560
      %v1594 = vsel %vm527, %v612, %v753
      %v1595 = vsel %vm527, %v613, %v755
      %v1596 = vsel %vm527, %v614, %v757
      %v1597 = vsel %vm527, %v615, %v759
      %v1598 = vsel %vm527, %v616, %v761
      %v1599 = vsel %vm527, %v617, %v763
      %v1600 = vsel %vm527, %v618, %v765
      %v1601 = vsel %vm527, %v619, %v767
      %v1602 = vsel %vm527, %v620, %v769
      %v1603 = vsel %vm527, %v621, %v771
      %v1604 = vsel %vm527, %v622, %v773
      %v1605 = vsel %vm527, %v623, %v775
      %v1606 = vsel %vm527, %v624, %v777
      %v1607 = vsel %vm527, %v625, %v779
      %v1608 = vsel %vm527, %v626, %v781
      %v1609 = vsel %vm527, %v627, %v783
      %v1610 = vsel %vm527, %v628, %v785
      %v1611 = vsel %vm527, %v629, %v787
      %v1612 = vsel %vm527, %v630, %v789
      %v1613 = vsel %vm527, %v631, %v791
      %v1614 = vsel %vm527, %v632, %v793
      %v1615 = vsel %vm527, %v633, %v795
      %v1616 = vsel %vm527, %v634, %v797
      %v1617 = vsel %vm527, %v635, %v799
      %v1618 = vsel %vm527, %v636, %v801
      %v1619 = vsel %vm527, %v637, %v803
      %v1620 = vsel %vm527, %v638, %v805
      %v1621 = vsel %vm527, %v639, %v807
      %v1622 = vsel %vm527, %v640, %v809
      %v1623 = vsel %vm527, %v641, %v811
      %v1624 = vsel %vm527, %v642, %v813
      %v1625 = vsel %vm527, %v643, %v815
      %vm1626 = vcmask 130048
      %v1627 = vsel %vm1626, %v1594, %v881
      %v1628 = vsel %vm1626, %v1595, %v883
      %v1629 = vsel %vm1626, %v1596, %v885
      %v1630 = vsel %vm1626, %v1597, %v887
      %v1631 = vsel %vm1626, %v1598, %v889
      %v1632 = vsel %vm1626, %v1599, %v891
      %v1633 = vsel %vm1626, %v1600, %v893
      %v1634 = vsel %vm1626, %v1601, %v895
      %v1635 = vsel %vm1626, %v1602, %v897
      %v1636 = vsel %vm1626, %v1603, %v899
      %v1637 = vsel %vm1626, %v1604, %v901
      %v1638 = vsel %vm1626, %v1605, %v903
      %v1639 = vsel %vm1626, %v1606, %v905
      %v1640 = vsel %vm1626, %v1607, %v907
      %v1641 = vsel %vm1626, %v1608, %v909
      %v1642 = vsel %vm1626, %v1609, %v911
      %v1643 = vsel %vm1626, %v1610, %v913
      %v1644 = vsel %vm1626, %v1611, %v915
      %v1645 = vsel %vm1626, %v1612, %v917
      %v1646 = vsel %vm1626, %v1613, %v919
      %v1647 = vsel %vm1626, %v1614, %v921
      %v1648 = vsel %vm1626, %v1615, %v923
      %v1649 = vsel %vm1626, %v1616, %v925
      %v1650 = vsel %vm1626, %v1617, %v927
      %v1651 = vsel %vm1626, %v1618, %v929
      %v1652 = vsel %vm1626, %v1619, %v931
      %v1653 = vsel %vm1626, %v1620, %v933
      %v1654 = vsel %vm1626, %v1621, %v935
      %v1655 = vsel %vm1626, %v1622, %v937
      %v1656 = vsel %vm1626, %v1623, %v939
      %v1657 = vsel %vm1626, %v1624, %v941
      %v1658 = vsel %vm1626, %v1625, %v943
      %vm1659 = vcmask 195584
      %v1660 = vsel %vm1659, %v1627, %v1009
      %v1661 = vsel %vm1659, %v1628, %v1011
      %v1662 = vsel %vm1659, %v1629, %v1013
      %v1663 = vsel %vm1659, %v1630, %v1015
      %v1664 = vsel %vm1659, %v1631, %v1017
      %v1665 = vsel %vm1659, %v1632, %v1019
      %v1666 = vsel %vm1659, %v1633, %v1021
      %v1667 = vsel %vm1659, %v1634, %v1023
      %v1668 = vsel %vm1659, %v1635, %v1025
      %v1669 = vsel %vm1659, %v1636, %v1027
      %v1670 = vsel %vm1659, %v1637, %v1029
      %v1671 = vsel %vm1659, %v1638, %v1031
      %v1672 = vsel %vm1659, %v1639, %v1033
      %v1673 = vsel %vm1659, %v1640, %v1035
      %v1674 = vsel %vm1659, %v1641, %v1037
      %v1675 = vsel %vm1659, %v1642, %v1039
      %v1676 = vsel %vm1659, %v1643, %v1041
      %v1677 = vsel %vm1659, %v1644, %v1043
      %v1678 = vsel %vm1659, %v1645, %v1045
      %v1679 = vsel %vm1659, %v1646, %v1047
      %v1680 = vsel %vm1659, %v1647, %v1049
      %v1681 = vsel %vm1659, %v1648, %v1051
      %v1682 = vsel %vm1659, %v1649, %v1053
      %v1683 = vsel %vm1659, %v1650, %v1055
      %v1684 = vsel %vm1659, %v1651, %v1057
      %v1685 = vsel %vm1659, %v1652, %v1059
      %v1686 = vsel %vm1659, %v1653, %v1061
      %v1687 = vsel %vm1659, %v1654, %v1063
      %v1688 = vsel %vm1659, %v1655, %v1065
      %v1689 = vsel %vm1659, %v1656, %v1067
      %v1690 = vsel %vm1659, %v1657, %v1069
      %v1691 = vsel %vm1659, %v1658, %v1071
      %v1692 = vsel %vm534, %v1660, %v1107
      %v1693 = vsel %vm534, %v1661, %v1109
      %v1694 = vsel %vm534, %v1662, %v1111
      %v1695 = vsel %vm534, %v1663, %v1113
      %v1696 = vsel %vm534, %v1664, %v1115
      %v1697 = vsel %vm534, %v1665, %v1117
      %v1698 = vsel %vm534, %v1666, %v1119
      %v1699 = vsel %vm534, %v1667, %v1121
      %v1700 = vsel %vm534, %v1668, %v1123
      %v1701 = vsel %vm534, %v1669, %v1125
      %v1702 = vsel %vm534, %v1670, %v1127
      %v1703 = vsel %vm534, %v1671, %v1129
      %v1704 = vsel %vm534, %v1672, %v1131
      %v1705 = vsel %vm534, %v1673, %v1133
      %v1706 = vsel %vm534, %v1674, %v1135
      %v1707 = vsel %vm534, %v1675, %v1137
      %v1708 = vsel %vm534, %v1676, %v1139
      %v1709 = vsel %vm534, %v1677, %v1141
      %v1710 = vsel %vm534, %v1678, %v1143
      %v1711 = vsel %vm534, %v1679, %v1145
      %v1712 = vsel %vm534, %v1680, %v1147
      %v1713 = vsel %vm534, %v1681, %v1149
      %v1714 = vsel %vm534, %v1682, %v1151
      %v1715 = vsel %vm534, %v1683, %v1153
      %v1716 = vsel %vm534, %v1684, %v1155
      %v1717 = vsel %vm534, %v1685, %v1157
      %v1718 = vsel %vm534, %v1686, %v1159
      %v1719 = vsel %vm534, %v1687, %v1161
      %v1720 = vsel %vm534, %v1688, %v1163
      %v1721 = vsel %vm534, %v1689, %v1165
      %v1722 = vsel %vm534, %v1690, %v1167
      %v1723 = vsel %vm534, %v1691, %v1169
      %vm1724 = vcmask 326656
      %v1725 = vsel %vm1724, %v1692, %v1205
      %v1726 = vsel %vm1724, %v1693, %v1207
      %v1727 = vsel %vm1724, %v1694, %v1209
      %v1728 = vsel %vm1724, %v1695, %v1211
      %v1729 = vsel %vm1724, %v1696, %v1213
      %v1730 = vsel %vm1724, %v1697, %v1215
      %v1731 = vsel %vm1724, %v1698, %v1217
      %v1732 = vsel %vm1724, %v1699, %v1219
      %v1733 = vsel %vm1724, %v1700, %v1221
      %v1734 = vsel %vm1724, %v1701, %v1223
      %v1735 = vsel %vm1724, %v1702, %v1225
      %v1736 = vsel %vm1724, %v1703, %v1227
      %v1737 = vsel %vm1724, %v1704, %v1229
      %v1738 = vsel %vm1724, %v1705, %v1231
      %v1739 = vsel %vm1724, %v1706, %v1233
      %v1740 = vsel %vm1724, %v1707, %v1235
      %v1741 = vsel %vm1724, %v1708, %v1237
      %v1742 = vsel %vm1724, %v1709, %v1239
      %v1743 = vsel %vm1724, %v1710, %v1241
      %v1744 = vsel %vm1724, %v1711, %v1243
      %v1745 = vsel %vm1724, %v1712, %v1245
      %v1746 = vsel %vm1724, %v1713, %v1247
      %v1747 = vsel %vm1724, %v1714, %v1249
      %v1748 = vsel %vm1724, %v1715, %v1251
      %v1749 = vsel %vm1724, %v1716, %v1253
      %v1750 = vsel %vm1724, %v1717, %v1255
      %v1751 = vsel %vm1724, %v1718, %v1257
      %v1752 = vsel %vm1724, %v1719, %v1259
      %v1753 = vsel %vm1724, %v1720, %v1261
      %v1754 = vsel %vm1724, %v1721, %v1263
      %v1755 = vsel %vm1724, %v1722, %v1265
      %v1756 = vsel %vm1724, %v1723, %v1267
      %vm1757 = vcmask 392192
      %v1758 = vsel %vm1757, %v1725, %v1303
      %v1759 = vsel %vm1757, %v1726, %v1305
      %v1760 = vsel %vm1757, %v1727, %v1307
      %v1761 = vsel %vm1757, %v1728, %v1309
      %v1762 = vsel %vm1757, %v1729, %v1311
      %v1763 = vsel %vm1757, %v1730, %v1313
      %v1764 = vsel %vm1757, %v1731, %v1315
      %v1765 = vsel %vm1757, %v1732, %v1317
      %v1766 = vsel %vm1757, %v1733, %v1319
      %v1767 = vsel %vm1757, %v1734, %v1321
      %v1768 = vsel %vm1757, %v1735, %v1323
      %v1769 = vsel %vm1757, %v1736, %v1325
      %v1770 = vsel %vm1757, %v1737, %v1327
      %v1771 = vsel %vm1757, %v1738, %v1329
      %v1772 = vsel %vm1757, %v1739, %v1331
      %v1773 = vsel %vm1757, %v1740, %v1333
      %v1774 = vsel %vm1757, %v1741, %v1335
      %v1775 = vsel %vm1757, %v1742, %v1337
      %v1776 = vsel %vm1757, %v1743, %v1339
      %v1777 = vsel %vm1757, %v1744, %v1341
      %v1778 = vsel %vm1757, %v1745, %v1343
      %v1779 = vsel %vm1757, %v1746, %v1345
      %v1780 = vsel %vm1757, %v1747, %v1347
      %v1781 = vsel %vm1757, %v1748, %v1349
      %v1782 = vsel %vm1757, %v1749, %v1351
      %v1783 = vsel %vm1757, %v1750, %v1353
      %v1784 = vsel %vm1757, %v1751, %v1355
      %v1785 = vsel %vm1757, %v1752, %v1357
      %v1786 = vsel %vm1757, %v1753, %v1359
      %v1787 = vsel %vm1757, %v1754, %v1361
      %v1788 = vsel %vm1757, %v1755, %v1363
      %v1789 = vsel %vm1757, %v1756, %v1365
      %vm1790 = vcmask 457728
      %v1791 = vsel %vm1790, %v1758, %v1401
      %v1792 = vsel %vm1790, %v1759, %v1403
      %v1793 = vsel %vm1790, %v1760, %v1405
      %v1794 = vsel %vm1790, %v1761, %v1407
      %v1795 = vsel %vm1790, %v1762, %v1409
      %v1796 = vsel %vm1790, %v1763, %v1411
      %v1797 = vsel %vm1790, %v1764, %v1413
      %v1798 = vsel %vm1790, %v1765, %v1415
      %v1799 = vsel %vm1790, %v1766, %v1417
      %v1800 = vsel %vm1790, %v1767, %v1419
      %v1801 = vsel %vm1790, %v1768, %v1421
      %v1802 = vsel %vm1790, %v1769, %v1423
      %v1803 = vsel %vm1790, %v1770, %v1425
      %v1804 = vsel %vm1790, %v1771, %v1427
      %v1805 = vsel %vm1790, %v1772, %v1429
      %v1806 = vsel %vm1790, %v1773, %v1431
      %v1807 = vsel %vm1790, %v1774, %v1433
      %v1808 = vsel %vm1790, %v1775, %v1435
      %v1809 = vsel %vm1790, %v1776, %v1437
      %v1810 = vsel %vm1790, %v1777, %v1439
      %v1811 = vsel %vm1790, %v1778, %v1441
      %v1812 = vsel %vm1790, %v1779, %v1443
      %v1813 = vsel %vm1790, %v1780, %v1445
      %v1814 = vsel %vm1790, %v1781, %v1447
      %v1815 = vsel %vm1790, %v1782, %v1449
      %v1816 = vsel %vm1790, %v1783, %v1451
      %v1817 = vsel %vm1790, %v1784, %v1453
      %v1818 = vsel %vm1790, %v1785, %v1455
      %v1819 = vsel %vm1790, %v1786, %v1457
      %v1820 = vsel %vm1790, %v1787, %v1459
      %v1821 = vsel %vm1790, %v1788, %v1461
      %v1822 = vsel %vm1790, %v1789, %v1463
      %v1823 = vsel %vm539, %v1791, %v1499
      %v1824 = vsel %vm539, %v1792, %v1501
      %v1825 = vsel %vm539, %v1793, %v1503
      %v1826 = vsel %vm539, %v1794, %v1505
      %v1827 = vsel %vm539, %v1795, %v1507
      %v1828 = vsel %vm539, %v1796, %v1509
      %v1829 = vsel %vm539, %v1797, %v1511
      %v1830 = vsel %vm539, %v1798, %v1513
      %v1831 = vsel %vm539, %v1799, %v1515
      %v1832 = vsel %vm539, %v1800, %v1517
      %v1833 = vsel %vm539, %v1801, %v1519
      %v1834 = vsel %vm539, %v1802, %v1521
      %v1835 = vsel %vm539, %v1803, %v1523
      %v1836 = vsel %vm539, %v1804, %v1525
      %v1837 = vsel %vm539, %v1805, %v1527
      %v1838 = vsel %vm539, %v1806, %v1529
      %v1839 = vsel %vm539, %v1807, %v1531
      %v1840 = vsel %vm539, %v1808, %v1533
      %v1841 = vsel %vm539, %v1809, %v1535
      %v1842 = vsel %vm539, %v1810, %v1537
      %v1843 = vsel %vm539, %v1811, %v1539
      %v1844 = vsel %vm539, %v1812, %v1541
      %v1845 = vsel %vm539, %v1813, %v1543
      %v1846 = vsel %vm539, %v1814, %v1545
      %v1847 = vsel %vm539, %v1815, %v1547
      %v1848 = vsel %vm539, %v1816, %v1549
      %v1849 = vsel %vm539, %v1817, %v1551
      %v1850 = vsel %vm539, %v1818, %v1553
      %v1851 = vsel %vm539, %v1819, %v1555
      %v1852 = vsel %vm539, %v1820, %v1557
      %v1853 = vsel %vm539, %v1821, %v1559
      %v1854 = vsel %vm539, %v1822, %v1561
      %v1855 = vld [vmem:[%s11] sm:$0xff]
      %v1856 = vld [vmem:[%s11 + $0x8] sm:$0xff]
      %v1857 = vld [vmem:[%s11 + $0x10] sm:$0xff]
      %v1858 = vld [vmem:[%s11 + $0x18] sm:$0xff]
      %v1859 = vld [vmem:[%s11 + $0x20] sm:$0xff]
      %v1860 = vld [vmem:[%s11 + $0x28] sm:$0xff]
      %v1861 = vld [vmem:[%s11 + $0x30] sm:$0xff]
      %v1862 = vld [vmem:[%s11 + $0x38] sm:$0xff]
      %v1863 = vld [vmem:[%s11 + $0x40] sm:$0xff]
      %v1864 = vld [vmem:[%s11 + $0x48] sm:$0xff]
      %v1865 = vld [vmem:[%s11 + $0x50] sm:$0xff]
      %v1866 = vld [vmem:[%s11 + $0x58] sm:$0xff]
      %v1867 = vld [vmem:[%s11 + $0x60] sm:$0xff]
      %v1868 = vld [vmem:[%s11 + $0x68] sm:$0xff]
      %v1869 = vld [vmem:[%s11 + $0x70] sm:$0xff]
      %v1870 = vld [vmem:[%s11 + $0x78] sm:$0xff]
      %v1871 = vld [vmem:[%s11 + $0x80] sm:$0xff]
      %v1872 = vld [vmem:[%s11 + $0x88] sm:$0xff]
      %v1873 = vld [vmem:[%s11 + $0x90] sm:$0xff]
      %v1874 = vld [vmem:[%s11 + $0x98] sm:$0xff]
      %v1875 = vld [vmem:[%s11 + $0xa0] sm:$0xff]
      %v1876 = vld [vmem:[%s11 + $0xa8] sm:$0xff]
      %v1877 = vld [vmem:[%s11 + $0xb0] sm:$0xff]
      %v1878 = vld [vmem:[%s11 + $0xb8] sm:$0xff]
      %v1879 = vld [vmem:[%s11 + $0xc0] sm:$0xff]
      %v1880 = vld [vmem:[%s11 + $0xc8] sm:$0xff]
      %v1881 = vld [vmem:[%s11 + $0xd0] sm:$0xff]
      %v1882 = vld [vmem:[%s11 + $0xd8] sm:$0xff]
      %v1883 = vld [vmem:[%s11 + $0xe0] sm:$0xff]
      %v1884 = vld [vmem:[%s11 + $0xe8] sm:$0xff]
      %v1885 = vld [vmem:[%s11 + $0xf0] sm:$0xff]
      %v1886 = vld [vmem:[%s11 + $0xf8] sm:$0xff]
      %v1887 = vmul.f32 %v1823, %v1855
      %v1888 = vmul.f32 %v1824, %v1856
      %v1889 = vmul.f32 %v1825, %v1857
      %v1890 = vmul.f32 %v1826, %v1858
      %v1891 = vmul.f32 %v1827, %v1859
      %v1892 = vmul.f32 %v1828, %v1860
      %v1893 = vmul.f32 %v1829, %v1861
      %v1894 = vmul.f32 %v1830, %v1862
      %v1895 = vmul.f32 %v1831, %v1863
      %v1896 = vmul.f32 %v1832, %v1864
      %v1897 = vmul.f32 %v1833, %v1865
      %v1898 = vmul.f32 %v1834, %v1866
      %v1899 = vmul.f32 %v1835, %v1867
      %v1900 = vmul.f32 %v1836, %v1868
      %v1901 = vmul.f32 %v1837, %v1869
      %v1902 = vmul.f32 %v1838, %v1870
      %v1903 = vmul.f32 %v1839, %v1871
      %v1904 = vmul.f32 %v1840, %v1872
      %v1905 = vmul.f32 %v1841, %v1873
      %v1906 = vmul.f32 %v1842, %v1874
      %v1907 = vmul.f32 %v1843, %v1875
      %v1908 = vmul.f32 %v1844, %v1876
      %v1909 = vmul.f32 %v1845, %v1877
      %v1910 = vmul.f32 %v1846, %v1878
      %v1911 = vmul.f32 %v1847, %v1879
      %v1912 = vmul.f32 %v1848, %v1880
      %v1913 = vmul.f32 %v1849, %v1881
      %v1914 = vmul.f32 %v1850, %v1882
      %v1915 = vmul.f32 %v1851, %v1883
      %v1916 = vmul.f32 %v1852, %v1884
      %v1917 = vmul.f32 %v1853, %v1885
      %v1918 = vmul.f32 %v1854, %v1886
      %v1919 = vld [vmem:[%s1] sm:$0xff]
      %v1920 = vld [vmem:[%s1 + $0x8] sm:$0xff]
      %v1921 = vld [vmem:[%s1 + $0x10] sm:$0xff]
      %v1922 = vld [vmem:[%s1 + $0x18] sm:$0xff]
      %v1923 = vld [vmem:[%s1 + $0x20] sm:$0xff]
      %v1924 = vld [vmem:[%s1 + $0x28] sm:$0xff]
      %v1925 = vld [vmem:[%s1 + $0x30] sm:$0xff]
      %v1926 = vld [vmem:[%s1 + $0x38] sm:$0xff]
      %v1927 = vld [vmem:[%s1 + $0x40] sm:$0xff]
      %v1928 = vld [vmem:[%s2] sm:$0x1]
      %v1930 = vperm.slane %v1928, 0
      %vm1932 = vcmask 588800
      %v1934 = vsel %vm1932, %v1887, 0
      %v1937 = vsel %vm1932, %v1888, 0
      %v1940 = vsel %vm1932, %v1889, 0
      %v1943 = vsel %vm1932, %v1890, 0
      %v1946 = vsel %vm1932, %v1891, 0
      %v1949 = vsel %vm1932, %v1892, 0
      %v1952 = vsel %vm1932, %v1893, 0
      %v1955 = vsel %vm1932, %v1894, 0
      %v1958 = vsel %vm1932, %v1895, 0
      %v1961 = vsel %vm1932, %v1896, 0
      %v1964 = vsel %vm1932, %v1897, 0
      %v1967 = vsel %vm1932, %v1898, 0
      %v1970 = vsel %vm1932, %v1899, 0
      %v1973 = vsel %vm1932, %v1900, 0
      %v1976 = vsel %vm1932, %v1901, 0
      %v1979 = vsel %vm1932, %v1902, 0
      %v1982 = vsel %vm1932, %v1903, 0
      %v1985 = vsel %vm1932, %v1904, 0
      %v1988 = vsel %vm1932, %v1905, 0
      %v1991 = vsel %vm1932, %v1906, 0
      %v1994 = vsel %vm1932, %v1907, 0
      %v1997 = vsel %vm1932, %v1908, 0
      %v2000 = vsel %vm1932, %v1909, 0
      %v2003 = vsel %vm1932, %v1910, 0
      %v2006 = vsel %vm1932, %v1911, 0
      %v2009 = vsel %vm1932, %v1912, 0
      %v2012 = vsel %vm1932, %v1913, 0
      %v2015 = vsel %vm1932, %v1914, 0
      %v2018 = vsel %vm1932, %v1915, 0
      %v2021 = vsel %vm1932, %v1916, 0
      %v2024 = vsel %vm1932, %v1917, 0
      %v2027 = vsel %vm1932, %v1918, 0
      %2029 = vmatpush.msra.mxu0 0.0
      %2030 = vmatpush.msra.mxu0 0.0
      %2031 = vmatpush.msra.mxu0 0.0
      %2032 = vmatpush.msra.mxu0 0.0
      %2033 = vmatpush.msra.mxu0 0.0
      %2034 = vmatpush.msra.mxu0 0.0
      %2035 = vmatpush.msra.mxu0 0.0
      %2036 = vmatpush.msra.mxu0 %v1927
      %2037 = vmatpush.msra.mxu0 %v1926
      %2038 = vmatpush.msra.mxu0 %v1925
      %2039 = vmatpush.msra.mxu0 %v1924
      %2040 = vmatpush.msra.mxu0 %v1923
      %2041 = vmatpush.msra.mxu0 %v1922
      %2042 = vmatpush.msra.mxu0 %v1921
      %2043 = vmatpush.msra.mxu0 %v1920
      %2044 = vmatpush.msra.mxu0 %v1919
      %2045 = vmatmul.f32.gmra.mxu0 %v1934
      %v2046 = vpop.f32.mrf.mxu0
      %v2047 = vadd.f32 %v1930, %v2046
      %2048 = vmatmul.f32.gmra.mxu0 %v1937
      %v2049 = vpop.f32.mrf.mxu0
      %v2050 = vadd.f32 %v1930, %v2049
      %2051 = vmatmul.f32.gmra.mxu0 %v1940
      %v2052 = vpop.f32.mrf.mxu0
      %v2053 = vadd.f32 %v1930, %v2052
      %2054 = vmatmul.f32.gmra.mxu0 %v1943
      %v2055 = vpop.f32.mrf.mxu0
      %v2056 = vadd.f32 %v1930, %v2055
      %2057 = vmatmul.f32.gmra.mxu0 %v1946
      %v2058 = vpop.f32.mrf.mxu0
      %v2059 = vadd.f32 %v1930, %v2058
      %2060 = vmatmul.f32.gmra.mxu0 %v1949
      %v2061 = vpop.f32.mrf.mxu0
      %v2062 = vadd.f32 %v1930, %v2061
      %2063 = vmatmul.f32.gmra.mxu0 %v1952
      %v2064 = vpop.f32.mrf.mxu0
      %v2065 = vadd.f32 %v1930, %v2064
      %2066 = vmatmul.f32.gmra.mxu0 %v1955
      %v2067 = vpop.f32.mrf.mxu0
      %v2068 = vadd.f32 %v1930, %v2067
      %2069 = vmatmul.f32.gmra.mxu0 %v1958
      %v2070 = vpop.f32.mrf.mxu0
      %v2071 = vadd.f32 %v1930, %v2070
      %2072 = vmatmul.f32.gmra.mxu0 %v1961
      %v2073 = vpop.f32.mrf.mxu0
      %v2074 = vadd.f32 %v1930, %v2073
      %2075 = vmatmul.f32.gmra.mxu0 %v1964
      %v2076 = vpop.f32.mrf.mxu0
      %v2077 = vadd.f32 %v1930, %v2076
      %2078 = vmatmul.f32.gmra.mxu0 %v1967
      %v2079 = vpop.f32.mrf.mxu0
      %v2080 = vadd.f32 %v1930, %v2079
      %2081 = vmatmul.f32.gmra.mxu0 %v1970
      %v2082 = vpop.f32.mrf.mxu0
      %v2083 = vadd.f32 %v1930, %v2082
      %2084 = vmatmul.f32.gmra.mxu0 %v1973
      %v2085 = vpop.f32.mrf.mxu0
      %v2086 = vadd.f32 %v1930, %v2085
      %2087 = vmatmul.f32.gmra.mxu0 %v1976
      %v2088 = vpop.f32.mrf.mxu0
      %v2089 = vadd.f32 %v1930, %v2088
      %2090 = vmatmul.f32.gmra.mxu0 %v1979
      %v2091 = vpop.f32.mrf.mxu0
      %v2092 = vadd.f32 %v1930, %v2091
      %2093 = vmatmul.f32.gmra.mxu0 %v1982
      %v2094 = vpop.f32.mrf.mxu0
      %v2095 = vadd.f32 %v1930, %v2094
      %2096 = vmatmul.f32.gmra.mxu0 %v1985
      %v2097 = vpop.f32.mrf.mxu0
      %v2098 = vadd.f32 %v1930, %v2097
      %2099 = vmatmul.f32.gmra.mxu0 %v1988
      %v2100 = vpop.f32.mrf.mxu0
      %v2101 = vadd.f32 %v1930, %v2100
      %2102 = vmatmul.f32.gmra.mxu0 %v1991
      %v2103 = vpop.f32.mrf.mxu0
      %v2104 = vadd.f32 %v1930, %v2103
      %2105 = vmatmul.f32.gmra.mxu0 %v1994
      %v2106 = vpop.f32.mrf.mxu0
      %v2107 = vadd.f32 %v1930, %v2106
      %2108 = vmatmul.f32.gmra.mxu0 %v1997
      %v2109 = vpop.f32.mrf.mxu0
      %v2110 = vadd.f32 %v1930, %v2109
      %2111 = vmatmul.f32.gmra.mxu0 %v2000
      %v2112 = vpop.f32.mrf.mxu0
      %v2113 = vadd.f32 %v1930, %v2112
      %2114 = vmatmul.f32.gmra.mxu0 %v2003
      %v2115 = vpop.f32.mrf.mxu0
      %v2116 = vadd.f32 %v1930, %v2115
      %2117 = vmatmul.f32.gmra.mxu0 %v2006
      %v2118 = vpop.f32.mrf.mxu0
      %v2119 = vadd.f32 %v1930, %v2118
      %2120 = vmatmul.f32.gmra.mxu0 %v2009
      %v2121 = vpop.f32.mrf.mxu0
      %v2122 = vadd.f32 %v1930, %v2121
      %2123 = vmatmul.f32.gmra.mxu0 %v2012
      %v2124 = vpop.f32.mrf.mxu0
      %v2125 = vadd.f32 %v1930, %v2124
      %2126 = vmatmul.f32.gmra.mxu0 %v2015
      %v2127 = vpop.f32.mrf.mxu0
      %v2128 = vadd.f32 %v1930, %v2127
      %2129 = vmatmul.f32.gmra.mxu0 %v2018
      %v2130 = vpop.f32.mrf.mxu0
      %v2131 = vadd.f32 %v1930, %v2130
      %2132 = vmatmul.f32.gmra.mxu0 %v2021
      %v2133 = vpop.f32.mrf.mxu0
      %v2134 = vadd.f32 %v1930, %v2133
      %2135 = vmatmul.f32.gmra.mxu0 %v2024
      %v2136 = vpop.f32.mrf.mxu0
      %v2137 = vadd.f32 %v1930, %v2136
      %2138 = vmatmul.f32.gmra.mxu0 %v2027
      %v2139 = vpop.f32.mrf.mxu0
      %v2140 = vadd.f32 %v1930, %v2139
      %2141 = vdwg.mxu0
      %v2142 = vmax.f32 %v2047, 0.0
      %v2143 = vmax.f32 %v2050, 0.0
      %v2144 = vmax.f32 %v2053, 0.0
      %v2145 = vmax.f32 %v2056, 0.0
      %v2146 = vmax.f32 %v2059, 0.0
      %v2147 = vmax.f32 %v2062, 0.0
      %v2148 = vmax.f32 %v2065, 0.0
      %v2149 = vmax.f32 %v2068, 0.0
      %v2150 = vmax.f32 %v2071, 0.0
      %v2151 = vmax.f32 %v2074, 0.0
      %v2152 = vmax.f32 %v2077, 0.0
      %v2153 = vmax.f32 %v2080, 0.0
      %v2154 = vmax.f32 %v2083, 0.0
      %v2155 = vmax.f32 %v2086, 0.0
      %v2156 = vmax.f32 %v2089, 0.0
      %v2157 = vmax.f32 %v2092, 0.0
      %v2158 = vmax.f32 %v2095, 0.0
      %v2159 = vmax.f32 %v2098, 0.0
      %v2160 = vmax.f32 %v2101, 0.0
      %v2161 = vmax.f32 %v2104, 0.0
      %v2162 = vmax.f32 %v2107, 0.0
      %v2163 = vmax.f32 %v2110, 0.0
      %v2164 = vmax.f32 %v2113, 0.0
      %v2165 = vmax.f32 %v2116, 0.0
      %v2166 = vmax.f32 %v2119, 0.0
      %v2167 = vmax.f32 %v2122, 0.0
      %v2168 = vmax.f32 %v2125, 0.0
      %v2169 = vmax.f32 %v2128, 0.0
      %v2170 = vmax.f32 %v2131, 0.0
      %v2171 = vmax.f32 %v2134, 0.0
      %v2172 = vmax.f32 %v2137, 0.0
      %v2173 = vmax.f32 %v2140, 0.0
      %2174 = vst.msk [vmem:[#allocation6] sm:$0xff] %vm534, %v2142
      %2175 = vst.msk [vmem:[#allocation6 + $0x8] sm:$0xff] %vm534, %v2143
      %2176 = vst.msk [vmem:[#allocation6 + $0x10] sm:$0xff] %vm534, %v2144
      %2177 = vst.msk [vmem:[#allocation6 + $0x18] sm:$0xff] %vm534, %v2145
      %2178 = vst.msk [vmem:[#allocation6 + $0x20] sm:$0xff] %vm534, %v2146
      %2179 = vst.msk [vmem:[#allocation6 + $0x28] sm:$0xff] %vm534, %v2147
      %2180 = vst.msk [vmem:[#allocation6 + $0x30] sm:$0xff] %vm534, %v2148
      %2181 = vst.msk [vmem:[#allocation6 + $0x38] sm:$0xff] %vm534, %v2149
      %2182 = vst.msk [vmem:[#allocation6 + $0x40] sm:$0xff] %vm534, %v2150
      %2183 = vst.msk [vmem:[#allocation6 + $0x48] sm:$0xff] %vm534, %v2151
      %2184 = vst.msk [vmem:[#allocation6 + $0x50] sm:$0xff] %vm534, %v2152
      %2185 = vst.msk [vmem:[#allocation6 + $0x58] sm:$0xff] %vm534, %v2153
      %2186 = vst.msk [vmem:[#allocation6 + $0x60] sm:$0xff] %vm534, %v2154
      %2187 = vst.msk [vmem:[#allocation6 + $0x68] sm:$0xff] %vm534, %v2155
      %2188 = vst.msk [vmem:[#allocation6 + $0x70] sm:$0xff] %vm534, %v2156
      %2189 = vst.msk [vmem:[#allocation6 + $0x78] sm:$0xff] %vm534, %v2157
      %2190 = vst.msk [vmem:[#allocation6 + $0x80] sm:$0xff] %vm534, %v2158
      %2191 = vst.msk [vmem:[#allocation6 + $0x88] sm:$0xff] %vm534, %v2159
      %2192 = vst.msk [vmem:[#allocation6 + $0x90] sm:$0xff] %vm534, %v2160
      %2193 = vst.msk [vmem:[#allocation6 + $0x98] sm:$0xff] %vm534, %v2161
      %2194 = vst.msk [vmem:[#allocation6 + $0xa0] sm:$0xff] %vm534, %v2162
      %2195 = vst.msk [vmem:[#allocation6 + $0xa8] sm:$0xff] %vm534, %v2163
      %2196 = vst.msk [vmem:[#allocation6 + $0xb0] sm:$0xff] %vm534, %v2164
      %2197 = vst.msk [vmem:[#allocation6 + $0xb8] sm:$0xff] %vm534, %v2165
      %2198 = vst.msk [vmem:[#allocation6 + $0xc0] sm:$0xff] %vm534, %v2166
      %2199 = vst.msk [vmem:[#allocation6 + $0xc8] sm:$0xff] %vm534, %v2167
      %2200 = vst.msk [vmem:[#allocation6 + $0xd0] sm:$0xff] %vm534, %v2168
      %2201 = vst.msk [vmem:[#allocation6 + $0xd8] sm:$0xff] %vm534, %v2169
      %2202 = vst.msk [vmem:[#allocation6 + $0xe0] sm:$0xff] %vm534, %v2170
      %2203 = vst.msk [vmem:[#allocation6 + $0xe8] sm:$0xff] %vm534, %v2171
      %2204 = vst.msk [vmem:[#allocation6 + $0xf0] sm:$0xff] %vm534, %v2172
      %2205 = vst.msk [vmem:[#allocation6 + $0xf8] sm:$0xff] %vm534, %v2173
      %v2206 = vld [vmem:[#allocation6] ss:$2 sm:$0xff]
      %s2207 = scalar_lea.vmem [#allocation6], 16
      %v2208 = vld [vmem:[%s2207] ss:$2 sm:$0xff]
      %s2209 = scalar_lea.vmem [#allocation6], 32
      %v2210 = vld [vmem:[%s2209] ss:$2 sm:$0xff]
      %s2211 = scalar_lea.vmem [#allocation6], 48
      %v2212 = vld [vmem:[%s2211] ss:$2 sm:$0xff]
      %s2213 = scalar_lea.vmem [#allocation6], 64
      %v2214 = vld [vmem:[%s2213] ss:$2 sm:$0xff]
      %s2215 = scalar_lea.vmem [#allocation6], 80
      %v2216 = vld [vmem:[%s2215] ss:$2 sm:$0xff]
      %s2217 = scalar_lea.vmem [#allocation6], 96
      %v2218 = vld [vmem:[%s2217] ss:$2 sm:$0xff]
      %s2219 = scalar_lea.vmem [#allocation6], 112
      %v2220 = vld [vmem:[%s2219] ss:$2 sm:$0xff]
      %s2221 = scalar_lea.vmem [#allocation6], 128
      %v2222 = vld [vmem:[%s2221] ss:$2 sm:$0xff]
      %s2223 = scalar_lea.vmem [#allocation6], 144
      %v2224 = vld [vmem:[%s2223] ss:$2 sm:$0xff]
      %s2225 = scalar_lea.vmem [#allocation6], 160
      %v2226 = vld [vmem:[%s2225] ss:$2 sm:$0xff]
      %s2227 = scalar_lea.vmem [#allocation6], 176
      %v2228 = vld [vmem:[%s2227] ss:$2 sm:$0xff]
      %s2229 = scalar_lea.vmem [#allocation6], 192
      %v2230 = vld [vmem:[%s2229] ss:$2 sm:$0xff]
      %s2231 = scalar_lea.vmem [#allocation6], 208
      %v2232 = vld [vmem:[%s2231] ss:$2 sm:$0xff]
      %s2233 = scalar_lea.vmem [#allocation6], 224
      %v2234 = vld [vmem:[%s2233] ss:$2 sm:$0xff]
      %s2235 = scalar_lea.vmem [#allocation6], 240
      %v2236 = vld [vmem:[%s2235] ss:$2 sm:$0xff]
      %s2237 = scalar_lea.vmem [#allocation6], 1
      %v2238 = vld [vmem:[%s2237] ss:$2 sm:$0xff]
      %s2239 = scalar_lea.vmem [#allocation6], 17
      %v2240 = vld [vmem:[%s2239] ss:$2 sm:$0xff]
      %s2241 = scalar_lea.vmem [#allocation6], 33
      %v2242 = vld [vmem:[%s2241] ss:$2 sm:$0xff]
      %s2243 = scalar_lea.vmem [#allocation6], 49
      %v2244 = vld [vmem:[%s2243] ss:$2 sm:$0xff]
      %s2245 = scalar_lea.vmem [#allocation6], 65
      %v2246 = vld [vmem:[%s2245] ss:$2 sm:$0xff]
      %s2247 = scalar_lea.vmem [#allocation6], 81
      %v2248 = vld [vmem:[%s2247] ss:$2 sm:$0xff]
      %s2249 = scalar_lea.vmem [#allocation6], 97
      %v2250 = vld [vmem:[%s2249] ss:$2 sm:$0xff]
      %s2251 = scalar_lea.vmem [#allocation6], 113
      %v2252 = vld [vmem:[%s2251] ss:$2 sm:$0xff]
      %s2253 = scalar_lea.vmem [#allocation6], 129
      %v2254 = vld [vmem:[%s2253] ss:$2 sm:$0xff]
      %s2255 = scalar_lea.vmem [#allocation6], 145
      %v2256 = vld [vmem:[%s2255] ss:$2 sm:$0xff]
      %s2257 = scalar_lea.vmem [#allocation6], 161
      %v2258 = vld [vmem:[%s2257] ss:$2 sm:$0xff]
      %s2259 = scalar_lea.vmem [#allocation6], 177
      %v2260 = vld [vmem:[%s2259] ss:$2 sm:$0xff]
      %s2261 = scalar_lea.vmem [#allocation6], 193
      %v2262 = vld [vmem:[%s2261] ss:$2 sm:$0xff]
      %s2263 = scalar_lea.vmem [#allocation6], 209
      %v2264 = vld [vmem:[%s2263] ss:$2 sm:$0xff]
      %s2265 = scalar_lea.vmem [#allocation6], 225
      %v2266 = vld [vmem:[%s2265] ss:$2 sm:$0xff]
      %s2267 = scalar_lea.vmem [#allocation6], 241
      %v2268 = vld [vmem:[%s2267] ss:$2 sm:$0xff]
      %v2269 = vmax.f32 %v2206, %v2238
      %v2270 = vmax.f32 %v2208, %v2240
      %v2271 = vmax.f32 %v2210, %v2242
      %v2272 = vmax.f32 %v2212, %v2244
      %v2273 = vmax.f32 %v2214, %v2246
      %v2274 = vmax.f32 %v2216, %v2248
      %v2275 = vmax.f32 %v2218, %v2250
      %v2276 = vmax.f32 %v2220, %v2252
      %v2277 = vmax.f32 %v2222, %v2254
      %v2278 = vmax.f32 %v2224, %v2256
      %v2279 = vmax.f32 %v2226, %v2258
      %v2280 = vmax.f32 %v2228, %v2260
      %v2281 = vmax.f32 %v2230, %v2262
      %v2282 = vmax.f32 %v2232, %v2264
      %v2283 = vmax.f32 %v2234, %v2266
      %v2284 = vmax.f32 %v2236, %v2268
      %2285 = vst.msk [vmem:[#allocation6] sm:$0xff] %vm534, %v2269
      %2286 = vst.msk [vmem:[#allocation6 + $0x8] sm:$0xff] %vm534, %v2270
      %2287 = vst.msk [vmem:[#allocation6 + $0x10] sm:$0xff] %vm534, %v2271
      %2288 = vst.msk [vmem:[#allocation6 + $0x18] sm:$0xff] %vm534, %v2272
      %2289 = vst.msk [vmem:[#allocation6 + $0x20] sm:$0xff] %vm534, %v2273
      %2290 = vst.msk [vmem:[#allocation6 + $0x28] sm:$0xff] %vm534, %v2274
      %2291 = vst.msk [vmem:[#allocation6 + $0x30] sm:$0xff] %vm534, %v2275
      %2292 = vst.msk [vmem:[#allocation6 + $0x38] sm:$0xff] %vm534, %v2276
      %2293 = vst.msk [vmem:[#allocation6 + $0x40] sm:$0xff] %vm534, %v2277
      %2294 = vst.msk [vmem:[#allocation6 + $0x48] sm:$0xff] %vm534, %v2278
      %2295 = vst.msk [vmem:[#allocation6 + $0x50] sm:$0xff] %vm534, %v2279
      %2296 = vst.msk [vmem:[#allocation6 + $0x58] sm:$0xff] %vm534, %v2280
      %2297 = vst.msk [vmem:[#allocation6 + $0x60] sm:$0xff] %vm534, %v2281
      %2298 = vst.msk [vmem:[#allocation6 + $0x68] sm:$0xff] %vm534, %v2282
      %2299 = vst.msk [vmem:[#allocation6 + $0x70] sm:$0xff] %vm534, %v2283
      %2300 = vst.msk [vmem:[#allocation6 + $0x78] sm:$0xff] %vm534, %v2284
      %v2301 = vld [vmem:[#allocation6] sm:$0xff]
      %v2302 = vld [vmem:[#allocation6 + $0x8] sm:$0xff]
      %v2303 = vmax.f32 %v2301, %v2302
      %2304 = vst.msk [vmem:[#allocation3 + $0x10] sm:$0xff] %vm534, %v2303
      %v2305 = vld [vmem:[#allocation6 + $0x10] sm:$0xff]
      %v2306 = vld [vmem:[#allocation6 + $0x18] sm:$0xff]
      %v2307 = vmax.f32 %v2305, %v2306
      %2308 = vst.msk [vmem:[#allocation3 + $0x18] sm:$0xff] %vm534, %v2307
      %v2309 = vld [vmem:[#allocation6 + $0x20] sm:$0xff]
      %v2310 = vld [vmem:[#allocation6 + $0x28] sm:$0xff]
      %v2311 = vmax.f32 %v2309, %v2310
      %2312 = vst.msk [vmem:[#allocation3 + $0x20] sm:$0xff] %vm534, %v2311
      %v2313 = vld [vmem:[#allocation6 + $0x30] sm:$0xff]
      %v2314 = vld [vmem:[#allocation6 + $0x38] sm:$0xff]
      %v2315 = vmax.f32 %v2313, %v2314
      %2316 = vst.msk [vmem:[#allocation3 + $0x28] sm:$0xff] %vm534, %v2315
      %v2317 = vld [vmem:[#allocation6 + $0x40] sm:$0xff]
      %v2318 = vld [vmem:[#allocation6 + $0x48] sm:$0xff]
      %v2319 = vmax.f32 %v2317, %v2318
      %2320 = vst.msk [vmem:[#allocation3 + $0x30] sm:$0xff] %vm534, %v2319
      %v2321 = vld [vmem:[#allocation6 + $0x50] sm:$0xff]
      %v2322 = vld [vmem:[#allocation6 + $0x58] sm:$0xff]
      %v2323 = vmax.f32 %v2321, %v2322
      %2324 = vst.msk [vmem:[#allocation3 + $0x38] sm:$0xff] %vm534, %v2323
      %v2325 = vld [vmem:[#allocation6 + $0x60] sm:$0xff]
      %v2326 = vld [vmem:[#allocation6 + $0x68] sm:$0xff]
      %v2327 = vmax.f32 %v2325, %v2326
      %2328 = vst.msk [vmem:[#allocation3 + $0x40] sm:$0xff] %vm534, %v2327
      %v2329 = vld [vmem:[#allocation6 + $0x70] sm:$0xff]
      %v2330 = vld [vmem:[#allocation6 + $0x78] sm:$0xff]
      %v2331 = vmax.f32 %v2329, %v2330
      %2332 = vst.msk [vmem:[#allocation3 + $0x48] sm:$0xff] %vm534, %v2331
      %v2333 = vld [vmem:[#allocation3 + $0x7] sm:$0xff]
      %v2334 = vld [vmem:[#allocation3 + $0xf] sm:$0xff]
      %v2335 = vld [vmem:[#allocation3 + $0x17] sm:$0xff]
      %v2336 = vld [vmem:[#allocation3 + $0x1f] sm:$0xff]
      %v2337 = vld [vmem:[#allocation3 + $0x27] sm:$0xff]
      %v2338 = vld [vmem:[#allocation3 + $0x2f] sm:$0xff]
      %v2339 = vld [vmem:[#allocation3 + $0x37] sm:$0xff]
      %v2340 = vld [vmem:[#allocation3 + $0x3f] sm:$0xff]
      %v2341 = vld [vmem:[#allocation3 + $0x8] sm:$0xff]
      %v2342 = vld [vmem:[#allocation3 + $0x10] sm:$0xff]
      %v2343 = vld [vmem:[#allocation3 + $0x18] sm:$0xff]
      %v2344 = vld [vmem:[#allocation3 + $0x20] sm:$0xff]
      %v2345 = vld [vmem:[#allocation3 + $0x28] sm:$0xff]
      %v2346 = vld [vmem:[#allocation3 + $0x30] sm:$0xff]
      %v2347 = vld [vmem:[#allocation3 + $0x38] sm:$0xff]
      %v2348 = vld [vmem:[#allocation3 + $0x40] sm:$0xff]
      %v2349 = vld [vmem:[#allocation3 + $0x9] sm:$0xff]
      %v2350 = vld [vmem:[#allocation3 + $0x11] sm:$0xff]
      %v2351 = vld [vmem:[#allocation3 + $0x19] sm:$0xff]
      %v2352 = vld [vmem:[#allocation3 + $0x21] sm:$0xff]
      %v2353 = vld [vmem:[#allocation3 + $0x29] sm:$0xff]
      %v2354 = vld [vmem:[#allocation3 + $0x31] sm:$0xff]
      %v2355 = vld [vmem:[#allocation3 + $0x39] sm:$0xff]
      %v2356 = vld [vmem:[#allocation3 + $0x41] sm:$0xff]
      %v2357 = vld [vmem:[#allocation3 + $0x47] sm:$0xff]
      %v2358 = vld [vmem:[#allocation3 + $0x48] sm:$0xff]
      %v2359 = vld [vmem:[#allocation3 + $0x49] sm:$0xff]
      %v2360 = vld [vmem:[#allocation3 + $0x4f] sm:$0xff]
      %v2361 = vld [vmem:[#allocation3 + $0x50] sm:$0xff]
      %v2362 = vld [vmem:[#allocation3 + $0x51] sm:$0xff]
      %2371 = vrot.lane.b32.xlu0 %v2341, 32
      %v2372 = vpop.permute.xlu0 %2371
      %2373 = vrot.lane.b32.xlu0 %v2342, 32
      %v2374 = vpop.permute.xlu0 %2373
      %2375 = vrot.lane.b32.xlu0 %v2343, 32
      %v2376 = vpop.permute.xlu0 %2375
      %2377 = vrot.lane.b32.xlu0 %v2344, 32
      %v2378 = vpop.permute.xlu0 %2377
      %2379 = vrot.lane.b32.xlu0 %v2345, 32
      %v2380 = vpop.permute.xlu0 %2379
      %2381 = vrot.lane.b32.xlu0 %v2346, 32
      %v2382 = vpop.permute.xlu0 %2381
      %2383 = vrot.lane.b32.xlu0 %v2347, 32
      %v2384 = vpop.permute.xlu0 %2383
      %2385 = vrot.lane.b32.xlu0 %v2348, 32
      %v2386 = vpop.permute.xlu0 %2385
      %2403 = vrot.lane.b32.xlu0 %v2349, 64
      %v2404 = vpop.permute.xlu0 %2403
      %2405 = vrot.lane.b32.xlu0 %v2350, 64
      %v2406 = vpop.permute.xlu0 %2405
      %2407 = vrot.lane.b32.xlu0 %v2351, 64
      %v2408 = vpop.permute.xlu0 %2407
      %2409 = vrot.lane.b32.xlu0 %v2352, 64
      %v2410 = vpop.permute.xlu0 %2409
      %2411 = vrot.lane.b32.xlu0 %v2353, 64
      %v2412 = vpop.permute.xlu0 %2411
      %2413 = vrot.lane.b32.xlu0 %v2354, 64
      %v2414 = vpop.permute.xlu0 %2413
      %2415 = vrot.lane.b32.xlu0 %v2355, 64
      %v2416 = vpop.permute.xlu0 %2415
      %2417 = vrot.lane.b32.xlu0 %v2356, 64
      %v2418 = vpop.permute.xlu0 %2417
      %2435 = vrot.lane.b32.xlu0 %v2334, 96
      %v2436 = vpop.permute.xlu0 %2435
      %2437 = vrot.lane.b32.xlu0 %v2335, 96
      %v2438 = vpop.permute.xlu0 %2437
      %2439 = vrot.lane.b32.xlu0 %v2336, 96
      %v2440 = vpop.permute.xlu0 %2439
      %2441 = vrot.lane.b32.xlu0 %v2337, 96
      %v2442 = vpop.permute.xlu0 %2441
      %2443 = vrot.lane.b32.xlu0 %v2338, 96
      %v2444 = vpop.permute.xlu0 %2443
      %2445 = vrot.lane.b32.xlu0 %v2339, 96
      %v2446 = vpop.permute.xlu0 %2445
      %2447 = vrot.lane.b32.xlu0 %v2340, 96
      %v2448 = vpop.permute.xlu0 %2447
      %2449 = vrot.lane.b32.xlu0 %v2357, 96
      %v2450 = vpop.permute.xlu0 %2449
      %2460 = vrot.lane.b32.xlu0 %v2350, 32
      %v2461 = vpop.permute.xlu0 %2460
      %2462 = vrot.lane.b32.xlu0 %v2351, 32
      %v2463 = vpop.permute.xlu0 %2462
      %2464 = vrot.lane.b32.xlu0 %v2352, 32
      %v2465 = vpop.permute.xlu0 %2464
      %2466 = vrot.lane.b32.xlu0 %v2353, 32
      %v2467 = vpop.permute.xlu0 %2466
      %2468 = vrot.lane.b32.xlu0 %v2354, 32
      %v2469 = vpop.permute.xlu0 %2468
      %2470 = vrot.lane.b32.xlu0 %v2355, 32
      %v2471 = vpop.permute.xlu0 %2470
      %2472 = vrot.lane.b32.xlu0 %v2356, 32
      %v2473 = vpop.permute.xlu0 %2472
      %2474 = vrot.lane.b32.xlu0 %v2359, 32
      %v2475 = vpop.permute.xlu0 %2474
      %2485 = vrot.lane.b32.xlu0 %v2335, 64
      %v2486 = vpop.permute.xlu0 %2485
      %2487 = vrot.lane.b32.xlu0 %v2336, 64
      %v2488 = vpop.permute.xlu0 %2487
      %2489 = vrot.lane.b32.xlu0 %v2337, 64
      %v2490 = vpop.permute.xlu0 %2489
      %2491 = vrot.lane.b32.xlu0 %v2338, 64
      %v2492 = vpop.permute.xlu0 %2491
      %2493 = vrot.lane.b32.xlu0 %v2339, 64
      %v2494 = vpop.permute.xlu0 %2493
      %2495 = vrot.lane.b32.xlu0 %v2340, 64
      %v2496 = vpop.permute.xlu0 %2495
      %2497 = vrot.lane.b32.xlu0 %v2357, 64
      %v2498 = vpop.permute.xlu0 %2497
      %2499 = vrot.lane.b32.xlu0 %v2360, 64
      %v2500 = vpop.permute.xlu0 %2499
      %2511 = vrot.lane.b32.xlu0 %v2343, 96
      %v2512 = vpop.permute.xlu0 %2511
      %2513 = vrot.lane.b32.xlu0 %v2344, 96
      %v2514 = vpop.permute.xlu0 %2513
      %2515 = vrot.lane.b32.xlu0 %v2345, 96
      %v2516 = vpop.permute.xlu0 %2515
      %2517 = vrot.lane.b32.xlu0 %v2346, 96
      %v2518 = vpop.permute.xlu0 %2517
      %2519 = vrot.lane.b32.xlu0 %v2347, 96
      %v2520 = vpop.permute.xlu0 %2519
      %2521 = vrot.lane.b32.xlu0 %v2348, 96
      %v2522 = vpop.permute.xlu0 %2521
      %2523 = vrot.lane.b32.xlu0 %v2358, 96
      %v2524 = vpop.permute.xlu0 %2523
      %2525 = vrot.lane.b32.xlu0 %v2361, 96
      %v2526 = vpop.permute.xlu0 %2525
      %v2535 = vsel %vm534, %v2333, %v2372
      %v2536 = vsel %vm534, %v2334, %v2374
      %v2537 = vsel %vm534, %v2335, %v2376
      %v2538 = vsel %vm534, %v2336, %v2378
      %v2539 = vsel %vm534, %v2337, %v2380
      %v2540 = vsel %vm534, %v2338, %v2382
      %v2541 = vsel %vm534, %v2339, %v2384
      %v2542 = vsel %vm534, %v2340, %v2386
      %v2543 = vsel %vm539, %v2535, %v2404
      %v2544 = vsel %vm539, %v2536, %v2406
      %v2545 = vsel %vm539, %v2537, %v2408
      %v2546 = vsel %vm539, %v2538, %v2410
      %v2547 = vsel %vm539, %v2539, %v2412
      %v2548 = vsel %vm539, %v2540, %v2414
      %v2549 = vsel %vm539, %v2541, %v2416
      %v2550 = vsel %vm539, %v2542, %v2418
      %vm2551 = vcmask 785408
      %v2552 = vsel %vm2551, %v2543, %v2436
      %v2553 = vsel %vm2551, %v2544, %v2438
      %v2554 = vsel %vm2551, %v2545, %v2440
      %v2555 = vsel %vm2551, %v2546, %v2442
      %v2556 = vsel %vm2551, %v2547, %v2444
      %v2557 = vsel %vm2551, %v2548, %v2446
      %v2558 = vsel %vm2551, %v2549, %v2448
      %v2559 = vsel %vm2551, %v2550, %v2450
      %v2560 = vsel %vm534, %v2342, %v2461
      %v2561 = vsel %vm534, %v2343, %v2463
      %v2562 = vsel %vm534, %v2344, %v2465
      %v2563 = vsel %vm534, %v2345, %v2467
      %v2564 = vsel %vm534, %v2346, %v2469
      %v2565 = vsel %vm534, %v2347, %v2471
      %v2566 = vsel %vm534, %v2348, %v2473
      %v2567 = vsel %vm534, %v2358, %v2475
      %v2568 = vsel %vm539, %v2560, %v2486
      %v2569 = vsel %vm539, %v2561, %v2488
      %v2570 = vsel %vm539, %v2562, %v2490
      %v2571 = vsel %vm539, %v2563, %v2492
      %v2572 = vsel %vm539, %v2564, %v2494
      %v2573 = vsel %vm539, %v2565, %v2496
      %v2574 = vsel %vm539, %v2566, %v2498
      %v2575 = vsel %vm539, %v2567, %v2500
      %v2576 = vsel %vm2551, %v2568, %v2512
      %v2577 = vsel %vm2551, %v2569, %v2514
      %v2578 = vsel %vm2551, %v2570, %v2516
      %v2579 = vsel %vm2551, %v2571, %v2518
      %v2580 = vsel %vm2551, %v2572, %v2520
      %v2581 = vsel %vm2551, %v2573, %v2522
      %v2582 = vsel %vm2551, %v2574, %v2524
      %v2583 = vsel %vm2551, %v2575, %v2526
      %v2584 = vld [vmem:[%s12] sm:$0xff]
      %v2585 = vld [vmem:[%s12 + $0x8] sm:$0xff]
      %v2586 = vld [vmem:[%s12 + $0x10] sm:$0xff]
      %v2587 = vld [vmem:[%s12 + $0x18] sm:$0xff]
      %v2588 = vld [vmem:[%s12 + $0x20] sm:$0xff]
      %v2589 = vld [vmem:[%s12 + $0x28] sm:$0xff]
      %v2590 = vld [vmem:[%s12 + $0x30] sm:$0xff]
      %v2591 = vld [vmem:[%s12 + $0x38] sm:$0xff]
      %v2592 = vld [vmem:[%s12 + $0x40] sm:$0xff]
      %v2593 = vld [vmem:[%s12 + $0x48] sm:$0xff]
      %v2594 = vld [vmem:[%s12 + $0x50] sm:$0xff]
      %v2595 = vld [vmem:[%s12 + $0x58] sm:$0xff]
      %v2596 = vld [vmem:[%s12 + $0x60] sm:$0xff]
      %v2597 = vld [vmem:[%s12 + $0x68] sm:$0xff]
      %v2598 = vld [vmem:[%s12 + $0x70] sm:$0xff]
      %v2599 = vld [vmem:[%s12 + $0x78] sm:$0xff]
      %v2600 = vld [vmem:[%s12 + $0x80] sm:$0xff]
      %v2601 = vld [vmem:[%s12 + $0x88] sm:$0xff]
      %v2602 = vld [vmem:[%s12 + $0x90] sm:$0xff]
      %v2603 = vld [vmem:[%s12 + $0x98] sm:$0xff]
      %v2604 = vld [vmem:[%s12 + $0xa0] sm:$0xff]
      %v2605 = vld [vmem:[%s12 + $0xa8] sm:$0xff]
      %v2606 = vld [vmem:[%s12 + $0xb0] sm:$0xff]
      %v2607 = vld [vmem:[%s12 + $0xb8] sm:$0xff]
      %v2608 = vmul.f32 %v2552, %v2584
      %v2609 = vmul.f32 %v2576, %v2585
      %v2610 = vmul.f32 %v2351, %v2586
      %v2611 = vmul.f32 %v2553, %v2587
      %v2612 = vmul.f32 %v2577, %v2588
      %v2613 = vmul.f32 %v2352, %v2589
      %v2614 = vmul.f32 %v2554, %v2590
      %v2615 = vmul.f32 %v2578, %v2591
      %v2616 = vmul.f32 %v2353, %v2592
      %v2617 = vmul.f32 %v2555, %v2593
      %v2618 = vmul.f32 %v2579, %v2594
      %v2619 = vmul.f32 %v2354, %v2595
      %v2620 = vmul.f32 %v2556, %v2596
      %v2621 = vmul.f32 %v2580, %v2597
      %v2622 = vmul.f32 %v2355, %v2598
      %v2623 = vmul.f32 %v2557, %v2599
      %v2624 = vmul.f32 %v2581, %v2600
      %v2625 = vmul.f32 %v2356, %v2601
      %v2626 = vmul.f32 %v2558, %v2602
      %v2627 = vmul.f32 %v2582, %v2603
      %v2628 = vmul.f32 %v2359, %v2604
      %v2629 = vmul.f32 %v2559, %v2605
      %v2630 = vmul.f32 %v2583, %v2606
      %v2631 = vmul.f32 %v2362, %v2607
      %v2632 = vld [vmem:[%s3] sm:$0xff]
      %v2633 = vld [vmem:[%s3 + $0x8] sm:$0xff]
      %v2634 = vld [vmem:[%s3 + $0x10] sm:$0xff]
      %v2635 = vld [vmem:[%s3 + $0x18] sm:$0xff]
      %v2636 = vld [vmem:[%s3 + $0x20] sm:$0xff]
      %v2637 = vld [vmem:[%s3 + $0x28] sm:$0xff]
      %v2638 = vld [vmem:[%s3 + $0x30] sm:$0xff]
      %v2639 = vld [vmem:[%s3 + $0x38] sm:$0xff]
      %v2640 = vld [vmem:[%s3 + $0x40] sm:$0xff]
      %v2641 = vld [vmem:[%s3 + $0x48] sm:$0xff]
      %v2642 = vld [vmem:[%s3 + $0x50] sm:$0xff]
      %v2643 = vld [vmem:[%s3 + $0x58] sm:$0xff]
      %v2644 = vld [vmem:[%s3 + $0x60] sm:$0xff]
      %v2645 = vld [vmem:[%s3 + $0x68] sm:$0xff]
      %v2646 = vld [vmem:[%s3 + $0x70] sm:$0xff]
      %v2647 = vld [vmem:[%s3 + $0x78] sm:$0xff]
      %v2648 = vld [vmem:[%s3 + $0x80] sm:$0xff]
      %v2649 = vld [vmem:[%s3 + $0x88] sm:$0xff]
      %v2650 = vld [vmem:[%s3 + $0x90] sm:$0xff]
      %v2651 = vld [vmem:[%s3 + $0x98] sm:$0xff]
      %v2652 = vld [vmem:[%s3 + $0xa0] sm:$0xff]
      %v2653 = vld [vmem:[%s3 + $0xa8] sm:$0xff]
      %v2654 = vld [vmem:[%s3 + $0xb0] sm:$0xff]
      %v2655 = vld [vmem:[%s3 + $0xb8] sm:$0xff]
      %v2656 = vld [vmem:[%s3 + $0xc0] sm:$0xff]
      %v2657 = vld [vmem:[%s3 + $0xc8] sm:$0xff]
      %v2658 = vld [vmem:[%s3 + $0xd0] sm:$0xff]
      %v2659 = vld [vmem:[%s3 + $0xd8] sm:$0xff]
      %v2660 = vld [vmem:[%s3 + $0xe0] sm:$0xff]
      %v2661 = vld [vmem:[%s3 + $0xe8] sm:$0xff]
      %v2662 = vld [vmem:[%s3 + $0xf0] sm:$0xff]
      %v2663 = vld [vmem:[%s3 + $0xf8] sm:$0xff]
      %v2664 = vld [vmem:[%s3 + $0x100] sm:$0xff]
      %v2665 = vld [vmem:[%s3 + $0x108] sm:$0xff]
      %v2666 = vld [vmem:[%s3 + $0x110] sm:$0xff]
      %v2667 = vld [vmem:[%s3 + $0x118] sm:$0xff]
      %v2668 = vld [vmem:[%s4] sm:$0x1]
      %v2670 = vperm.slane %v2668, 0
      %v2673 = vsel %vm534, %v2610, 0
      %v2676 = vsel %vm534, %v2613, 0
      %v2679 = vsel %vm534, %v2616, 0
      %v2682 = vsel %vm534, %v2619, 0
      %v2685 = vsel %vm534, %v2622, 0
      %v2688 = vsel %vm534, %v2625, 0
      %v2691 = vsel %vm534, %v2628, 0
      %v2694 = vsel %vm534, %v2631, 0
      %2696 = vmatpush.msra.mxu0 %v2647
      %2697 = vmatpush.msra.mxu0 %v2646
      %2698 = vmatpush.msra.mxu0 %v2645
      %2699 = vmatpush.msra.mxu0 %v2644
      %2700 = vmatpush.msra.mxu0 %v2643
      %2701 = vmatpush.msra.mxu0 %v2642
      %2702 = vmatpush.msra.mxu0 %v2641
      %2703 = vmatpush.msra.mxu0 %v2640
      %2704 = vmatpush.msra.mxu0 %v2639
      %2705 = vmatpush.msra.mxu0 %v2638
      %2706 = vmatpush.msra.mxu0 %v2637
      %2707 = vmatpush.msra.mxu0 %v2636
      %2708 = vmatpush.msra.mxu0 %v2635
      %2709 = vmatpush.msra.mxu0 %v2634
      %2710 = vmatpush.msra.mxu0 %v2633
      %2711 = vmatpush.msra.mxu0 %v2632
      %2712 = vmatmul.f32.gmra.mxu0 %v2608
      %v2713 = vpop.f32.mrf.mxu0
      %v2714 = vadd.f32 %v2670, %v2713
      %2715 = vmatmul.f32.gmra.mxu0 %v2611
      %v2716 = vpop.f32.mrf.mxu0
      %v2717 = vadd.f32 %v2670, %v2716
      %2718 = vmatmul.f32.gmra.mxu0 %v2614
      %v2719 = vpop.f32.mrf.mxu0
      %v2720 = vadd.f32 %v2670, %v2719
      %2721 = vmatmul.f32.gmra.mxu0 %v2617
      %v2722 = vpop.f32.mrf.mxu0
      %v2723 = vadd.f32 %v2670, %v2722
      %2724 = vmatmul.f32.gmra.mxu0 %v2620
      %v2725 = vpop.f32.mrf.mxu0
      %v2726 = vadd.f32 %v2670, %v2725
      %2727 = vmatmul.f32.gmra.mxu0 %v2623
      %v2728 = vpop.f32.mrf.mxu0
      %v2729 = vadd.f32 %v2670, %v2728
      %2730 = vmatmul.f32.gmra.mxu0 %v2626
      %v2731 = vpop.f32.mrf.mxu0
      %v2732 = vadd.f32 %v2670, %v2731
      %2733 = vmatmul.f32.gmra.mxu0 %v2629
      %v2734 = vpop.f32.mrf.mxu0
      %v2735 = vadd.f32 %v2670, %v2734
      %2736 = vdwg.mxu0
      %2737 = vmatpush.msra.mxu0 %v2663
      %2738 = vmatpush.msra.mxu0 %v2662
      %2739 = vmatpush.msra.mxu0 %v2661
      %2740 = vmatpush.msra.mxu0 %v2660
      %2741 = vmatpush.msra.mxu0 %v2659
      %2742 = vmatpush.msra.mxu0 %v2658
      %2743 = vmatpush.msra.mxu0 %v2657
      %2744 = vmatpush.msra.mxu0 %v2656
      %2745 = vmatpush.msra.mxu0 %v2655
      %2746 = vmatpush.msra.mxu0 %v2654
      %2747 = vmatpush.msra.mxu0 %v2653
      %2748 = vmatpush.msra.mxu0 %v2652
      %2749 = vmatpush.msra.mxu0 %v2651
      %2750 = vmatpush.msra.mxu0 %v2650
      %2751 = vmatpush.msra.mxu0 %v2649
      %2752 = vmatpush.msra.mxu0 %v2648
      %2753 = vmatmul.f32.gmra.mxu0 %v2609
      %v2754 = vpop.f32.mrf.mxu0
      %v2755 = vadd.f32 %v2714, %v2754
      %2756 = vmatmul.f32.gmra.mxu0 %v2612
      %v2757 = vpop.f32.mrf.mxu0
      %v2758 = vadd.f32 %v2717, %v2757
      %2759 = vmatmul.f32.gmra.mxu0 %v2615
      %v2760 = vpop.f32.mrf.mxu0
      %v2761 = vadd.f32 %v2720, %v2760
      %2762 = vmatmul.f32.gmra.mxu0 %v2618
      %v2763 = vpop.f32.mrf.mxu0
      %v2764 = vadd.f32 %v2723, %v2763
      %2765 = vmatmul.f32.gmra.mxu0 %v2621
      %v2766 = vpop.f32.mrf.mxu0
      %v2767 = vadd.f32 %v2726, %v2766
      %2768 = vmatmul.f32.gmra.mxu0 %v2624
      %v2769 = vpop.f32.mrf.mxu0
      %v2770 = vadd.f32 %v2729, %v2769
      %2771 = vmatmul.f32.gmra.mxu0 %v2627
      %v2772 = vpop.f32.mrf.mxu0
      %v2773 = vadd.f32 %v2732, %v2772
      %2774 = vmatmul.f32.gmra.mxu0 %v2630
      %v2775 = vpop.f32.mrf.mxu0
      %v2776 = vadd.f32 %v2735, %v2775
      %2777 = vdwg.mxu0
      %2778 = vmatpush.msra.mxu0 0.0
      %2779 = vmatpush.msra.mxu0 0.0
      %2780 = vmatpush.msra.mxu0 0.0
      %2781 = vmatpush.msra.mxu0 0.0
      %2782 = vmatpush.msra.mxu0 0.0
      %2783 = vmatpush.msra.mxu0 0.0
      %2784 = vmatpush.msra.mxu0 0.0
      %2785 = vmatpush.msra.mxu0 0.0
      %2786 = vmatpush.msra.mxu0 0.0
      %2787 = vmatpush.msra.mxu0 0.0
      %2788 = vmatpush.msra.mxu0 0.0
      %2789 = vmatpush.msra.mxu0 0.0
      %2790 = vmatpush.msra.mxu0 %v2667
      %2791 = vmatpush.msra.mxu0 %v2666
      %2792 = vmatpush.msra.mxu0 %v2665
      %2793 = vmatpush.msra.mxu0 %v2664
      %2794 = vmatmul.f32.gmra.mxu0 %v2673
      %v2795 = vpop.f32.mrf.mxu0
      %v2796 = vadd.f32 %v2755, %v2795
      %2797 = vmatmul.f32.gmra.mxu0 %v2676
      %v2798 = vpop.f32.mrf.mxu0
      %v2799 = vadd.f32 %v2758, %v2798
      %2800 = vmatmul.f32.gmra.mxu0 %v2679
      %v2801 = vpop.f32.mrf.mxu0
      %v2802 = vadd.f32 %v2761, %v2801
      %2803 = vmatmul.f32.gmra.mxu0 %v2682
      %v2804 = vpop.f32.mrf.mxu0
      %v2805 = vadd.f32 %v2764, %v2804
      %2806 = vmatmul.f32.gmra.mxu0 %v2685
      %v2807 = vpop.f32.mrf.mxu0
      %v2808 = vadd.f32 %v2767, %v2807
      %2809 = vmatmul.f32.gmra.mxu0 %v2688
      %v2810 = vpop.f32.mrf.mxu0
      %v2811 = vadd.f32 %v2770, %v2810
      %2812 = vmatmul.f32.gmra.mxu0 %v2691
      %v2813 = vpop.f32.mrf.mxu0
      %v2814 = vadd.f32 %v2773, %v2813
      %2815 = vmatmul.f32.gmra.mxu0 %v2694
      %v2816 = vpop.f32.mrf.mxu0
      %v2817 = vadd.f32 %v2776, %v2816
      %2818 = vdwg.mxu0
      %v2819 = vmax.f32 %v2796, 0.0
      %v2820 = vmax.f32 %v2799, 0.0
      %v2821 = vmax.f32 %v2802, 0.0
      %v2822 = vmax.f32 %v2805, 0.0
      %v2823 = vmax.f32 %v2808, 0.0
      %v2824 = vmax.f32 %v2811, 0.0
      %v2825 = vmax.f32 %v2814, 0.0
      %v2826 = vmax.f32 %v2817, 0.0
      %2827 = vst.msk [vmem:[#allocation7] sm:$0xff] %vm539, %v2819
      %2828 = vst.msk [vmem:[#allocation7 + $0x8] sm:$0xff] %vm539, %v2820
      %2829 = vst.msk [vmem:[#allocation7 + $0x10] sm:$0xff] %vm539, %v2821
      %2830 = vst.msk [vmem:[#allocation7 + $0x18] sm:$0xff] %vm539, %v2822
      %2831 = vst.msk [vmem:[#allocation7 + $0x20] sm:$0xff] %vm539, %v2823
      %2832 = vst.msk [vmem:[#allocation7 + $0x28] sm:$0xff] %vm539, %v2824
      %2833 = vst.msk [vmem:[#allocation7 + $0x30] sm:$0xff] %vm539, %v2825
      %2834 = vst.msk [vmem:[#allocation7 + $0x38] sm:$0xff] %vm539, %v2826
      %v2835 = vld [vmem:[#allocation7] ss:$2 sm:$0xff]
      %s2836 = scalar_lea.vmem [#allocation7], 16
      %v2837 = vld [vmem:[%s2836] ss:$2 sm:$0xff]
      %s2838 = scalar_lea.vmem [#allocation7], 32
      %v2839 = vld [vmem:[%s2838] ss:$2 sm:$0xff]
      %s2840 = scalar_lea.vmem [#allocation7], 48
      %v2841 = vld [vmem:[%s2840] ss:$2 sm:$0xff]
      %s2842 = scalar_lea.vmem [#allocation7], 1
      %v2843 = vld [vmem:[%s2842] ss:$2 sm:$0xff]
      %s2844 = scalar_lea.vmem [#allocation7], 17
      %v2845 = vld [vmem:[%s2844] ss:$2 sm:$0xff]
      %s2846 = scalar_lea.vmem [#allocation7], 33
      %v2847 = vld [vmem:[%s2846] ss:$2 sm:$0xff]
      %s2848 = scalar_lea.vmem [#allocation7], 49
      %v2849 = vld [vmem:[%s2848] ss:$2 sm:$0xff]
      %v2850 = vmax.f32 %v2835, %v2843
      %v2851 = vmax.f32 %v2837, %v2845
      %v2852 = vmax.f32 %v2839, %v2847
      %v2853 = vmax.f32 %v2841, %v2849
      %2854 = vst.msk [vmem:[#allocation7] sm:$0xff] %vm539, %v2850
      %2855 = vst.msk [vmem:[#allocation7 + $0x8] sm:$0xff] %vm539, %v2851
      %2856 = vst.msk [vmem:[#allocation7 + $0x10] sm:$0xff] %vm539, %v2852
      %2857 = vst.msk [vmem:[#allocation7 + $0x18] sm:$0xff] %vm539, %v2853
      %v2858 = vld [vmem:[#allocation7] sm:$0xf]
      %v2859 = vld [vmem:[#allocation7 + $0x4] sm:$0xf]
      %v2860 = vmax.f32 %v2858, %v2859
      %vm2861 = vcmask 519168
      %2862 = vst.msk [vmem:[#allocation4 + $0x8] sm:$0xf] %vm2861, %v2860
      %v2863 = vld [vmem:[#allocation7 + $0x8] sm:$0xf]
      %v2864 = vld [vmem:[#allocation7 + $0xc] sm:$0xf]
      %v2865 = vmax.f32 %v2863, %v2864
      %2866 = vst.msk [vmem:[#allocation4 + $0xc] sm:$0xf] %vm2861, %v2865
      %v2867 = vld [vmem:[#allocation7 + $0x10] sm:$0xf]
      %v2868 = vld [vmem:[#allocation7 + $0x14] sm:$0xf]
      %v2869 = vmax.f32 %v2867, %v2868
      %2870 = vst.msk [vmem:[#allocation4 + $0x10] sm:$0xf] %vm2861, %v2869
      %v2871 = vld [vmem:[#allocation7 + $0x18] sm:$0xf]
      %v2872 = vld [vmem:[#allocation7 + $0x1c] sm:$0xf]
      %v2873 = vmax.f32 %v2871, %v2872
      %2874 = vst.msk [vmem:[#allocation4 + $0x14] sm:$0xf] %vm2861, %v2873
      %v2875 = vld [vmem:[#allocation4 + $0x3] sm:$0xff]
      %v2876 = vld [vmem:[#allocation4 + $0xb] sm:$0xff]
      %v2877 = vld [vmem:[#allocation4 + $0x4] sm:$0xff]
      %v2878 = vld [vmem:[#allocation4 + $0xc] sm:$0xff]
      %v2879 = vld [vmem:[#allocation4 + $0x5] sm:$0xff]
      %v2880 = vld [vmem:[#allocation4 + $0xd] sm:$0xff]
      %v2881 = vld [vmem:[#allocation4 + $0x7] sm:$0xff]
      %v2882 = vld [vmem:[#allocation4 + $0xf] sm:$0xff]
      %v2883 = vld [vmem:[#allocation4 + $0x8] sm:$0xff]
      %v2884 = vld [vmem:[#allocation4 + $0x10] sm:$0xff]
      %v2885 = vld [vmem:[#allocation4 + $0x9] sm:$0xff]
      %v2886 = vld [vmem:[#allocation4 + $0x11] sm:$0xff]
      %v2887 = vld [vmem:[#allocation4 + $0x13] sm:$0xff]
      %v2888 = vld [vmem:[#allocation4 + $0x14] sm:$0xff]
      %v2889 = vld [vmem:[#allocation4 + $0x15] sm:$0xff]
      %2892 = vrot.lane.b32.xlu0 %v2877, 64
      %v2893 = vpop.permute.xlu0 %2892
      %2894 = vrot.lane.b32.xlu0 %v2878, 64
      %v2895 = vpop.permute.xlu0 %2894
      %2900 = vrot.lane.b32.xlu0 %v2881, 64
      %v2901 = vpop.permute.xlu0 %2900
      %2902 = vrot.lane.b32.xlu0 %v2882, 64
      %v2903 = vpop.permute.xlu0 %2902
      %2908 = vrot.lane.b32.xlu0 %v2885, 64
      %v2909 = vpop.permute.xlu0 %2908
      %2910 = vrot.lane.b32.xlu0 %v2886, 64
      %v2911 = vpop.permute.xlu0 %2910
      %2915 = vrot.lane.b32.xlu0 %v2888, 64
      %v2916 = vpop.permute.xlu0 %2915
      %v2918 = vsel %vm539, %v2875, %v2893
      %v2919 = vsel %vm539, %v2876, %v2895
      %v2920 = vsel %vm539, %v2879, %v2901
      %v2921 = vsel %vm539, %v2880, %v2903
      %v2922 = vsel %vm539, %v2883, %v2909
      %v2923 = vsel %vm539, %v2884, %v2911
      %v2924 = vsel %vm539, %v2887, %v2916
      %v2925 = vld [vmem:[%s13] sm:$0xff]
      %v2926 = vld [vmem:[%s13 + $0x8] sm:$0xff]
      %v2927 = vld [vmem:[%s13 + $0x10] sm:$0xff]
      %v2928 = vld [vmem:[%s13 + $0x18] sm:$0xff]
      %v2929 = vld [vmem:[%s13 + $0x20] sm:$0xff]
      %v2930 = vld [vmem:[%s13 + $0x28] sm:$0xff]
      %v2931 = vld [vmem:[%s13 + $0x30] sm:$0xff]
      %v2932 = vld [vmem:[%s13 + $0x38] sm:$0xff]
      %v2933 = vld [vmem:[%s13 + $0x40] sm:$0xff]
      %v2934 = vld [vmem:[%s13 + $0x48] sm:$0xff]
      %v2935 = vmul.f32 %v2918, %v2925
      %v2936 = vmul.f32 %v2920, %v2926
      %v2937 = vmul.f32 %v2922, %v2927
      %v2938 = vmul.f32 %v2919, %v2928
      %v2939 = vmul.f32 %v2880, %v2929
      %v2940 = vmul.f32 %v2919, %v2930
      %v2941 = vmul.f32 %v2921, %v2931
      %v2942 = vmul.f32 %v2923, %v2932
      %v2943 = vmul.f32 %v2924, %v2933
      %v2944 = vmul.f32 %v2889, %v2934
      %v2945 = vld [vmem:[%s5] sm:$0xff]
      %v2946 = vld [vmem:[%s5 + $0x8] sm:$0xff]
      %v2947 = vld [vmem:[%s5 + $0x10] sm:$0xff]
      %v2948 = vld [vmem:[%s5 + $0x18] sm:$0xff]
      %v2949 = vld [vmem:[%s5 + $0x20] sm:$0xff]
      %v2950 = vld [vmem:[%s5 + $0x28] sm:$0xff]
      %v2951 = vld [vmem:[%s5 + $0x30] sm:$0xff]
      %v2952 = vld [vmem:[%s5 + $0x38] sm:$0xff]
      %v2953 = vld [vmem:[%s5 + $0x40] sm:$0xff]
      %v2954 = vld [vmem:[%s5 + $0x48] sm:$0xff]
      %v2955 = vld [vmem:[%s5 + $0x50] sm:$0xff]
      %v2956 = vld [vmem:[%s5 + $0x58] sm:$0xff]
      %v2957 = vld [vmem:[%s5 + $0x60] sm:$0xff]
      %v2958 = vld [vmem:[%s5 + $0x68] sm:$0xff]
      %v2959 = vld [vmem:[%s5 + $0x70] sm:$0xff]
      %v2960 = vld [vmem:[%s5 + $0x78] sm:$0xff]
      %v2961 = vld [vmem:[%s5 + $0x80] sm:$0xff]
      %v2962 = vld [vmem:[%s5 + $0x88] sm:$0xff]
      %v2963 = vld [vmem:[%s5 + $0x90] sm:$0xff]
      %v2964 = vld [vmem:[%s5 + $0x98] sm:$0xff]
      %v2965 = vld [vmem:[%s5 + $0xa0] sm:$0xff]
      %v2966 = vld [vmem:[%s5 + $0xa8] sm:$0xff]
      %v2967 = vld [vmem:[%s5 + $0xb0] sm:$0xff]
      %v2968 = vld [vmem:[%s5 + $0xb8] sm:$0xff]
      %v2969 = vld [vmem:[%s5 + $0xc0] sm:$0xff]
      %v2970 = vld [vmem:[%s5 + $0xc8] sm:$0xff]
      %v2971 = vld [vmem:[%s5 + $0xd0] sm:$0xff]
      %v2972 = vld [vmem:[%s5 + $0xd8] sm:$0xff]
      %v2973 = vld [vmem:[%s5 + $0xe0] sm:$0xff]
      %v2974 = vld [vmem:[%s5 + $0xe8] sm:$0xff]
      %v2975 = vld [vmem:[%s5 + $0xf0] sm:$0xff]
      %v2976 = vld [vmem:[%s5 + $0xf8] sm:$0xff]
      %v2977 = vld [vmem:[%s5 + $0x100] sm:$0xff]
      %v2978 = vld [vmem:[%s5 + $0x108] sm:$0xff]
      %v2979 = vld [vmem:[%s5 + $0x110] sm:$0xff]
      %v2980 = vld [vmem:[%s5 + $0x118] sm:$0xff]
      %v2981 = vld [vmem:[%s5 + $0x120] sm:$0xff]
      %v2982 = vld [vmem:[%s5 + $0x128] sm:$0xff]
      %v2983 = vld [vmem:[%s5 + $0x130] sm:$0xff]
      %v2984 = vld [vmem:[%s5 + $0x138] sm:$0xff]
      %v2985 = vld [vmem:[%s5 + $0x140] sm:$0xff]
      %v2986 = vld [vmem:[%s5 + $0x148] sm:$0xff]
      %v2987 = vld [vmem:[%s5 + $0x150] sm:$0xff]
      %v2988 = vld [vmem:[%s5 + $0x158] sm:$0xff]
      %v2989 = vld [vmem:[%s5 + $0x160] sm:$0xff]
      %v2990 = vld [vmem:[%s5 + $0x168] sm:$0xff]
      %v2991 = vld [vmem:[%s5 + $0x170] sm:$0xff]
      %v2992 = vld [vmem:[%s5 + $0x178] sm:$0xff]
      %v2993 = vld [vmem:[%s5 + $0x180] sm:$0xff]
      %v2994 = vld [vmem:[%s5 + $0x188] sm:$0xff]
      %v2995 = vld [vmem:[%s5 + $0x190] sm:$0xff]
      %v2996 = vld [vmem:[%s5 + $0x198] sm:$0xff]
      %v2997 = vld [vmem:[%s5 + $0x1a0] sm:$0xff]
      %v2998 = vld [vmem:[%s5 + $0x1a8] sm:$0xff]
      %v2999 = vld [vmem:[%s5 + $0x1b0] sm:$0xff]
      %v3000 = vld [vmem:[%s5 + $0x1b8] sm:$0xff]
      %v3001 = vld [vmem:[%s5 + $0x1c0] sm:$0xff]
      %v3002 = vld [vmem:[%s5 + $0x1c8] sm:$0xff]
      %v3003 = vld [vmem:[%s5 + $0x1d0] sm:$0xff]
      %v3004 = vld [vmem:[%s5 + $0x1d8] sm:$0xff]
      %v3005 = vld [vmem:[%s5 + $0x1e0] sm:$0xff]
      %v3006 = vld [vmem:[%s5 + $0x1e8] sm:$0xff]
      %v3007 = vld [vmem:[%s5 + $0x1f0] sm:$0xff]
      %v3008 = vld [vmem:[%s5 + $0x1f8] sm:$0xff]
      %v3009 = vld [vmem:[%s5 + $0x200] sm:$0xff]
      %v3010 = vld [vmem:[%s5 + $0x208] sm:$0xff]
      %v3011 = vld [vmem:[%s5 + $0x210] sm:$0xff]
      %v3012 = vld [vmem:[%s5 + $0x218] sm:$0xff]
      %v3013 = vld [vmem:[%s5 + $0x220] sm:$0xff]
      %v3014 = vld [vmem:[%s5 + $0x228] sm:$0xff]
      %v3015 = vld [vmem:[%s5 + $0x230] sm:$0xff]
      %v3016 = vld [vmem:[%s5 + $0x238] sm:$0xff]
      %v3017 = vld [vmem:[%s6] sm:$0x1]
      %v3019 = vperm.slane %v3017, 0
      %v3022 = vsel %vm539, %v2939, 0
      %v3025 = vsel %vm539, %v2944, 0
      %3027 = vmatpush.msra.mxu0 %v2960
      %3028 = vmatpush.msra.mxu0 %v2959
      %3029 = vmatpush.msra.mxu0 %v2958
      %3030 = vmatpush.msra.mxu0 %v2957
      %3031 = vmatpush.msra.mxu0 %v2956
      %3032 = vmatpush.msra.mxu0 %v2955
      %3033 = vmatpush.msra.mxu0 %v2954
      %3034 = vmatpush.msra.mxu0 %v2953
      %3035 = vmatpush.msra.mxu0 %v2952
      %3036 = vmatpush.msra.mxu0 %v2951
      %3037 = vmatpush.msra.mxu0 %v2950
      %3038 = vmatpush.msra.mxu0 %v2949
      %3039 = vmatpush.msra.mxu0 %v2948
      %3040 = vmatpush.msra.mxu0 %v2947
      %3041 = vmatpush.msra.mxu0 %v2946
      %3042 = vmatpush.msra.mxu0 %v2945
      %3043 = vmatmul.f32.gmra.mxu0 %v2935
      %v3044 = vpop.f32.mrf.mxu0
      %v3045 = vadd.f32 %v3019, %v3044
      %3046 = vmatmul.f32.gmra.mxu0 %v2940
      %v3047 = vpop.f32.mrf.mxu0
      %v3048 = vadd.f32 %v3019, %v3047
      %3049 = vdwg.mxu0
      %3050 = vmatpush.msra.mxu0 %v2976
      %3051 = vmatpush.msra.mxu0 %v2975
      %3052 = vmatpush.msra.mxu0 %v2974
      %3053 = vmatpush.msra.mxu0 %v2973
      %3054 = vmatpush.msra.mxu0 %v2972
      %3055 = vmatpush.msra.mxu0 %v2971
      %3056 = vmatpush.msra.mxu0 %v2970
      %3057 = vmatpush.msra.mxu0 %v2969
      %3058 = vmatpush.msra.mxu0 %v2968
      %3059 = vmatpush.msra.mxu0 %v2967
      %3060 = vmatpush.msra.mxu0 %v2966
      %3061 = vmatpush.msra.mxu0 %v2965
      %3062 = vmatpush.msra.mxu0 %v2964
      %3063 = vmatpush.msra.mxu0 %v2963
      %3064 = vmatpush.msra.mxu0 %v2962
      %3065 = vmatpush.msra.mxu0 %v2961
      %3066 = vmatmul.f32.gmra.mxu0 %v2936
      %v3067 = vpop.f32.mrf.mxu0
      %v3068 = vadd.f32 %v3045, %v3067
      %3069 = vmatmul.f32.gmra.mxu0 %v2941
      %v3070 = vpop.f32.mrf.mxu0
      %v3071 = vadd.f32 %v3048, %v3070
      %3072 = vdwg.mxu0
      %3073 = vmatpush.msra.mxu0 %v2992
      %3074 = vmatpush.msra.mxu0 %v2991
      %3075 = vmatpush.msra.mxu0 %v2990
      %3076 = vmatpush.msra.mxu0 %v2989
      %3077 = vmatpush.msra.mxu0 %v2988
      %3078 = vmatpush.msra.mxu0 %v2987
      %3079 = vmatpush.msra.mxu0 %v2986
      %3080 = vmatpush.msra.mxu0 %v2985
      %3081 = vmatpush.msra.mxu0 %v2984
      %3082 = vmatpush.msra.mxu0 %v2983
      %3083 = vmatpush.msra.mxu0 %v2982
      %3084 = vmatpush.msra.mxu0 %v2981
      %3085 = vmatpush.msra.mxu0 %v2980
      %3086 = vmatpush.msra.mxu0 %v2979
      %3087 = vmatpush.msra.mxu0 %v2978
      %3088 = vmatpush.msra.mxu0 %v2977
      %3089 = vmatmul.f32.gmra.mxu0 %v2937
      %v3090 = vpop.f32.mrf.mxu0
      %v3091 = vadd.f32 %v3068, %v3090
      %3092 = vmatmul.f32.gmra.mxu0 %v2942
      %v3093 = vpop.f32.mrf.mxu0
      %v3094 = vadd.f32 %v3071, %v3093
      %3095 = vdwg.mxu0
      %3096 = vmatpush.msra.mxu0 %v3008
      %3097 = vmatpush.msra.mxu0 %v3007
      %3098 = vmatpush.msra.mxu0 %v3006
      %3099 = vmatpush.msra.mxu0 %v3005
      %3100 = vmatpush.msra.mxu0 %v3004
      %3101 = vmatpush.msra.mxu0 %v3003
      %3102 = vmatpush.msra.mxu0 %v3002
      %3103 = vmatpush.msra.mxu0 %v3001
      %3104 = vmatpush.msra.mxu0 %v3000
      %3105 = vmatpush.msra.mxu0 %v2999
      %3106 = vmatpush.msra.mxu0 %v2998
      %3107 = vmatpush.msra.mxu0 %v2997
      %3108 = vmatpush.msra.mxu0 %v2996
      %3109 = vmatpush.msra.mxu0 %v2995
      %3110 = vmatpush.msra.mxu0 %v2994
      %3111 = vmatpush.msra.mxu0 %v2993
      %3112 = vmatmul.f32.gmra.mxu0 %v2938
      %v3113 = vpop.f32.mrf.mxu0
      %v3114 = vadd.f32 %v3091, %v3113
      %3115 = vmatmul.f32.gmra.mxu0 %v2943
      %v3116 = vpop.f32.mrf.mxu0
      %v3117 = vadd.f32 %v3094, %v3116
      %3118 = vdwg.mxu0
      %3119 = vmatpush.msra.mxu0 0.0
      %3120 = vmatpush.msra.mxu0 0.0
      %3121 = vmatpush.msra.mxu0 0.0
      %3122 = vmatpush.msra.mxu0 0.0
      %3123 = vmatpush.msra.mxu0 0.0
      %3124 = vmatpush.msra.mxu0 0.0
      %3125 = vmatpush.msra.mxu0 0.0
      %3126 = vmatpush.msra.mxu0 0.0
      %3127 = vmatpush.msra.mxu0 %v3016
      %3128 = vmatpush.msra.mxu0 %v3015
      %3129 = vmatpush.msra.mxu0 %v3014
      %3130 = vmatpush.msra.mxu0 %v3013
      %3131 = vmatpush.msra.mxu0 %v3012
      %3132 = vmatpush.msra.mxu0 %v3011
      %3133 = vmatpush.msra.mxu0 %v3010
      %3134 = vmatpush.msra.mxu0 %v3009
      %3135 = vmatmul.f32.gmra.mxu0 %v3022
      %v3136 = vpop.f32.mrf.mxu0
      %v3137 = vadd.f32 %v3114, %v3136
      %3138 = vmatmul.f32.gmra.mxu0 %v3025
      %v3139 = vpop.f32.mrf.mxu0
      %v3140 = vadd.f32 %v3117, %v3139
      %3141 = vdwg.mxu0
      %v3142 = vmax.f32 %v3137, 0.0
      %v3143 = vmax.f32 %v3140, 0.0
      %v3144 = vld [vmem:[%s7] sm:$0xff]
      %v3145 = vld [vmem:[%s7 + $0x8] sm:$0xff]
      %v3146 = vld [vmem:[%s7 + $0x10] sm:$0xff]
      %v3147 = vld [vmem:[%s7 + $0x18] sm:$0xff]
      %v3148 = vld [vmem:[%s7 + $0x20] sm:$0xff]
      %v3149 = vld [vmem:[%s7 + $0x28] sm:$0xff]
      %v3150 = vld [vmem:[%s7 + $0x30] sm:$0xff]
      %v3151 = vld [vmem:[%s7 + $0x38] sm:$0xff]
      %v3152 = vld [vmem:[%s7 + $0x40] sm:$0xff]
      %v3153 = vld [vmem:[%s7 + $0x48] sm:$0xff]
      %v3154 = vld [vmem:[%s7 + $0x50] sm:$0xff]
      %v3155 = vld [vmem:[%s7 + $0x58] sm:$0xff]
      %v3156 = vld [vmem:[%s7 + $0x60] sm:$0xff]
      %v3157 = vld [vmem:[%s7 + $0x68] sm:$0xff]
      %v3158 = vld [vmem:[%s7 + $0x70] sm:$0xff]
      %v3159 = vld [vmem:[%s7 + $0x78] sm:$0xff]
      %v3160 = vld [vmem:[%s8] sm:$0x1]
      %v3162 = vperm.slane %v3160, 0
      %3164 = vmatpush.msra.mxu0 %v3159
      %3165 = vmatpush.msra.mxu0 %v3158
      %3166 = vmatpush.msra.mxu0 %v3157
      %3167 = vmatpush.msra.mxu0 %v3156
      %3168 = vmatpush.msra.mxu0 %v3155
      %3169 = vmatpush.msra.mxu0 %v3154
      %3170 = vmatpush.msra.mxu0 %v3153
      %3171 = vmatpush.msra.mxu0 %v3152
      %3172 = vmatpush.msra.mxu0 %v3151
      %3173 = vmatpush.msra.mxu0 %v3150
      %3174 = vmatpush.msra.mxu0 %v3149
      %3175 = vmatpush.msra.mxu0 %v3148
      %3176 = vmatpush.msra.mxu0 %v3147
      %3177 = vmatpush.msra.mxu0 %v3146
      %3178 = vmatpush.msra.mxu0 %v3145
      %3179 = vmatpush.msra.mxu0 %v3144
      %3180 = vmatmul.f32.gmra.mxu0 %v3142
      %v3181 = vpop.f32.mrf.mxu0
      %v3182 = vadd.f32 %v3162, %v3181
      %3183 = vmatmul.f32.gmra.mxu0 %v3143
      %v3184 = vpop.f32.mrf.mxu0
      %v3185 = vadd.f32 %v3162, %v3184
      %3186 = vdwg.mxu0
      %v3187 = vmax.f32 %v3182, 0.0
      %v3188 = vmax.f32 %v3185, 0.0
      %v3189 = vld [vmem:[%s15] sm:$0xff]
      %v3190 = vld [vmem:[%s15 + $0x8] sm:$0xff]
      %v3191 = vld [vmem:[%s15 + $0x10] sm:$0xff]
      %v3192 = vld [vmem:[%s15 + $0x18] sm:$0xff]
      %v3193 = vld [vmem:[%s15 + $0x20] sm:$0xff]
      %v3194 = vld [vmem:[%s15 + $0x28] sm:$0xff]
      %v3195 = vld [vmem:[%s15 + $0x30] sm:$0xff]
      %v3196 = vld [vmem:[%s15 + $0x38] sm:$0xff]
      %v3197 = vld [vmem:[%s15 + $0x40] sm:$0xff]
      %v3198 = vld [vmem:[%s15 + $0x48] sm:$0xff]
      %v3199 = vld [vmem:[%s15 + $0x50] sm:$0xff]
      %v3200 = vld [vmem:[%s15 + $0x58] sm:$0xff]
      %v3201 = vld [vmem:[%s15 + $0x60] sm:$0xff]
      %v3202 = vld [vmem:[%s15 + $0x68] sm:$0xff]
      %v3203 = vld [vmem:[%s15 + $0x70] sm:$0xff]
      %v3204 = vld [vmem:[%s15 + $0x78] sm:$0xff]
      %v3205 = vld [vmem:[%s15 + $0x80] sm:$0xff]
      %v3206 = vld [vmem:[%s15 + $0x88] sm:$0xff]
      %v3207 = vld [vmem:[%s15 + $0x90] sm:$0xff]
      %v3208 = vld [vmem:[%s15 + $0x98] sm:$0xff]
      %v3209 = vld [vmem:[%s15 + $0xa0] sm:$0xff]
      %v3210 = vld [vmem:[%s15 + $0xa8] sm:$0xff]
      %v3211 = vld [vmem:[%s15 + $0xb0] sm:$0xff]
      %v3212 = vld [vmem:[%s15 + $0xb8] sm:$0xff]
      %v3213 = vld [vmem:[%s15 + $0xc0] sm:$0xff]
      %v3214 = vld [vmem:[%s15 + $0xc8] sm:$0xff]
      %v3215 = vld [vmem:[%s15 + $0xd0] sm:$0xff]
      %v3216 = vld [vmem:[%s15 + $0xd8] sm:$0xff]
      %v3217 = vld [vmem:[%s15 + $0xe0] sm:$0xff]
      %v3218 = vld [vmem:[%s15 + $0xe8] sm:$0xff]
      %v3219 = vld [vmem:[%s15 + $0xf0] sm:$0xff]
      %v3220 = vld [vmem:[%s15 + $0xf8] sm:$0xff]
      %v3222 = vsel %vm1626, %v3189, 0
      %v3225 = vsel %vm1626, %v3190, 0
      %v3228 = vsel %vm1626, %v3191, 0
      %v3231 = vsel %vm1626, %v3192, 0
      %v3234 = vsel %vm1626, %v3193, 0
      %v3237 = vsel %vm1626, %v3194, 0
      %v3240 = vsel %vm1626, %v3195, 0
      %v3243 = vsel %vm1626, %v3196, 0
      %v3246 = vsel %vm1626, %v3197, 0
      %v3249 = vsel %vm1626, %v3198, 0
      %v3252 = vsel %vm1626, %v3199, 0
      %v3255 = vsel %vm1626, %v3200, 0
      %v3258 = vsel %vm1626, %v3201, 0
      %v3261 = vsel %vm1626, %v3202, 0
      %v3264 = vsel %vm1626, %v3203, 0
      %v3267 = vsel %vm1626, %v3204, 0
      %v3270 = vsel %vm1626, %v3205, 0
      %v3273 = vsel %vm1626, %v3206, 0
      %v3276 = vsel %vm1626, %v3207, 0
      %v3279 = vsel %vm1626, %v3208, 0
      %v3282 = vsel %vm1626, %v3209, 0
      %v3285 = vsel %vm1626, %v3210, 0
      %v3288 = vsel %vm1626, %v3211, 0
      %v3291 = vsel %vm1626, %v3212, 0
      %v3294 = vsel %vm1626, %v3213, 0
      %v3297 = vsel %vm1626, %v3214, 0
      %v3300 = vsel %vm1626, %v3215, 0
      %v3303 = vsel %vm1626, %v3216, 0
      %v3306 = vsel %vm1626, %v3217, 0
      %v3309 = vsel %vm1626, %v3218, 0
      %v3312 = vsel %vm1626, %v3219, 0
      %v3315 = vsel %vm1626, %v3220, 0
      %3317 = vmatpush.msra.mxu0 0.0
      %3318 = vmatpush.msra.mxu0 0.0
      %3319 = vmatpush.msra.mxu0 0.0
      %3320 = vmatpush.msra.mxu0 0.0
      %3321 = vmatpush.msra.mxu0 0.0
      %3322 = vmatpush.msra.mxu0 0.0
      %3323 = vmatpush.msra.mxu0 0.0
      %3324 = vmatpush.msra.mxu0 0.0
      %3325 = vmatpush.msra.mxu0 0.0
      %3326 = vmatpush.msra.mxu0 0.0
      %3327 = vmatpush.msra.mxu0 0.0
      %3328 = vmatpush.msra.mxu0 0.0
      %3329 = vmatpush.msra.mxu0 0.0
      %3330 = vmatpush.msra.mxu0 0.0
      %3331 = vmatpush.msra.mxu0 %v3188
      %3332 = vmatpush.msra.mxu0 %v3187
      %3333 = vmatmul.f32.gmra.mxu0 %v3222
      %v3334 = vpop.f32.mrf.mxu0
      %v3335 = vadd.f32 0.0, %v3334
      %3336 = vmatmul.f32.gmra.mxu0 %v3225
      %v3337 = vpop.f32.mrf.mxu0
      %v3338 = vadd.f32 0.0, %v3337
      %3339 = vmatmul.f32.gmra.mxu0 %v3228
      %v3340 = vpop.f32.mrf.mxu0
      %v3341 = vadd.f32 0.0, %v3340
      %3342 = vmatmul.f32.gmra.mxu0 %v3231
      %v3343 = vpop.f32.mrf.mxu0
      %v3344 = vadd.f32 0.0, %v3343
      %3345 = vmatmul.f32.gmra.mxu0 %v3234
      %v3346 = vpop.f32.mrf.mxu0
      %v3347 = vadd.f32 0.0, %v3346
      %3348 = vmatmul.f32.gmra.mxu0 %v3237
      %v3349 = vpop.f32.mrf.mxu0
      %v3350 = vadd.f32 0.0, %v3349
      %3351 = vmatmul.f32.gmra.mxu0 %v3240
      %v3352 = vpop.f32.mrf.mxu0
      %v3353 = vadd.f32 0.0, %v3352
      %3354 = vmatmul.f32.gmra.mxu0 %v3243
      %v3355 = vpop.f32.mrf.mxu0
      %v3356 = vadd.f32 0.0, %v3355
      %3357 = vmatmul.f32.gmra.mxu0 %v3246
      %v3358 = vpop.f32.mrf.mxu0
      %v3359 = vadd.f32 0.0, %v3358
      %3360 = vmatmul.f32.gmra.mxu0 %v3249
      %v3361 = vpop.f32.mrf.mxu0
      %v3362 = vadd.f32 0.0, %v3361
      %3363 = vmatmul.f32.gmra.mxu0 %v3252
      %v3364 = vpop.f32.mrf.mxu0
      %v3365 = vadd.f32 0.0, %v3364
      %3366 = vmatmul.f32.gmra.mxu0 %v3255
      %v3367 = vpop.f32.mrf.mxu0
      %v3368 = vadd.f32 0.0, %v3367
      %3369 = vmatmul.f32.gmra.mxu0 %v3258
      %v3370 = vpop.f32.mrf.mxu0
      %v3371 = vadd.f32 0.0, %v3370
      %3372 = vmatmul.f32.gmra.mxu0 %v3261
      %v3373 = vpop.f32.mrf.mxu0
      %v3374 = vadd.f32 0.0, %v3373
      %3375 = vmatmul.f32.gmra.mxu0 %v3264
      %v3376 = vpop.f32.mrf.mxu0
      %v3377 = vadd.f32 0.0, %v3376
      %3378 = vmatmul.f32.gmra.mxu0 %v3267
      %v3379 = vpop.f32.mrf.mxu0
      %v3380 = vadd.f32 0.0, %v3379
      %3381 = vmatmul.f32.gmra.mxu0 %v3270
      %v3382 = vpop.f32.mrf.mxu0
      %v3383 = vadd.f32 0.0, %v3382
      %3384 = vmatmul.f32.gmra.mxu0 %v3273
      %v3385 = vpop.f32.mrf.mxu0
      %v3386 = vadd.f32 0.0, %v3385
      %3387 = vmatmul.f32.gmra.mxu0 %v3276
      %v3388 = vpop.f32.mrf.mxu0
      %v3389 = vadd.f32 0.0, %v3388
      %3390 = vmatmul.f32.gmra.mxu0 %v3279
      %v3391 = vpop.f32.mrf.mxu0
      %v3392 = vadd.f32 0.0, %v3391
      %3393 = vmatmul.f32.gmra.mxu0 %v3282
      %v3394 = vpop.f32.mrf.mxu0
      %v3395 = vadd.f32 0.0, %v3394
      %3396 = vmatmul.f32.gmra.mxu0 %v3285
      %v3397 = vpop.f32.mrf.mxu0
      %v3398 = vadd.f32 0.0, %v3397
      %3399 = vmatmul.f32.gmra.mxu0 %v3288
      %v3400 = vpop.f32.mrf.mxu0
      %v3401 = vadd.f32 0.0, %v3400
      %3402 = vmatmul.f32.gmra.mxu0 %v3291
      %v3403 = vpop.f32.mrf.mxu0
      %v3404 = vadd.f32 0.0, %v3403
      %3405 = vmatmul.f32.gmra.mxu0 %v3294
      %v3406 = vpop.f32.mrf.mxu0
      %v3407 = vadd.f32 0.0, %v3406
      %3408 = vmatmul.f32.gmra.mxu0 %v3297
      %v3409 = vpop.f32.mrf.mxu0
      %v3410 = vadd.f32 0.0, %v3409
      %3411 = vmatmul.f32.gmra.mxu0 %v3300
      %v3412 = vpop.f32.mrf.mxu0
      %v3413 = vadd.f32 0.0, %v3412
      %3414 = vmatmul.f32.gmra.mxu0 %v3303
      %v3415 = vpop.f32.mrf.mxu0
      %v3416 = vadd.f32 0.0, %v3415
      %3417 = vmatmul.f32.gmra.mxu0 %v3306
      %v3418 = vpop.f32.mrf.mxu0
      %v3419 = vadd.f32 0.0, %v3418
      %3420 = vmatmul.f32.gmra.mxu0 %v3309
      %v3421 = vpop.f32.mrf.mxu0
      %v3422 = vadd.f32 0.0, %v3421
      %3423 = vmatmul.f32.gmra.mxu0 %v3312
      %v3424 = vpop.f32.mrf.mxu0
      %v3425 = vadd.f32 0.0, %v3424
      %3426 = vmatmul.f32.gmra.mxu0 %v3315
      %v3427 = vpop.f32.mrf.mxu0
      %v3428 = vadd.f32 0.0, %v3427
      %3429 = vdwg.mxu0
      %3430 = vst.msk [vmem:[#allocation5 + $0x18] sm:$0xff] %vm539, %v3335
      %3431 = vst.msk [vmem:[#allocation5 + $0x20] sm:$0xff] %vm539, %v3338
      %3432 = vst.msk [vmem:[#allocation5 + $0x28] sm:$0xff] %vm539, %v3341
      %3433 = vst.msk [vmem:[#allocation5 + $0x30] sm:$0xff] %vm539, %v3344
      %3434 = vst.msk [vmem:[#allocation5 + $0x38] sm:$0xff] %vm539, %v3347
      %3435 = vst.msk [vmem:[#allocation5 + $0x40] sm:$0xff] %vm539, %v3350
      %3436 = vst.msk [vmem:[#allocation5 + $0x48] sm:$0xff] %vm539, %v3353
      %3437 = vst.msk [vmem:[#allocation5 + $0x50] sm:$0xff] %vm539, %v3356
      %3438 = vst.msk [vmem:[#allocation5 + $0x58] sm:$0xff] %vm539, %v3359
      %3439 = vst.msk [vmem:[#allocation5 + $0x60] sm:$0xff] %vm539, %v3362
      %3440 = vst.msk [vmem:[#allocation5 + $0x68] sm:$0xff] %vm539, %v3365
      %3441 = vst.msk [vmem:[#allocation5 + $0x70] sm:$0xff] %vm539, %v3368
      %3442 = vst.msk [vmem:[#allocation5 + $0x78] sm:$0xff] %vm539, %v3371
      %3443 = vst.msk [vmem:[#allocation5 + $0x80] sm:$0xff] %vm539, %v3374
      %3444 = vst.msk [vmem:[#allocation5 + $0x88] sm:$0xff] %vm539, %v3377
      %3445 = vst.msk [vmem:[#allocation5 + $0x90] sm:$0xff] %vm539, %v3380
      %3446 = vst.msk [vmem:[#allocation5 + $0x98] sm:$0xff] %vm539, %v3383
      %3447 = vst.msk [vmem:[#allocation5 + $0xa0] sm:$0xff] %vm539, %v3386
      %3448 = vst.msk [vmem:[#allocation5 + $0xa8] sm:$0xff] %vm539, %v3389
      %3449 = vst.msk [vmem:[#allocation5 + $0xb0] sm:$0xff] %vm539, %v3392
      %3450 = vst.msk [vmem:[#allocation5 + $0xb8] sm:$0xff] %vm539, %v3395
      %3451 = vst.msk [vmem:[#allocation5 + $0xc0] sm:$0xff] %vm539, %v3398
      %3452 = vst.msk [vmem:[#allocation5 + $0xc8] sm:$0xff] %vm539, %v3401
      %3453 = vst.msk [vmem:[#allocation5 + $0xd0] sm:$0xff] %vm539, %v3404
      %3454 = vst.msk [vmem:[#allocation5 + $0xd8] sm:$0xff] %vm539, %v3407
      %3455 = vst.msk [vmem:[#allocation5 + $0xe0] sm:$0xff] %vm539, %v3410
      %3456 = vst.msk [vmem:[#allocation5 + $0xe8] sm:$0xff] %vm539, %v3413
      %3457 = vst.msk [vmem:[#allocation5 + $0xf0] sm:$0xff] %vm539, %v3416
      %3458 = vst.msk [vmem:[#allocation5 + $0xf8] sm:$0xff] %vm539, %v3419
      %3459 = vst.msk [vmem:[#allocation5 + $0x100] sm:$0xff] %vm539, %v3422
      %3460 = vst.msk [vmem:[#allocation5 + $0x108] sm:$0xff] %vm539, %v3425
      %3461 = vst.msk [vmem:[#allocation5 + $0x110] sm:$0xff] %vm539, %v3428
      %v3462 = vld [vmem:[#allocation5 + $0x7] sm:$0xff]
      %v3463 = vld [vmem:[#allocation5 + $0xf] sm:$0xff]
      %v3464 = vld [vmem:[#allocation5 + $0x17] sm:$0xff]
      %v3465 = vld [vmem:[#allocation5 + $0x1f] sm:$0xff]
      %v3466 = vld [vmem:[#allocation5 + $0x27] sm:$0xff]
      %v3467 = vld [vmem:[#allocation5 + $0x2f] sm:$0xff]
      %v3468 = vld [vmem:[#allocation5 + $0x37] sm:$0xff]
      %v3469 = vld [vmem:[#allocation5 + $0x3f] sm:$0xff]
      %v3470 = vld [vmem:[#allocation5 + $0x47] sm:$0xff]
      %v3471 = vld [vmem:[#allocation5 + $0x4f] sm:$0xff]
      %v3472 = vld [vmem:[#allocation5 + $0x57] sm:$0xff]
      %v3473 = vld [vmem:[#allocation5 + $0x5f] sm:$0xff]
      %v3474 = vld [vmem:[#allocation5 + $0x67] sm:$0xff]
      %v3475 = vld [vmem:[#allocation5 + $0x6f] sm:$0xff]
      %v3476 = vld [vmem:[#allocation5 + $0x77] sm:$0xff]
      %v3477 = vld [vmem:[#allocation5 + $0x7f] sm:$0xff]
      %v3478 = vld [vmem:[#allocation5 + $0x87] sm:$0xff]
      %v3479 = vld [vmem:[#allocation5 + $0x8f] sm:$0xff]
      %v3480 = vld [vmem:[#allocation5 + $0x97] sm:$0xff]
      %v3481 = vld [vmem:[#allocation5 + $0x9f] sm:$0xff]
      %v3482 = vld [vmem:[#allocation5 + $0xa7] sm:$0xff]
      %v3483 = vld [vmem:[#allocation5 + $0xaf] sm:$0xff]
      %v3484 = vld [vmem:[#allocation5 + $0xb7] sm:$0xff]
      %v3485 = vld [vmem:[#allocation5 + $0xbf] sm:$0xff]
      %v3486 = vld [vmem:[#allocation5 + $0xc7] sm:$0xff]
      %v3487 = vld [vmem:[#allocation5 + $0xcf] sm:$0xff]
      %v3488 = vld [vmem:[#allocation5 + $0xd7] sm:$0xff]
      %v3489 = vld [vmem:[#allocation5 + $0xdf] sm:$0xff]
      %v3490 = vld [vmem:[#allocation5 + $0xe7] sm:$0xff]
      %v3491 = vld [vmem:[#allocation5 + $0xef] sm:$0xff]
      %v3492 = vld [vmem:[#allocation5 + $0xf7] sm:$0xff]
      %v3493 = vld [vmem:[#allocation5 + $0xff] sm:$0xff]
      %v3494 = vld [vmem:[#allocation5 + $0x8] sm:$0xff]
      %v3495 = vld [vmem:[#allocation5 + $0x10] sm:$0xff]
      %v3496 = vld [vmem:[#allocation5 + $0x18] sm:$0xff]
      %v3497 = vld [vmem:[#allocation5 + $0x20] sm:$0xff]
      %v3498 = vld [vmem:[#allocation5 + $0x28] sm:$0xff]
      %v3499 = vld [vmem:[#allocation5 + $0x30] sm:$0xff]
      %v3500 = vld [vmem:[#allocation5 + $0x38] sm:$0xff]
      %v3501 = vld [vmem:[#allocation5 + $0x40] sm:$0xff]
      %v3502 = vld [vmem:[#allocation5 + $0x48] sm:$0xff]
      %v3503 = vld [vmem:[#allocation5 + $0x50] sm:$0xff]
      %v3504 = vld [vmem:[#allocation5 + $0x58] sm:$0xff]
      %v3505 = vld [vmem:[#allocation5 + $0x60] sm:$0xff]
      %v3506 = vld [vmem:[#allocation5 + $0x68] sm:$0xff]
      %v3507 = vld [vmem:[#allocation5 + $0x70] sm:$0xff]
      %v3508 = vld [vmem:[#allocation5 + $0x78] sm:$0xff]
      %v3509 = vld [vmem:[#allocation5 + $0x80] sm:$0xff]
      %v3510 = vld [vmem:[#allocation5 + $0x88] sm:$0xff]
      %v3511 = vld [vmem:[#allocation5 + $0x90] sm:$0xff]
      %v3512 = vld [vmem:[#allocation5 + $0x98] sm:$0xff]
      %v3513 = vld [vmem:[#allocation5 + $0xa0] sm:$0xff]
      %v3514 = vld [vmem:[#allocation5 + $0xa8] sm:$0xff]
      %v3515 = vld [vmem:[#allocation5 + $0xb0] sm:$0xff]
      %v3516 = vld [vmem:[#allocation5 + $0xb8] sm:$0xff]
      %v3517 = vld [vmem:[#allocation5 + $0xc0] sm:$0xff]
      %v3518 = vld [vmem:[#allocation5 + $0xc8] sm:$0xff]
      %v3519 = vld [vmem:[#allocation5 + $0xd0] sm:$0xff]
      %v3520 = vld [vmem:[#allocation5 + $0xd8] sm:$0xff]
      %v3521 = vld [vmem:[#allocation5 + $0xe0] sm:$0xff]
      %v3522 = vld [vmem:[#allocation5 + $0xe8] sm:$0xff]
      %v3523 = vld [vmem:[#allocation5 + $0xf0] sm:$0xff]
      %v3524 = vld [vmem:[#allocation5 + $0xf8] sm:$0xff]
      %v3525 = vld [vmem:[#allocation5 + $0x100] sm:$0xff]
      %v3526 = vld [vmem:[#allocation5 + $0x9] sm:$0xff]
      %v3527 = vld [vmem:[#allocation5 + $0x11] sm:$0xff]
      %v3528 = vld [vmem:[#allocation5 + $0x19] sm:$0xff]
      %v3529 = vld [vmem:[#allocation5 + $0x21] sm:$0xff]
      %v3530 = vld [vmem:[#allocation5 + $0x29] sm:$0xff]
      %v3531 = vld [vmem:[#allocation5 + $0x31] sm:$0xff]
      %v3532 = vld [vmem:[#allocation5 + $0x39] sm:$0xff]
      %v3533 = vld [vmem:[#allocation5 + $0x41] sm:$0xff]
      %v3534 = vld [vmem:[#allocation5 + $0x49] sm:$0xff]
      %v3535 = vld [vmem:[#allocation5 + $0x51] sm:$0xff]
      %v3536 = vld [vmem:[#allocation5 + $0x59] sm:$0xff]
      %v3537 = vld [vmem:[#allocation5 + $0x61] sm:$0xff]
      %v3538 = vld [vmem:[#allocation5 + $0x69] sm:$0xff]
      %v3539 = vld [vmem:[#allocation5 + $0x71] sm:$0xff]
      %v3540 = vld [vmem:[#allocation5 + $0x79] sm:$0xff]
      %v3541 = vld [vmem:[#allocation5 + $0x81] sm:$0xff]
      %v3542 = vld [vmem:[#allocation5 + $0x89] sm:$0xff]
      %v3543 = vld [vmem:[#allocation5 + $0x91] sm:$0xff]
      %v3544 = vld [vmem:[#allocation5 + $0x99] sm:$0xff]
      %v3545 = vld [vmem:[#allocation5 + $0xa1] sm:$0xff]
      %v3546 = vld [vmem:[#allocation5 + $0xa9] sm:$0xff]
      %v3547 = vld [vmem:[#allocation5 + $0xb1] sm:$0xff]
      %v3548 = vld [vmem:[#allocation5 + $0xb9] sm:$0xff]
      %v3549 = vld [vmem:[#allocation5 + $0xc1] sm:$0xff]
      %v3550 = vld [vmem:[#allocation5 + $0xc9] sm:$0xff]
      %v3551 = vld [vmem:[#allocation5 + $0xd1] sm:$0xff]
      %v3552 = vld [vmem:[#allocation5 + $0xd9] sm:$0xff]
      %v3553 = vld [vmem:[#allocation5 + $0xe1] sm:$0xff]
      %v3554 = vld [vmem:[#allocation5 + $0xe9] sm:$0xff]
      %v3555 = vld [vmem:[#allocation5 + $0xf1] sm:$0xff]
      %v3556 = vld [vmem:[#allocation5 + $0xf9] sm:$0xff]
      %v3557 = vld [vmem:[#allocation5 + $0x101] sm:$0xff]
      %v3558 = vld [vmem:[#allocation5 + $0x107] sm:$0xff]
      %v3559 = vld [vmem:[#allocation5 + $0x10f] sm:$0xff]
      %v3560 = vld [vmem:[#allocation5 + $0x108] sm:$0xff]
      %v3561 = vld [vmem:[#allocation5 + $0x110] sm:$0xff]
      %v3562 = vld [vmem:[#allocation5 + $0x109] sm:$0xff]
      %v3563 = vld [vmem:[#allocation5 + $0x111] sm:$0xff]
      %v3564 = vld [vmem:[#allocation5 + $0x117] sm:$0xff]
      %v3565 = vld [vmem:[#allocation5 + $0x11f] sm:$0xff]
      %v3566 = vld [vmem:[#allocation5 + $0x118] sm:$0xff]
      %v3567 = vld [vmem:[#allocation5 + $0x120] sm:$0xff]
      %v3568 = vld [vmem:[#allocation5 + $0x119] sm:$0xff]
      %v3569 = vld [vmem:[#allocation5 + $0x121] sm:$0xff]
      %3602 = vrot.lane.b32.xlu0 %v3494, 64
      %v3603 = vpop.permute.xlu0 %3602
      %3604 = vrot.lane.b32.xlu0 %v3495, 64
      %v3605 = vpop.permute.xlu0 %3604
      %3606 = vrot.lane.b32.xlu0 %v3496, 64
      %v3607 = vpop.permute.xlu0 %3606
      %3608 = vrot.lane.b32.xlu0 %v3497, 64
      %v3609 = vpop.permute.xlu0 %3608
      %3610 = vrot.lane.b32.xlu0 %v3498, 64
      %v3611 = vpop.permute.xlu0 %3610
      %3612 = vrot.lane.b32.xlu0 %v3499, 64
      %v3613 = vpop.permute.xlu0 %3612
      %3614 = vrot.lane.b32.xlu0 %v3500, 64
      %v3615 = vpop.permute.xlu0 %3614
      %3616 = vrot.lane.b32.xlu0 %v3501, 64
      %v3617 = vpop.permute.xlu0 %3616
      %3618 = vrot.lane.b32.xlu0 %v3502, 64
      %v3619 = vpop.permute.xlu0 %3618
      %3620 = vrot.lane.b32.xlu0 %v3503, 64
      %v3621 = vpop.permute.xlu0 %3620
      %3622 = vrot.lane.b32.xlu0 %v3504, 64
      %v3623 = vpop.permute.xlu0 %3622
      %3624 = vrot.lane.b32.xlu0 %v3505, 64
      %v3625 = vpop.permute.xlu0 %3624
      %3626 = vrot.lane.b32.xlu0 %v3506, 64
      %v3627 = vpop.permute.xlu0 %3626
      %3628 = vrot.lane.b32.xlu0 %v3507, 64
      %v3629 = vpop.permute.xlu0 %3628
      %3630 = vrot.lane.b32.xlu0 %v3508, 64
      %v3631 = vpop.permute.xlu0 %3630
      %3632 = vrot.lane.b32.xlu0 %v3509, 64
      %v3633 = vpop.permute.xlu0 %3632
      %3634 = vrot.lane.b32.xlu0 %v3510, 64
      %v3635 = vpop.permute.xlu0 %3634
      %3636 = vrot.lane.b32.xlu0 %v3511, 64
      %v3637 = vpop.permute.xlu0 %3636
      %3638 = vrot.lane.b32.xlu0 %v3512, 64
      %v3639 = vpop.permute.xlu0 %3638
      %3640 = vrot.lane.b32.xlu0 %v3513, 64
      %v3641 = vpop.permute.xlu0 %3640
      %3642 = vrot.lane.b32.xlu0 %v3514, 64
      %v3643 = vpop.permute.xlu0 %3642
      %3644 = vrot.lane.b32.xlu0 %v3515, 64
      %v3645 = vpop.permute.xlu0 %3644
      %3646 = vrot.lane.b32.xlu0 %v3516, 64
      %v3647 = vpop.permute.xlu0 %3646
      %3648 = vrot.lane.b32.xlu0 %v3517, 64
      %v3649 = vpop.permute.xlu0 %3648
      %3650 = vrot.lane.b32.xlu0 %v3518, 64
      %v3651 = vpop.permute.xlu0 %3650
      %3652 = vrot.lane.b32.xlu0 %v3519, 64
      %v3653 = vpop.permute.xlu0 %3652
      %3654 = vrot.lane.b32.xlu0 %v3520, 64
      %v3655 = vpop.permute.xlu0 %3654
      %3656 = vrot.lane.b32.xlu0 %v3521, 64
      %v3657 = vpop.permute.xlu0 %3656
      %3658 = vrot.lane.b32.xlu0 %v3522, 64
      %v3659 = vpop.permute.xlu0 %3658
      %3660 = vrot.lane.b32.xlu0 %v3523, 64
      %v3661 = vpop.permute.xlu0 %3660
      %3662 = vrot.lane.b32.xlu0 %v3524, 64
      %v3663 = vpop.permute.xlu0 %3662
      %3664 = vrot.lane.b32.xlu0 %v3525, 64
      %v3665 = vpop.permute.xlu0 %3664
      %3730 = vrot.lane.b32.xlu0 %v3464, 64
      %v3731 = vpop.permute.xlu0 %3730
      %3732 = vrot.lane.b32.xlu0 %v3465, 64
      %v3733 = vpop.permute.xlu0 %3732
      %3734 = vrot.lane.b32.xlu0 %v3466, 64
      %v3735 = vpop.permute.xlu0 %3734
      %3736 = vrot.lane.b32.xlu0 %v3467, 64
      %v3737 = vpop.permute.xlu0 %3736
      %3738 = vrot.lane.b32.xlu0 %v3468, 64
      %v3739 = vpop.permute.xlu0 %3738
      %3740 = vrot.lane.b32.xlu0 %v3469, 64
      %v3741 = vpop.permute.xlu0 %3740
      %3742 = vrot.lane.b32.xlu0 %v3470, 64
      %v3743 = vpop.permute.xlu0 %3742
      %3744 = vrot.lane.b32.xlu0 %v3471, 64
      %v3745 = vpop.permute.xlu0 %3744
      %3746 = vrot.lane.b32.xlu0 %v3472, 64
      %v3747 = vpop.permute.xlu0 %3746
      %3748 = vrot.lane.b32.xlu0 %v3473, 64
      %v3749 = vpop.permute.xlu0 %3748
      %3750 = vrot.lane.b32.xlu0 %v3474, 64
      %v3751 = vpop.permute.xlu0 %3750
      %3752 = vrot.lane.b32.xlu0 %v3475, 64
      %v3753 = vpop.permute.xlu0 %3752
      %3754 = vrot.lane.b32.xlu0 %v3476, 64
      %v3755 = vpop.permute.xlu0 %3754
      %3756 = vrot.lane.b32.xlu0 %v3477, 64
      %v3757 = vpop.permute.xlu0 %3756
      %3758 = vrot.lane.b32.xlu0 %v3478, 64
      %v3759 = vpop.permute.xlu0 %3758
      %3760 = vrot.lane.b32.xlu0 %v3479, 64
      %v3761 = vpop.permute.xlu0 %3760
      %3762 = vrot.lane.b32.xlu0 %v3480, 64
      %v3763 = vpop.permute.xlu0 %3762
      %3764 = vrot.lane.b32.xlu0 %v3481, 64
      %v3765 = vpop.permute.xlu0 %3764
      %3766 = vrot.lane.b32.xlu0 %v3482, 64
      %v3767 = vpop.permute.xlu0 %3766
      %3768 = vrot.lane.b32.xlu0 %v3483, 64
      %v3769 = vpop.permute.xlu0 %3768
      %3770 = vrot.lane.b32.xlu0 %v3484, 64
      %v3771 = vpop.permute.xlu0 %3770
      %3772 = vrot.lane.b32.xlu0 %v3485, 64
      %v3773 = vpop.permute.xlu0 %3772
      %3774 = vrot.lane.b32.xlu0 %v3486, 64
      %v3775 = vpop.permute.xlu0 %3774
      %3776 = vrot.lane.b32.xlu0 %v3487, 64
      %v3777 = vpop.permute.xlu0 %3776
      %3778 = vrot.lane.b32.xlu0 %v3488, 64
      %v3779 = vpop.permute.xlu0 %3778
      %3780 = vrot.lane.b32.xlu0 %v3489, 64
      %v3781 = vpop.permute.xlu0 %3780
      %3782 = vrot.lane.b32.xlu0 %v3490, 64
      %v3783 = vpop.permute.xlu0 %3782
      %3784 = vrot.lane.b32.xlu0 %v3491, 64
      %v3785 = vpop.permute.xlu0 %3784
      %3786 = vrot.lane.b32.xlu0 %v3492, 64
      %v3787 = vpop.permute.xlu0 %3786
      %3788 = vrot.lane.b32.xlu0 %v3493, 64
      %v3789 = vpop.permute.xlu0 %3788
      %3790 = vrot.lane.b32.xlu0 %v3558, 64
      %v3791 = vpop.permute.xlu0 %3790
      %3792 = vrot.lane.b32.xlu0 %v3559, 64
      %v3793 = vpop.permute.xlu0 %3792
      %3858 = vrot.lane.b32.xlu0 %v3528, 64
      %v3859 = vpop.permute.xlu0 %3858
      %3860 = vrot.lane.b32.xlu0 %v3529, 64
      %v3861 = vpop.permute.xlu0 %3860
      %3862 = vrot.lane.b32.xlu0 %v3530, 64
      %v3863 = vpop.permute.xlu0 %3862
      %3864 = vrot.lane.b32.xlu0 %v3531, 64
      %v3865 = vpop.permute.xlu0 %3864
      %3866 = vrot.lane.b32.xlu0 %v3532, 64
      %v3867 = vpop.permute.xlu0 %3866
      %3868 = vrot.lane.b32.xlu0 %v3533, 64
      %v3869 = vpop.permute.xlu0 %3868
      %3870 = vrot.lane.b32.xlu0 %v3534, 64
      %v3871 = vpop.permute.xlu0 %3870
      %3872 = vrot.lane.b32.xlu0 %v3535, 64
      %v3873 = vpop.permute.xlu0 %3872
      %3874 = vrot.lane.b32.xlu0 %v3536, 64
      %v3875 = vpop.permute.xlu0 %3874
      %3876 = vrot.lane.b32.xlu0 %v3537, 64
      %v3877 = vpop.permute.xlu0 %3876
      %3878 = vrot.lane.b32.xlu0 %v3538, 64
      %v3879 = vpop.permute.xlu0 %3878
      %3880 = vrot.lane.b32.xlu0 %v3539, 64
      %v3881 = vpop.permute.xlu0 %3880
      %3882 = vrot.lane.b32.xlu0 %v3540, 64
      %v3883 = vpop.permute.xlu0 %3882
      %3884 = vrot.lane.b32.xlu0 %v3541, 64
      %v3885 = vpop.permute.xlu0 %3884
      %3886 = vrot.lane.b32.xlu0 %v3542, 64
      %v3887 = vpop.permute.xlu0 %3886
      %3888 = vrot.lane.b32.xlu0 %v3543, 64
      %v3889 = vpop.permute.xlu0 %3888
      %3890 = vrot.lane.b32.xlu0 %v3544, 64
      %v3891 = vpop.permute.xlu0 %3890
      %3892 = vrot.lane.b32.xlu0 %v3545, 64
      %v3893 = vpop.permute.xlu0 %3892
      %3894 = vrot.lane.b32.xlu0 %v3546, 64
      %v3895 = vpop.permute.xlu0 %3894
      %3896 = vrot.lane.b32.xlu0 %v3547, 64
      %v3897 = vpop.permute.xlu0 %3896
      %3898 = vrot.lane.b32.xlu0 %v3548, 64
      %v3899 = vpop.permute.xlu0 %3898
      %3900 = vrot.lane.b32.xlu0 %v3549, 64
      %v3901 = vpop.permute.xlu0 %3900
      %3902 = vrot.lane.b32.xlu0 %v3550, 64
      %v3903 = vpop.permute.xlu0 %3902
      %3904 = vrot.lane.b32.xlu0 %v3551, 64
      %v3905 = vpop.permute.xlu0 %3904
      %3906 = vrot.lane.b32.xlu0 %v3552, 64
      %v3907 = vpop.permute.xlu0 %3906
      %3908 = vrot.lane.b32.xlu0 %v3553, 64
      %v3909 = vpop.permute.xlu0 %3908
      %3910 = vrot.lane.b32.xlu0 %v3554, 64
      %v3911 = vpop.permute.xlu0 %3910
      %3912 = vrot.lane.b32.xlu0 %v3555, 64
      %v3913 = vpop.permute.xlu0 %3912
      %3914 = vrot.lane.b32.xlu0 %v3556, 64
      %v3915 = vpop.permute.xlu0 %3914
      %3916 = vrot.lane.b32.xlu0 %v3557, 64
      %v3917 = vpop.permute.xlu0 %3916
      %3918 = vrot.lane.b32.xlu0 %v3562, 64
      %v3919 = vpop.permute.xlu0 %3918
      %3920 = vrot.lane.b32.xlu0 %v3563, 64
      %v3921 = vpop.permute.xlu0 %3920
      %3958 = vrot.lane.b32.xlu0 %v3560, 64
      %v3959 = vpop.permute.xlu0 %3958
      %3960 = vrot.lane.b32.xlu0 %v3561, 64
      %v3961 = vpop.permute.xlu0 %3960
      %3962 = vrot.lane.b32.xlu0 %v3566, 64
      %v3963 = vpop.permute.xlu0 %3962
      %3964 = vrot.lane.b32.xlu0 %v3567, 64
      %v3965 = vpop.permute.xlu0 %3964
      %v3970 = vsel %vm539, %v3462, %v3603
      %v3971 = vsel %vm539, %v3463, %v3605
      %v3972 = vsel %vm539, %v3464, %v3607
      %v3973 = vsel %vm539, %v3465, %v3609
      %v3974 = vsel %vm539, %v3466, %v3611
      %v3975 = vsel %vm539, %v3467, %v3613
      %v3976 = vsel %vm539, %v3468, %v3615
      %v3977 = vsel %vm539, %v3469, %v3617
      %v3978 = vsel %vm539, %v3470, %v3619
      %v3979 = vsel %vm539, %v3471, %v3621
      %v3980 = vsel %vm539, %v3472, %v3623
      %v3981 = vsel %vm539, %v3473, %v3625
      %v3982 = vsel %vm539, %v3474, %v3627
      %v3983 = vsel %vm539, %v3475, %v3629
      %v3984 = vsel %vm539, %v3476, %v3631
      %v3985 = vsel %vm539, %v3477, %v3633
      %v3986 = vsel %vm539, %v3478, %v3635
      %v3987 = vsel %vm539, %v3479, %v3637
      %v3988 = vsel %vm539, %v3480, %v3639
      %v3989 = vsel %vm539, %v3481, %v3641
      %v3990 = vsel %vm539, %v3482, %v3643
      %v3991 = vsel %vm539, %v3483, %v3645
      %v3992 = vsel %vm539, %v3484, %v3647
      %v3993 = vsel %vm539, %v3485, %v3649
      %v3994 = vsel %vm539, %v3486, %v3651
      %v3995 = vsel %vm539, %v3487, %v3653
      %v3996 = vsel %vm539, %v3488, %v3655
      %v3997 = vsel %vm539, %v3489, %v3657
      %v3998 = vsel %vm539, %v3490, %v3659
      %v3999 = vsel %vm539, %v3491, %v3661
      %v4000 = vsel %vm539, %v3492, %v3663
      %v4001 = vsel %vm539, %v3493, %v3665
      %v4002 = vsel %vm539, %v3526, %v3731
      %v4003 = vsel %vm539, %v3527, %v3733
      %v4004 = vsel %vm539, %v3528, %v3735
      %v4005 = vsel %vm539, %v3529, %v3737
      %v4006 = vsel %vm539, %v3530, %v3739
      %v4007 = vsel %vm539, %v3531, %v3741
      %v4008 = vsel %vm539, %v3532, %v3743
      %v4009 = vsel %vm539, %v3533, %v3745
      %v4010 = vsel %vm539, %v3534, %v3747
      %v4011 = vsel %vm539, %v3535, %v3749
      %v4012 = vsel %vm539, %v3536, %v3751
      %v4013 = vsel %vm539, %v3537, %v3753
      %v4014 = vsel %vm539, %v3538, %v3755
      %v4015 = vsel %vm539, %v3539, %v3757
      %v4016 = vsel %vm539, %v3540, %v3759
      %v4017 = vsel %vm539, %v3541, %v3761
      %v4018 = vsel %vm539, %v3542, %v3763
      %v4019 = vsel %vm539, %v3543, %v3765
      %v4020 = vsel %vm539, %v3544, %v3767
      %v4021 = vsel %vm539, %v3545, %v3769
      %v4022 = vsel %vm539, %v3546, %v3771
      %v4023 = vsel %vm539, %v3547, %v3773
      %v4024 = vsel %vm539, %v3548, %v3775
      %v4025 = vsel %vm539, %v3549, %v3777
      %v4026 = vsel %vm539, %v3550, %v3779
      %v4027 = vsel %vm539, %v3551, %v3781
      %v4028 = vsel %vm539, %v3552, %v3783
      %v4029 = vsel %vm539, %v3553, %v3785
      %v4030 = vsel %vm539, %v3554, %v3787
      %v4031 = vsel %vm539, %v3555, %v3789
      %v4032 = vsel %vm539, %v3556, %v3791
      %v4033 = vsel %vm539, %v3557, %v3793
      %v4034 = vsel %vm539, %v3496, %v3859
      %v4035 = vsel %vm539, %v3497, %v3861
      %v4036 = vsel %vm539, %v3498, %v3863
      %v4037 = vsel %vm539, %v3499, %v3865
      %v4038 = vsel %vm539, %v3500, %v3867
      %v4039 = vsel %vm539, %v3501, %v3869
      %v4040 = vsel %vm539, %v3502, %v3871
      %v4041 = vsel %vm539, %v3503, %v3873
      %v4042 = vsel %vm539, %v3504, %v3875
      %v4043 = vsel %vm539, %v3505, %v3877
      %v4044 = vsel %vm539, %v3506, %v3879
      %v4045 = vsel %vm539, %v3507, %v3881
      %v4046 = vsel %vm539, %v3508, %v3883
      %v4047 = vsel %vm539, %v3509, %v3885
      %v4048 = vsel %vm539, %v3510, %v3887
      %v4049 = vsel %vm539, %v3511, %v3889
      %v4050 = vsel %vm539, %v3512, %v3891
      %v4051 = vsel %vm539, %v3513, %v3893
      %v4052 = vsel %vm539, %v3514, %v3895
      %v4053 = vsel %vm539, %v3515, %v3897
      %v4054 = vsel %vm539, %v3516, %v3899
      %v4055 = vsel %vm539, %v3517, %v3901
      %v4056 = vsel %vm539, %v3518, %v3903
      %v4057 = vsel %vm539, %v3519, %v3905
      %v4058 = vsel %vm539, %v3520, %v3907
      %v4059 = vsel %vm539, %v3521, %v3909
      %v4060 = vsel %vm539, %v3522, %v3911
      %v4061 = vsel %vm539, %v3523, %v3913
      %v4062 = vsel %vm539, %v3524, %v3915
      %v4063 = vsel %vm539, %v3525, %v3917
      %v4064 = vsel %vm539, %v3560, %v3919
      %v4065 = vsel %vm539, %v3561, %v3921
      %v4066 = vsel %vm539, %v3558, %v3959
      %v4067 = vsel %vm539, %v3559, %v3961
      %v4068 = vsel %vm539, %v3564, %v3963
      %v4069 = vsel %vm539, %v3565, %v3965
      %v4070 = vld [vmem:[%s14] sm:$0xff]
      %v4071 = vld [vmem:[%s14 + $0x8] sm:$0xff]
      %v4072 = vld [vmem:[%s14 + $0x10] sm:$0xff]
      %v4073 = vld [vmem:[%s14 + $0x18] sm:$0xff]
      %v4074 = vld [vmem:[%s14 + $0x20] sm:$0xff]
      %v4075 = vld [vmem:[%s14 + $0x28] sm:$0xff]
      %v4076 = vld [vmem:[%s14 + $0x30] sm:$0xff]
      %v4077 = vld [vmem:[%s14 + $0x38] sm:$0xff]
      %v4078 = vld [vmem:[%s14 + $0x40] sm:$0xff]
      %v4079 = vld [vmem:[%s14 + $0x48] sm:$0xff]
      %v4080 = vld [vmem:[%s14 + $0x50] sm:$0xff]
      %v4081 = vld [vmem:[%s14 + $0x58] sm:$0xff]
      %v4082 = vld [vmem:[%s14 + $0x60] sm:$0xff]
      %v4083 = vld [vmem:[%s14 + $0x68] sm:$0xff]
      %v4084 = vld [vmem:[%s14 + $0x70] sm:$0xff]
      %v4085 = vld [vmem:[%s14 + $0x78] sm:$0xff]
      %v4086 = vld [vmem:[%s14 + $0x80] sm:$0xff]
      %v4087 = vld [vmem:[%s14 + $0x88] sm:$0xff]
      %v4088 = vld [vmem:[%s14 + $0x90] sm:$0xff]
      %v4089 = vld [vmem:[%s14 + $0x98] sm:$0xff]
      %v4090 = vld [vmem:[%s14 + $0xa0] sm:$0xff]
      %v4091 = vld [vmem:[%s14 + $0xa8] sm:$0xff]
      %v4092 = vld [vmem:[%s14 + $0xb0] sm:$0xff]
      %v4093 = vld [vmem:[%s14 + $0xb8] sm:$0xff]
      %v4094 = vld [vmem:[%s14 + $0xc0] sm:$0xff]
      %v4095 = vld [vmem:[%s14 + $0xc8] sm:$0xff]
      %v4096 = vld [vmem:[%s14 + $0xd0] sm:$0xff]
      %v4097 = vld [vmem:[%s14 + $0xd8] sm:$0xff]
      %v4098 = vld [vmem:[%s14 + $0xe0] sm:$0xff]
      %v4099 = vld [vmem:[%s14 + $0xe8] sm:$0xff]
      %v4100 = vld [vmem:[%s14 + $0xf0] sm:$0xff]
      %v4101 = vld [vmem:[%s14 + $0xf8] sm:$0xff]
      %v4102 = vld [vmem:[%s14 + $0x100] sm:$0xff]
      %v4103 = vld [vmem:[%s14 + $0x108] sm:$0xff]
      %v4104 = vld [vmem:[%s14 + $0x110] sm:$0xff]
      %v4105 = vld [vmem:[%s14 + $0x118] sm:$0xff]
      %v4106 = vld [vmem:[%s14 + $0x120] sm:$0xff]
      %v4107 = vld [vmem:[%s14 + $0x128] sm:$0xff]
      %v4108 = vld [vmem:[%s14 + $0x130] sm:$0xff]
      %v4109 = vld [vmem:[%s14 + $0x138] sm:$0xff]
      %v4110 = vld [vmem:[%s14 + $0x140] sm:$0xff]
      %v4111 = vld [vmem:[%s14 + $0x148] sm:$0xff]
      %v4112 = vld [vmem:[%s14 + $0x150] sm:$0xff]
      %v4113 = vld [vmem:[%s14 + $0x158] sm:$0xff]
      %v4114 = vld [vmem:[%s14 + $0x160] sm:$0xff]
      %v4115 = vld [vmem:[%s14 + $0x168] sm:$0xff]
      %v4116 = vld [vmem:[%s14 + $0x170] sm:$0xff]
      %v4117 = vld [vmem:[%s14 + $0x178] sm:$0xff]
      %v4118 = vld [vmem:[%s14 + $0x180] sm:$0xff]
      %v4119 = vld [vmem:[%s14 + $0x188] sm:$0xff]
      %v4120 = vld [vmem:[%s14 + $0x190] sm:$0xff]
      %v4121 = vld [vmem:[%s14 + $0x198] sm:$0xff]
      %v4122 = vld [vmem:[%s14 + $0x1a0] sm:$0xff]
      %v4123 = vld [vmem:[%s14 + $0x1a8] sm:$0xff]
      %v4124 = vld [vmem:[%s14 + $0x1b0] sm:$0xff]
      %v4125 = vld [vmem:[%s14 + $0x1b8] sm:$0xff]
      %v4126 = vld [vmem:[%s14 + $0x1c0] sm:$0xff]
      %v4127 = vld [vmem:[%s14 + $0x1c8] sm:$0xff]
      %v4128 = vld [vmem:[%s14 + $0x1d0] sm:$0xff]
      %v4129 = vld [vmem:[%s14 + $0x1d8] sm:$0xff]
      %v4130 = vld [vmem:[%s14 + $0x1e0] sm:$0xff]
      %v4131 = vld [vmem:[%s14 + $0x1e8] sm:$0xff]
      %v4132 = vld [vmem:[%s14 + $0x1f0] sm:$0xff]
      %v4133 = vld [vmem:[%s14 + $0x1f8] sm:$0xff]
      %v4134 = vld [vmem:[%s14 + $0x200] sm:$0xff]
      %v4135 = vld [vmem:[%s14 + $0x208] sm:$0xff]
      %v4136 = vld [vmem:[%s14 + $0x210] sm:$0xff]
      %v4137 = vld [vmem:[%s14 + $0x218] sm:$0xff]
      %v4138 = vld [vmem:[%s14 + $0x220] sm:$0xff]
      %v4139 = vld [vmem:[%s14 + $0x228] sm:$0xff]
      %v4140 = vld [vmem:[%s14 + $0x230] sm:$0xff]
      %v4141 = vld [vmem:[%s14 + $0x238] sm:$0xff]
      %v4142 = vld [vmem:[%s14 + $0x240] sm:$0xff]
      %v4143 = vld [vmem:[%s14 + $0x248] sm:$0xff]
      %v4144 = vld [vmem:[%s14 + $0x250] sm:$0xff]
      %v4145 = vld [vmem:[%s14 + $0x258] sm:$0xff]
      %v4146 = vld [vmem:[%s14 + $0x260] sm:$0xff]
      %v4147 = vld [vmem:[%s14 + $0x268] sm:$0xff]
      %v4148 = vld [vmem:[%s14 + $0x270] sm:$0xff]
      %v4149 = vld [vmem:[%s14 + $0x278] sm:$0xff]
      %v4150 = vld [vmem:[%s14 + $0x280] sm:$0xff]
      %v4151 = vld [vmem:[%s14 + $0x288] sm:$0xff]
      %v4152 = vld [vmem:[%s14 + $0x290] sm:$0xff]
      %v4153 = vld [vmem:[%s14 + $0x298] sm:$0xff]
      %v4154 = vld [vmem:[%s14 + $0x2a0] sm:$0xff]
      %v4155 = vld [vmem:[%s14 + $0x2a8] sm:$0xff]
      %v4156 = vld [vmem:[%s14 + $0x2b0] sm:$0xff]
      %v4157 = vld [vmem:[%s14 + $0x2b8] sm:$0xff]
      %v4158 = vld [vmem:[%s14 + $0x2c0] sm:$0xff]
      %v4159 = vld [vmem:[%s14 + $0x2c8] sm:$0xff]
      %v4160 = vld [vmem:[%s14 + $0x2d0] sm:$0xff]
      %v4161 = vld [vmem:[%s14 + $0x2d8] sm:$0xff]
      %v4162 = vld [vmem:[%s14 + $0x2e0] sm:$0xff]
      %v4163 = vld [vmem:[%s14 + $0x2e8] sm:$0xff]
      %v4164 = vld [vmem:[%s14 + $0x2f0] sm:$0xff]
      %v4165 = vld [vmem:[%s14 + $0x2f8] sm:$0xff]
      %v4166 = vld [vmem:[%s14 + $0x300] sm:$0xff]
      %v4167 = vld [vmem:[%s14 + $0x308] sm:$0xff]
      %v4168 = vld [vmem:[%s14 + $0x310] sm:$0xff]
      %v4169 = vld [vmem:[%s14 + $0x318] sm:$0xff]
      %v4170 = vld [vmem:[%s14 + $0x320] sm:$0xff]
      %v4171 = vld [vmem:[%s14 + $0x328] sm:$0xff]
      %v4172 = vld [vmem:[%s14 + $0x330] sm:$0xff]
      %v4173 = vld [vmem:[%s14 + $0x338] sm:$0xff]
      %v4174 = vld [vmem:[%s14 + $0x340] sm:$0xff]
      %v4175 = vld [vmem:[%s14 + $0x348] sm:$0xff]
      %v4176 = vld [vmem:[%s14 + $0x350] sm:$0xff]
      %v4177 = vld [vmem:[%s14 + $0x358] sm:$0xff]
      %v4178 = vld [vmem:[%s14 + $0x360] sm:$0xff]
      %v4179 = vld [vmem:[%s14 + $0x368] sm:$0xff]
      %v4180 = vld [vmem:[%s14 + $0x370] sm:$0xff]
      %v4181 = vld [vmem:[%s14 + $0x378] sm:$0xff]
      %v4182 = vld [vmem:[%s14 + $0x380] sm:$0xff]
      %v4183 = vld [vmem:[%s14 + $0x388] sm:$0xff]
      %v4184 = vld [vmem:[%s14 + $0x390] sm:$0xff]
      %v4185 = vld [vmem:[%s14 + $0x398] sm:$0xff]
      %v4186 = vld [vmem:[%s14 + $0x3a0] sm:$0xff]
      %v4187 = vld [vmem:[%s14 + $0x3a8] sm:$0xff]
      %v4188 = vld [vmem:[%s14 + $0x3b0] sm:$0xff]
      %v4189 = vld [vmem:[%s14 + $0x3b8] sm:$0xff]
      %v4190 = vld [vmem:[%s14 + $0x3c0] sm:$0xff]
      %v4191 = vld [vmem:[%s14 + $0x3c8] sm:$0xff]
      %v4192 = vld [vmem:[%s14 + $0x3d0] sm:$0xff]
      %v4193 = vld [vmem:[%s14 + $0x3d8] sm:$0xff]
      %v4194 = vld [vmem:[%s14 + $0x3e0] sm:$0xff]
      %v4195 = vld [vmem:[%s14 + $0x3e8] sm:$0xff]
      %v4196 = vld [vmem:[%s14 + $0x3f0] sm:$0xff]
      %v4197 = vld [vmem:[%s14 + $0x3f8] sm:$0xff]
      %v4198 = vld [vmem:[%s14 + $0x400] sm:$0xff]
      %v4199 = vld [vmem:[%s14 + $0x408] sm:$0xff]
      %v4200 = vld [vmem:[%s14 + $0x410] sm:$0xff]
      %v4201 = vld [vmem:[%s14 + $0x418] sm:$0xff]
      %v4202 = vld [vmem:[%s14 + $0x420] sm:$0xff]
      %v4203 = vld [vmem:[%s14 + $0x428] sm:$0xff]
      %v4204 = vld [vmem:[%s14 + $0x430] sm:$0xff]
      %v4205 = vld [vmem:[%s14 + $0x438] sm:$0xff]
      %v4206 = vld [vmem:[%s14 + $0x440] sm:$0xff]
      %v4207 = vld [vmem:[%s14 + $0x448] sm:$0xff]
      %v4208 = vld [vmem:[%s14 + $0x450] sm:$0xff]
      %v4209 = vld [vmem:[%s14 + $0x458] sm:$0xff]
      %v4210 = vld [vmem:[%s14 + $0x460] sm:$0xff]
      %v4211 = vld [vmem:[%s14 + $0x468] sm:$0xff]
      %v4212 = vld [vmem:[%s14 + $0x470] sm:$0xff]
      %v4213 = vld [vmem:[%s14 + $0x478] sm:$0xff]
      %v4214 = vld [vmem:[%s14 + $0x480] sm:$0xff]
      %v4215 = vld [vmem:[%s14 + $0x488] sm:$0xff]
      %v4216 = vld [vmem:[%s14 + $0x490] sm:$0xff]
      %v4217 = vld [vmem:[%s14 + $0x498] sm:$0xff]
      %v4218 = vld [vmem:[%s14 + $0x4a0] sm:$0xff]
      %v4219 = vld [vmem:[%s14 + $0x4a8] sm:$0xff]
      %v4220 = vld [vmem:[%s14 + $0x4b0] sm:$0xff]
      %v4221 = vld [vmem:[%s14 + $0x4b8] sm:$0xff]
      %v4222 = vld [vmem:[%s14 + $0x4c0] sm:$0xff]
      %v4223 = vld [vmem:[%s14 + $0x4c8] sm:$0xff]
      %v4224 = vld [vmem:[%s14 + $0x4d0] sm:$0xff]
      %v4225 = vld [vmem:[%s14 + $0x4d8] sm:$0xff]
      %v4226 = vld [vmem:[%s14 + $0x4e0] sm:$0xff]
      %v4227 = vld [vmem:[%s14 + $0x4e8] sm:$0xff]
      %v4228 = vld [vmem:[%s14 + $0x4f0] sm:$0xff]
      %v4229 = vld [vmem:[%s14 + $0x4f8] sm:$0xff]
      %v4230 = vmul.f32 %v3970, %v4070
      %v4231 = vmul.f32 %v4002, %v4071
      %v4232 = vmul.f32 %v4034, %v4072
      %v4233 = vmul.f32 %v3974, %v4073
      %v4234 = vmul.f32 %v3530, %v4074
      %v4235 = vmul.f32 %v3971, %v4075
      %v4236 = vmul.f32 %v4003, %v4076
      %v4237 = vmul.f32 %v4035, %v4077
      %v4238 = vmul.f32 %v3975, %v4078
      %v4239 = vmul.f32 %v3531, %v4079
      %v4240 = vmul.f32 %v3972, %v4080
      %v4241 = vmul.f32 %v4004, %v4081
      %v4242 = vmul.f32 %v4036, %v4082
      %v4243 = vmul.f32 %v3976, %v4083
      %v4244 = vmul.f32 %v3532, %v4084
      %v4245 = vmul.f32 %v3973, %v4085
      %v4246 = vmul.f32 %v4005, %v4086
      %v4247 = vmul.f32 %v4037, %v4087
      %v4248 = vmul.f32 %v3977, %v4088
      %v4249 = vmul.f32 %v3533, %v4089
      %v4250 = vmul.f32 %v3974, %v4090
      %v4251 = vmul.f32 %v4006, %v4091
      %v4252 = vmul.f32 %v4038, %v4092
      %v4253 = vmul.f32 %v3978, %v4093
      %v4254 = vmul.f32 %v3534, %v4094
      %v4255 = vmul.f32 %v3975, %v4095
      %v4256 = vmul.f32 %v4007, %v4096
      %v4257 = vmul.f32 %v4039, %v4097
      %v4258 = vmul.f32 %v3979, %v4098
      %v4259 = vmul.f32 %v3535, %v4099
      %v4260 = vmul.f32 %v3976, %v4100
      %v4261 = vmul.f32 %v4008, %v4101
      %v4262 = vmul.f32 %v4040, %v4102
      %v4263 = vmul.f32 %v3980, %v4103
      %v4264 = vmul.f32 %v3536, %v4104
      %v4265 = vmul.f32 %v3977, %v4105
      %v4266 = vmul.f32 %v4009, %v4106
      %v4267 = vmul.f32 %v4041, %v4107
      %v4268 = vmul.f32 %v3981, %v4108
      %v4269 = vmul.f32 %v3537, %v4109
      %v4270 = vmul.f32 %v3978, %v4110
      %v4271 = vmul.f32 %v4010, %v4111
      %v4272 = vmul.f32 %v4042, %v4112
      %v4273 = vmul.f32 %v3982, %v4113
      %v4274 = vmul.f32 %v3538, %v4114
      %v4275 = vmul.f32 %v3979, %v4115
      %v4276 = vmul.f32 %v4011, %v4116
      %v4277 = vmul.f32 %v4043, %v4117
      %v4278 = vmul.f32 %v3983, %v4118
      %v4279 = vmul.f32 %v3539, %v4119
      %v4280 = vmul.f32 %v3980, %v4120
      %v4281 = vmul.f32 %v4012, %v4121
      %v4282 = vmul.f32 %v4044, %v4122
      %v4283 = vmul.f32 %v3984, %v4123
      %v4284 = vmul.f32 %v3540, %v4124
      %v4285 = vmul.f32 %v3981, %v4125
      %v4286 = vmul.f32 %v4013, %v4126
      %v4287 = vmul.f32 %v4045, %v4127
      %v4288 = vmul.f32 %v3985, %v4128
      %v4289 = vmul.f32 %v3541, %v4129
      %v4290 = vmul.f32 %v3982, %v4130
      %v4291 = vmul.f32 %v4014, %v4131
      %v4292 = vmul.f32 %v4046, %v4132
      %v4293 = vmul.f32 %v3986, %v4133
      %v4294 = vmul.f32 %v3542, %v4134
      %v4295 = vmul.f32 %v3983, %v4135
      %v4296 = vmul.f32 %v4015, %v4136
      %v4297 = vmul.f32 %v4047, %v4137
      %v4298 = vmul.f32 %v3987, %v4138
      %v4299 = vmul.f32 %v3543, %v4139
      %v4300 = vmul.f32 %v3984, %v4140
      %v4301 = vmul.f32 %v4016, %v4141
      %v4302 = vmul.f32 %v4048, %v4142
      %v4303 = vmul.f32 %v3988, %v4143
      %v4304 = vmul.f32 %v3544, %v4144
      %v4305 = vmul.f32 %v3985, %v4145
      %v4306 = vmul.f32 %v4017, %v4146
      %v4307 = vmul.f32 %v4049, %v4147
      %v4308 = vmul.f32 %v3989, %v4148
      %v4309 = vmul.f32 %v3545, %v4149
      %v4310 = vmul.f32 %v3986, %v4150
      %v4311 = vmul.f32 %v4018, %v4151
      %v4312 = vmul.f32 %v4050, %v4152
      %v4313 = vmul.f32 %v3990, %v4153
      %v4314 = vmul.f32 %v3546, %v4154
      %v4315 = vmul.f32 %v3987, %v4155
      %v4316 = vmul.f32 %v4019, %v4156
      %v4317 = vmul.f32 %v4051, %v4157
      %v4318 = vmul.f32 %v3991, %v4158
      %v4319 = vmul.f32 %v3547, %v4159
      %v4320 = vmul.f32 %v3988, %v4160
      %v4321 = vmul.f32 %v4020, %v4161
      %v4322 = vmul.f32 %v4052, %v4162
      %v4323 = vmul.f32 %v3992, %v4163
      %v4324 = vmul.f32 %v3548, %v4164
      %v4325 = vmul.f32 %v3989, %v4165
      %v4326 = vmul.f32 %v4021, %v4166
      %v4327 = vmul.f32 %v4053, %v4167
      %v4328 = vmul.f32 %v3993, %v4168
      %v4329 = vmul.f32 %v3549, %v4169
      %v4330 = vmul.f32 %v3990, %v4170
      %v4331 = vmul.f32 %v4022, %v4171
      %v4332 = vmul.f32 %v4054, %v4172
      %v4333 = vmul.f32 %v3994, %v4173
      %v4334 = vmul.f32 %v3550, %v4174
      %v4335 = vmul.f32 %v3991, %v4175
      %v4336 = vmul.f32 %v4023, %v4176
      %v4337 = vmul.f32 %v4055, %v4177
      %v4338 = vmul.f32 %v3995, %v4178
      %v4339 = vmul.f32 %v3551, %v4179
      %v4340 = vmul.f32 %v3992, %v4180
      %v4341 = vmul.f32 %v4024, %v4181
      %v4342 = vmul.f32 %v4056, %v4182
      %v4343 = vmul.f32 %v3996, %v4183
      %v4344 = vmul.f32 %v3552, %v4184
      %v4345 = vmul.f32 %v3993, %v4185
      %v4346 = vmul.f32 %v4025, %v4186
      %v4347 = vmul.f32 %v4057, %v4187
      %v4348 = vmul.f32 %v3997, %v4188
      %v4349 = vmul.f32 %v3553, %v4189
      %v4350 = vmul.f32 %v3994, %v4190
      %v4351 = vmul.f32 %v4026, %v4191
      %v4352 = vmul.f32 %v4058, %v4192
      %v4353 = vmul.f32 %v3998, %v4193
      %v4354 = vmul.f32 %v3554, %v4194
      %v4355 = vmul.f32 %v3995, %v4195
      %v4356 = vmul.f32 %v4027, %v4196
      %v4357 = vmul.f32 %v4059, %v4197
      %v4358 = vmul.f32 %v3999, %v4198
      %v4359 = vmul.f32 %v3555, %v4199
      %v4360 = vmul.f32 %v3996, %v4200
      %v4361 = vmul.f32 %v4028, %v4201
      %v4362 = vmul.f32 %v4060, %v4202
      %v4363 = vmul.f32 %v4000, %v4203
      %v4364 = vmul.f32 %v3556, %v4204
      %v4365 = vmul.f32 %v3997, %v4205
      %v4366 = vmul.f32 %v4029, %v4206
      %v4367 = vmul.f32 %v4061, %v4207
      %v4368 = vmul.f32 %v4001, %v4208
      %v4369 = vmul.f32 %v3557, %v4209
      %v4370 = vmul.f32 %v3998, %v4210
      %v4371 = vmul.f32 %v4030, %v4211
      %v4372 = vmul.f32 %v4062, %v4212
      %v4373 = vmul.f32 %v4066, %v4213
      %v4374 = vmul.f32 %v3562, %v4214
      %v4375 = vmul.f32 %v3999, %v4215
      %v4376 = vmul.f32 %v4031, %v4216
      %v4377 = vmul.f32 %v4063, %v4217
      %v4378 = vmul.f32 %v4067, %v4218
      %v4379 = vmul.f32 %v3563, %v4219
      %v4380 = vmul.f32 %v4000, %v4220
      %v4381 = vmul.f32 %v4032, %v4221
      %v4382 = vmul.f32 %v4064, %v4222
      %v4383 = vmul.f32 %v4068, %v4223
      %v4384 = vmul.f32 %v3568, %v4224
      %v4385 = vmul.f32 %v4001, %v4225
      %v4386 = vmul.f32 %v4033, %v4226
      %v4387 = vmul.f32 %v4065, %v4227
      %v4388 = vmul.f32 %v4069, %v4228
      %v4389 = vmul.f32 %v3569, %v4229
      %v4390 = vld [vmem:[%s9] sm:$0xff]
      %v4391 = vld [vmem:[%s9 + $0x8] sm:$0xff]
      %v4392 = vld [vmem:[%s9 + $0x10] sm:$0xff]
      %v4393 = vld [vmem:[%s9 + $0x18] sm:$0xff]
      %v4394 = vld [vmem:[%s9 + $0x20] sm:$0xff]
      %v4395 = vld [vmem:[%s9 + $0x28] sm:$0xff]
      %v4396 = vld [vmem:[%s9 + $0x30] sm:$0xff]
      %v4397 = vld [vmem:[%s9 + $0x38] sm:$0xff]
      %v4398 = vld [vmem:[%s9 + $0x40] sm:$0xff]
      %v4399 = vld [vmem:[%s9 + $0x48] sm:$0xff]
      %v4400 = vld [vmem:[%s9 + $0x50] sm:$0xff]
      %v4401 = vld [vmem:[%s9 + $0x58] sm:$0xff]
      %v4402 = vld [vmem:[%s9 + $0x60] sm:$0xff]
      %v4403 = vld [vmem:[%s9 + $0x68] sm:$0xff]
      %v4404 = vld [vmem:[%s9 + $0x70] sm:$0xff]
      %v4405 = vld [vmem:[%s9 + $0x78] sm:$0xff]
      %v4406 = vld [vmem:[%s9 + $0x80] sm:$0xff]
      %v4407 = vld [vmem:[%s9 + $0x88] sm:$0xff]
      %v4408 = vld [vmem:[%s9 + $0x90] sm:$0xff]
      %v4409 = vld [vmem:[%s9 + $0x98] sm:$0xff]
      %v4410 = vld [vmem:[%s9 + $0xa0] sm:$0xff]
      %v4411 = vld [vmem:[%s9 + $0xa8] sm:$0xff]
      %v4412 = vld [vmem:[%s9 + $0xb0] sm:$0xff]
      %v4413 = vld [vmem:[%s9 + $0xb8] sm:$0xff]
      %v4414 = vld [vmem:[%s9 + $0xc0] sm:$0xff]
      %v4415 = vld [vmem:[%s9 + $0xc8] sm:$0xff]
      %v4416 = vld [vmem:[%s9 + $0xd0] sm:$0xff]
      %v4417 = vld [vmem:[%s9 + $0xd8] sm:$0xff]
      %v4418 = vld [vmem:[%s9 + $0xe0] sm:$0xff]
      %v4419 = vld [vmem:[%s9 + $0xe8] sm:$0xff]
      %v4420 = vld [vmem:[%s9 + $0xf0] sm:$0xff]
      %v4421 = vld [vmem:[%s9 + $0xf8] sm:$0xff]
      %v4422 = vld [vmem:[%s9 + $0x100] sm:$0xff]
      %v4423 = vld [vmem:[%s9 + $0x108] sm:$0xff]
      %v4424 = vld [vmem:[%s9 + $0x110] sm:$0xff]
      %v4425 = vld [vmem:[%s9 + $0x118] sm:$0xff]
      %v4426 = vld [vmem:[%s9 + $0x120] sm:$0xff]
      %v4427 = vld [vmem:[%s9 + $0x128] sm:$0xff]
      %v4428 = vld [vmem:[%s9 + $0x130] sm:$0xff]
      %v4429 = vld [vmem:[%s9 + $0x138] sm:$0xff]
      %v4430 = vld [vmem:[%s9 + $0x140] sm:$0xff]
      %v4431 = vld [vmem:[%s9 + $0x148] sm:$0xff]
      %v4432 = vld [vmem:[%s9 + $0x150] sm:$0xff]
      %v4433 = vld [vmem:[%s9 + $0x158] sm:$0xff]
      %v4434 = vld [vmem:[%s9 + $0x160] sm:$0xff]
      %v4435 = vld [vmem:[%s9 + $0x168] sm:$0xff]
      %v4436 = vld [vmem:[%s9 + $0x170] sm:$0xff]
      %v4437 = vld [vmem:[%s9 + $0x178] sm:$0xff]
      %v4438 = vld [vmem:[%s9 + $0x180] sm:$0xff]
      %v4439 = vld [vmem:[%s9 + $0x188] sm:$0xff]
      %v4440 = vld [vmem:[%s9 + $0x190] sm:$0xff]
      %v4441 = vld [vmem:[%s9 + $0x198] sm:$0xff]
      %v4442 = vld [vmem:[%s9 + $0x1a0] sm:$0xff]
      %v4443 = vld [vmem:[%s9 + $0x1a8] sm:$0xff]
      %v4444 = vld [vmem:[%s9 + $0x1b0] sm:$0xff]
      %v4445 = vld [vmem:[%s9 + $0x1b8] sm:$0xff]
      %v4446 = vld [vmem:[%s9 + $0x1c0] sm:$0xff]
      %v4447 = vld [vmem:[%s9 + $0x1c8] sm:$0xff]
      %v4448 = vld [vmem:[%s9 + $0x1d0] sm:$0xff]
      %v4449 = vld [vmem:[%s9 + $0x1d8] sm:$0xff]
      %v4450 = vld [vmem:[%s9 + $0x1e0] sm:$0xff]
      %v4451 = vld [vmem:[%s9 + $0x1e8] sm:$0xff]
      %v4452 = vld [vmem:[%s9 + $0x1f0] sm:$0xff]
      %v4453 = vld [vmem:[%s9 + $0x1f8] sm:$0xff]
      %v4454 = vld [vmem:[%s9 + $0x200] sm:$0xff]
      %v4455 = vld [vmem:[%s9 + $0x208] sm:$0xff]
      %v4456 = vld [vmem:[%s9 + $0x210] sm:$0xff]
      %v4457 = vld [vmem:[%s9 + $0x218] sm:$0xff]
      %v4458 = vld [vmem:[%s9 + $0x220] sm:$0xff]
      %v4459 = vld [vmem:[%s9 + $0x228] sm:$0xff]
      %v4460 = vld [vmem:[%s9 + $0x230] sm:$0xff]
      %v4461 = vld [vmem:[%s9 + $0x238] sm:$0xff]
      %v4462 = vld [vmem:[#allocation8] sm:$0x1]
      %v4464 = vperm.slane %v4462, 0
      %v4467 = vsel %vm539, %v4234, 0
      %v4470 = vsel %vm539, %v4239, 0
      %v4473 = vsel %vm539, %v4244, 0
      %v4476 = vsel %vm539, %v4249, 0
      %v4479 = vsel %vm539, %v4254, 0
      %v4482 = vsel %vm539, %v4259, 0
      %v4485 = vsel %vm539, %v4264, 0
      %v4488 = vsel %vm539, %v4269, 0
      %v4491 = vsel %vm539, %v4274, 0
      %v4494 = vsel %vm539, %v4279, 0
      %v4497 = vsel %vm539, %v4284, 0
      %v4500 = vsel %vm539, %v4289, 0
      %v4503 = vsel %vm539, %v4294, 0
      %v4506 = vsel %vm539, %v4299, 0
      %v4509 = vsel %vm539, %v4304, 0
      %v4512 = vsel %vm539, %v4309, 0
      %v4515 = vsel %vm539, %v4314, 0
      %v4518 = vsel %vm539, %v4319, 0
      %v4521 = vsel %vm539, %v4324, 0
      %v4524 = vsel %vm539, %v4329, 0
      %v4527 = vsel %vm539, %v4334, 0
      %v4530 = vsel %vm539, %v4339, 0
      %v4533 = vsel %vm539, %v4344, 0
      %v4536 = vsel %vm539, %v4349, 0
      %v4539 = vsel %vm539, %v4354, 0
      %v4542 = vsel %vm539, %v4359, 0
      %v4545 = vsel %vm539, %v4364, 0
      %v4548 = vsel %vm539, %v4369, 0
      %v4551 = vsel %vm539, %v4374, 0
      %v4554 = vsel %vm539, %v4379, 0
      %v4557 = vsel %vm539, %v4384, 0
      %v4560 = vsel %vm539, %v4389, 0
      %4562 = vmatpush.msra.mxu0 %v4405
      %4563 = vmatpush.msra.mxu0 %v4404
      %4564 = vmatpush.msra.mxu0 %v4403
      %4565 = vmatpush.msra.mxu0 %v4402
      %4566 = vmatpush.msra.mxu0 %v4401
      %4567 = vmatpush.msra.mxu0 %v4400
      %4568 = vmatpush.msra.mxu0 %v4399
      %4569 = vmatpush.msra.mxu0 %v4398
      %4570 = vmatpush.msra.mxu0 %v4397
      %4571 = vmatpush.msra.mxu0 %v4396
      %4572 = vmatpush.msra.mxu0 %v4395
      %4573 = vmatpush.msra.mxu0 %v4394
      %4574 = vmatpush.msra.mxu0 %v4393
      %4575 = vmatpush.msra.mxu0 %v4392
      %4576 = vmatpush.msra.mxu0 %v4391
      %4577 = vmatpush.msra.mxu0 %v4390
      %4578 = vmatmul.f32.gmra.mxu0 %v4230
      %v4579 = vpop.f32.mrf.mxu0
      %v4580 = vadd.f32 %v4464, %v4579
      %4581 = vmatmul.f32.gmra.mxu0 %v4235
      %v4582 = vpop.f32.mrf.mxu0
      %v4583 = vadd.f32 %v4464, %v4582
      %4584 = vmatmul.f32.gmra.mxu0 %v4240
      %v4585 = vpop.f32.mrf.mxu0
      %v4586 = vadd.f32 %v4464, %v4585
      %4587 = vmatmul.f32.gmra.mxu0 %v4245
      %v4588 = vpop.f32.mrf.mxu0
      %v4589 = vadd.f32 %v4464, %v4588
      %4590 = vmatmul.f32.gmra.mxu0 %v4250
      %v4591 = vpop.f32.mrf.mxu0
      %v4592 = vadd.f32 %v4464, %v4591
      %4593 = vmatmul.f32.gmra.mxu0 %v4255
      %v4594 = vpop.f32.mrf.mxu0
      %v4595 = vadd.f32 %v4464, %v4594
      %4596 = vmatmul.f32.gmra.mxu0 %v4260
      %v4597 = vpop.f32.mrf.mxu0
      %v4598 = vadd.f32 %v4464, %v4597
      %4599 = vmatmul.f32.gmra.mxu0 %v4265
      %v4600 = vpop.f32.mrf.mxu0
      %v4601 = vadd.f32 %v4464, %v4600
      %4602 = vmatmul.f32.gmra.mxu0 %v4270
      %v4603 = vpop.f32.mrf.mxu0
      %v4604 = vadd.f32 %v4464, %v4603
      %4605 = vmatmul.f32.gmra.mxu0 %v4275
      %v4606 = vpop.f32.mrf.mxu0
      %v4607 = vadd.f32 %v4464, %v4606
      %4608 = vmatmul.f32.gmra.mxu0 %v4280
      %v4609 = vpop.f32.mrf.mxu0
      %v4610 = vadd.f32 %v4464, %v4609
      %4611 = vmatmul.f32.gmra.mxu0 %v4285
      %v4612 = vpop.f32.mrf.mxu0
      %v4613 = vadd.f32 %v4464, %v4612
      %4614 = vmatmul.f32.gmra.mxu0 %v4290
      %v4615 = vpop.f32.mrf.mxu0
      %v4616 = vadd.f32 %v4464, %v4615
      %4617 = vmatmul.f32.gmra.mxu0 %v4295
      %v4618 = vpop.f32.mrf.mxu0
      %v4619 = vadd.f32 %v4464, %v4618
      %4620 = vmatmul.f32.gmra.mxu0 %v4300
      %v4621 = vpop.f32.mrf.mxu0
      %v4622 = vadd.f32 %v4464, %v4621
      %4623 = vmatmul.f32.gmra.mxu0 %v4305
      %v4624 = vpop.f32.mrf.mxu0
      %v4625 = vadd.f32 %v4464, %v4624
      %4626 = vmatmul.f32.gmra.mxu0 %v4310
      %v4627 = vpop.f32.mrf.mxu0
      %v4628 = vadd.f32 %v4464, %v4627
      %4629 = vmatmul.f32.gmra.mxu0 %v4315
      %v4630 = vpop.f32.mrf.mxu0
      %v4631 = vadd.f32 %v4464, %v4630
      %4632 = vmatmul.f32.gmra.mxu0 %v4320
      %v4633 = vpop.f32.mrf.mxu0
      %v4634 = vadd.f32 %v4464, %v4633
      %4635 = vmatmul.f32.gmra.mxu0 %v4325
      %v4636 = vpop.f32.mrf.mxu0
      %v4637 = vadd.f32 %v4464, %v4636
      %4638 = vmatmul.f32.gmra.mxu0 %v4330
      %v4639 = vpop.f32.mrf.mxu0
      %v4640 = vadd.f32 %v4464, %v4639
      %4641 = vmatmul.f32.gmra.mxu0 %v4335
      %v4642 = vpop.f32.mrf.mxu0
      %v4643 = vadd.f32 %v4464, %v4642
      %4644 = vmatmul.f32.gmra.mxu0 %v4340
      %v4645 = vpop.f32.mrf.mxu0
      %v4646 = vadd.f32 %v4464, %v4645
      %4647 = vmatmul.f32.gmra.mxu0 %v4345
      %v4648 = vpop.f32.mrf.mxu0
      %v4649 = vadd.f32 %v4464, %v4648
      %4650 = vmatmul.f32.gmra.mxu0 %v4350
      %v4651 = vpop.f32.mrf.mxu0
      %v4652 = vadd.f32 %v4464, %v4651
      %4653 = vmatmul.f32.gmra.mxu0 %v4355
      %v4654 = vpop.f32.mrf.mxu0
      %v4655 = vadd.f32 %v4464, %v4654
      %4656 = vmatmul.f32.gmra.mxu0 %v4360
      %v4657 = vpop.f32.mrf.mxu0
      %v4658 = vadd.f32 %v4464, %v4657
      %4659 = vmatmul.f32.gmra.mxu0 %v4365
      %v4660 = vpop.f32.mrf.mxu0
      %v4661 = vadd.f32 %v4464, %v4660
      %4662 = vmatmul.f32.gmra.mxu0 %v4370
      %v4663 = vpop.f32.mrf.mxu0
      %v4664 = vadd.f32 %v4464, %v4663
      %4665 = vmatmul.f32.gmra.mxu0 %v4375
      %v4666 = vpop.f32.mrf.mxu0
      %v4667 = vadd.f32 %v4464, %v4666
      %4668 = vmatmul.f32.gmra.mxu0 %v4380
      %v4669 = vpop.f32.mrf.mxu0
      %v4670 = vadd.f32 %v4464, %v4669
      %4671 = vmatmul.f32.gmra.mxu0 %v4385
      %v4672 = vpop.f32.mrf.mxu0
      %v4673 = vadd.f32 %v4464, %v4672
      %4674 = vdwg.mxu0
      %4675 = vmatpush.msra.mxu0 %v4421
      %4676 = vmatpush.msra.mxu0 %v4420
      %4677 = vmatpush.msra.mxu0 %v4419
      %4678 = vmatpush.msra.mxu0 %v4418
      %4679 = vmatpush.msra.mxu0 %v4417
      %4680 = vmatpush.msra.mxu0 %v4416
      %4681 = vmatpush.msra.mxu0 %v4415
      %4682 = vmatpush.msra.mxu0 %v4414
      %4683 = vmatpush.msra.mxu0 %v4413
      %4684 = vmatpush.msra.mxu0 %v4412
      %4685 = vmatpush.msra.mxu0 %v4411
      %4686 = vmatpush.msra.mxu0 %v4410
      %4687 = vmatpush.msra.mxu0 %v4409
      %4688 = vmatpush.msra.mxu0 %v4408
      %4689 = vmatpush.msra.mxu0 %v4407
      %4690 = vmatpush.msra.mxu0 %v4406
      %4691 = vmatmul.f32.gmra.mxu0 %v4231
      %v4692 = vpop.f32.mrf.mxu0
      %v4693 = vadd.f32 %v4580, %v4692
      %4694 = vmatmul.f32.gmra.mxu0 %v4236
      %v4695 = vpop.f32.mrf.mxu0
      %v4696 = vadd.f32 %v4583, %v4695
      %4697 = vmatmul.f32.gmra.mxu0 %v4241
      %v4698 = vpop.f32.mrf.mxu0
      %v4699 = vadd.f32 %v4586, %v4698
      %4700 = vmatmul.f32.gmra.mxu0 %v4246
      %v4701 = vpop.f32.mrf.mxu0
      %v4702 = vadd.f32 %v4589, %v4701
      %4703 = vmatmul.f32.gmra.mxu0 %v4251
      %v4704 = vpop.f32.mrf.mxu0
      %v4705 = vadd.f32 %v4592, %v4704
      %4706 = vmatmul.f32.gmra.mxu0 %v4256
      %v4707 = vpop.f32.mrf.mxu0
      %v4708 = vadd.f32 %v4595, %v4707
      %4709 = vmatmul.f32.gmra.mxu0 %v4261
      %v4710 = vpop.f32.mrf.mxu0
      %v4711 = vadd.f32 %v4598, %v4710
      %4712 = vmatmul.f32.gmra.mxu0 %v4266
      %v4713 = vpop.f32.mrf.mxu0
      %v4714 = vadd.f32 %v4601, %v4713
      %4715 = vmatmul.f32.gmra.mxu0 %v4271
      %v4716 = vpop.f32.mrf.mxu0
      %v4717 = vadd.f32 %v4604, %v4716
      %4718 = vmatmul.f32.gmra.mxu0 %v4276
      %v4719 = vpop.f32.mrf.mxu0
      %v4720 = vadd.f32 %v4607, %v4719
      %4721 = vmatmul.f32.gmra.mxu0 %v4281
      %v4722 = vpop.f32.mrf.mxu0
      %v4723 = vadd.f32 %v4610, %v4722
      %4724 = vmatmul.f32.gmra.mxu0 %v4286
      %v4725 = vpop.f32.mrf.mxu0
      %v4726 = vadd.f32 %v4613, %v4725
      %4727 = vmatmul.f32.gmra.mxu0 %v4291
      %v4728 = vpop.f32.mrf.mxu0
      %v4729 = vadd.f32 %v4616, %v4728
      %4730 = vmatmul.f32.gmra.mxu0 %v4296
      %v4731 = vpop.f32.mrf.mxu0
      %v4732 = vadd.f32 %v4619, %v4731
      %4733 = vmatmul.f32.gmra.mxu0 %v4301
      %v4734 = vpop.f32.mrf.mxu0
      %v4735 = vadd.f32 %v4622, %v4734
      %4736 = vmatmul.f32.gmra.mxu0 %v4306
      %v4737 = vpop.f32.mrf.mxu0
      %v4738 = vadd.f32 %v4625, %v4737
      %4739 = vmatmul.f32.gmra.mxu0 %v4311
      %v4740 = vpop.f32.mrf.mxu0
      %v4741 = vadd.f32 %v4628, %v4740
      %4742 = vmatmul.f32.gmra.mxu0 %v4316
      %v4743 = vpop.f32.mrf.mxu0
      %v4744 = vadd.f32 %v4631, %v4743
      %4745 = vmatmul.f32.gmra.mxu0 %v4321
      %v4746 = vpop.f32.mrf.mxu0
      %v4747 = vadd.f32 %v4634, %v4746
      %4748 = vmatmul.f32.gmra.mxu0 %v4326
      %v4749 = vpop.f32.mrf.mxu0
      %v4750 = vadd.f32 %v4637, %v4749
      %4751 = vmatmul.f32.gmra.mxu0 %v4331
      %v4752 = vpop.f32.mrf.mxu0
      %v4753 = vadd.f32 %v4640, %v4752
      %4754 = vmatmul.f32.gmra.mxu0 %v4336
      %v4755 = vpop.f32.mrf.mxu0
      %v4756 = vadd.f32 %v4643, %v4755
      %4757 = vmatmul.f32.gmra.mxu0 %v4341
      %v4758 = vpop.f32.mrf.mxu0
      %v4759 = vadd.f32 %v4646, %v4758
      %4760 = vmatmul.f32.gmra.mxu0 %v4346
      %v4761 = vpop.f32.mrf.mxu0
      %v4762 = vadd.f32 %v4649, %v4761
      %4763 = vmatmul.f32.gmra.mxu0 %v4351
      %v4764 = vpop.f32.mrf.mxu0
      %v4765 = vadd.f32 %v4652, %v4764
      %4766 = vmatmul.f32.gmra.mxu0 %v4356
      %v4767 = vpop.f32.mrf.mxu0
      %v4768 = vadd.f32 %v4655, %v4767
      %4769 = vmatmul.f32.gmra.mxu0 %v4361
      %v4770 = vpop.f32.mrf.mxu0
      %v4771 = vadd.f32 %v4658, %v4770
      %4772 = vmatmul.f32.gmra.mxu0 %v4366
      %v4773 = vpop.f32.mrf.mxu0
      %v4774 = vadd.f32 %v4661, %v4773
      %4775 = vmatmul.f32.gmra.mxu0 %v4371
      %v4776 = vpop.f32.mrf.mxu0
      %v4777 = vadd.f32 %v4664, %v4776
      %4778 = vmatmul.f32.gmra.mxu0 %v4376
      %v4779 = vpop.f32.mrf.mxu0
      %v4780 = vadd.f32 %v4667, %v4779
      %4781 = vmatmul.f32.gmra.mxu0 %v4381
      %v4782 = vpop.f32.mrf.mxu0
      %v4783 = vadd.f32 %v4670, %v4782
      %4784 = vmatmul.f32.gmra.mxu0 %v4386
      %v4785 = vpop.f32.mrf.mxu0
      %v4786 = vadd.f32 %v4673, %v4785
      %4787 = vdwg.mxu0
      %4788 = vmatpush.msra.mxu0 %v4437
      %4789 = vmatpush.msra.mxu0 %v4436
      %4790 = vmatpush.msra.mxu0 %v4435
      %4791 = vmatpush.msra.mxu0 %v4434
      %4792 = vmatpush.msra.mxu0 %v4433
      %4793 = vmatpush.msra.mxu0 %v4432
      %4794 = vmatpush.msra.mxu0 %v4431
      %4795 = vmatpush.msra.mxu0 %v4430
      %4796 = vmatpush.msra.mxu0 %v4429
      %4797 = vmatpush.msra.mxu0 %v4428
      %4798 = vmatpush.msra.mxu0 %v4427
      %4799 = vmatpush.msra.mxu0 %v4426
      %4800 = vmatpush.msra.mxu0 %v4425
      %4801 = vmatpush.msra.mxu0 %v4424
      %4802 = vmatpush.msra.mxu0 %v4423
      %4803 = vmatpush.msra.mxu0 %v4422
      %4804 = vmatmul.f32.gmra.mxu0 %v4232
      %v4805 = vpop.f32.mrf.mxu0
      %v4806 = vadd.f32 %v4693, %v4805
      %4807 = vmatmul.f32.gmra.mxu0 %v4237
      %v4808 = vpop.f32.mrf.mxu0
      %v4809 = vadd.f32 %v4696, %v4808
      %4810 = vmatmul.f32.gmra.mxu0 %v4242
      %v4811 = vpop.f32.mrf.mxu0
      %v4812 = vadd.f32 %v4699, %v4811
      %4813 = vmatmul.f32.gmra.mxu0 %v4247
      %v4814 = vpop.f32.mrf.mxu0
      %v4815 = vadd.f32 %v4702, %v4814
      %4816 = vmatmul.f32.gmra.mxu0 %v4252
      %v4817 = vpop.f32.mrf.mxu0
      %v4818 = vadd.f32 %v4705, %v4817
      %4819 = vmatmul.f32.gmra.mxu0 %v4257
      %v4820 = vpop.f32.mrf.mxu0
      %v4821 = vadd.f32 %v4708, %v4820
      %4822 = vmatmul.f32.gmra.mxu0 %v4262
      %v4823 = vpop.f32.mrf.mxu0
      %v4824 = vadd.f32 %v4711, %v4823
      %4825 = vmatmul.f32.gmra.mxu0 %v4267
      %v4826 = vpop.f32.mrf.mxu0
      %v4827 = vadd.f32 %v4714, %v4826
      %4828 = vmatmul.f32.gmra.mxu0 %v4272
      %v4829 = vpop.f32.mrf.mxu0
      %v4830 = vadd.f32 %v4717, %v4829
      %4831 = vmatmul.f32.gmra.mxu0 %v4277
      %v4832 = vpop.f32.mrf.mxu0
      %v4833 = vadd.f32 %v4720, %v4832
      %4834 = vmatmul.f32.gmra.mxu0 %v4282
      %v4835 = vpop.f32.mrf.mxu0
      %v4836 = vadd.f32 %v4723, %v4835
      %4837 = vmatmul.f32.gmra.mxu0 %v4287
      %v4838 = vpop.f32.mrf.mxu0
      %v4839 = vadd.f32 %v4726, %v4838
      %4840 = vmatmul.f32.gmra.mxu0 %v4292
      %v4841 = vpop.f32.mrf.mxu0
      %v4842 = vadd.f32 %v4729, %v4841
      %4843 = vmatmul.f32.gmra.mxu0 %v4297
      %v4844 = vpop.f32.mrf.mxu0
      %v4845 = vadd.f32 %v4732, %v4844
      %4846 = vmatmul.f32.gmra.mxu0 %v4302
      %v4847 = vpop.f32.mrf.mxu0
      %v4848 = vadd.f32 %v4735, %v4847
      %4849 = vmatmul.f32.gmra.mxu0 %v4307
      %v4850 = vpop.f32.mrf.mxu0
      %v4851 = vadd.f32 %v4738, %v4850
      %4852 = vmatmul.f32.gmra.mxu0 %v4312
      %v4853 = vpop.f32.mrf.mxu0
      %v4854 = vadd.f32 %v4741, %v4853
      %4855 = vmatmul.f32.gmra.mxu0 %v4317
      %v4856 = vpop.f32.mrf.mxu0
      %v4857 = vadd.f32 %v4744, %v4856
      %4858 = vmatmul.f32.gmra.mxu0 %v4322
      %v4859 = vpop.f32.mrf.mxu0
      %v4860 = vadd.f32 %v4747, %v4859
      %4861 = vmatmul.f32.gmra.mxu0 %v4327
      %v4862 = vpop.f32.mrf.mxu0
      %v4863 = vadd.f32 %v4750, %v4862
      %4864 = vmatmul.f32.gmra.mxu0 %v4332
      %v4865 = vpop.f32.mrf.mxu0
      %v4866 = vadd.f32 %v4753, %v4865
      %4867 = vmatmul.f32.gmra.mxu0 %v4337
      %v4868 = vpop.f32.mrf.mxu0
      %v4869 = vadd.f32 %v4756, %v4868
      %4870 = vmatmul.f32.gmra.mxu0 %v4342
      %v4871 = vpop.f32.mrf.mxu0
      %v4872 = vadd.f32 %v4759, %v4871
      %4873 = vmatmul.f32.gmra.mxu0 %v4347
      %v4874 = vpop.f32.mrf.mxu0
      %v4875 = vadd.f32 %v4762, %v4874
      %4876 = vmatmul.f32.gmra.mxu0 %v4352
      %v4877 = vpop.f32.mrf.mxu0
      %v4878 = vadd.f32 %v4765, %v4877
      %4879 = vmatmul.f32.gmra.mxu0 %v4357
      %v4880 = vpop.f32.mrf.mxu0
      %v4881 = vadd.f32 %v4768, %v4880
      %4882 = vmatmul.f32.gmra.mxu0 %v4362
      %v4883 = vpop.f32.mrf.mxu0
      %v4884 = vadd.f32 %v4771, %v4883
      %4885 = vmatmul.f32.gmra.mxu0 %v4367
      %v4886 = vpop.f32.mrf.mxu0
      %v4887 = vadd.f32 %v4774, %v4886
      %4888 = vmatmul.f32.gmra.mxu0 %v4372
      %v4889 = vpop.f32.mrf.mxu0
      %v4890 = vadd.f32 %v4777, %v4889
      %4891 = vmatmul.f32.gmra.mxu0 %v4377
      %v4892 = vpop.f32.mrf.mxu0
      %v4893 = vadd.f32 %v4780, %v4892
      %4894 = vmatmul.f32.gmra.mxu0 %v4382
      %v4895 = vpop.f32.mrf.mxu0
      %v4896 = vadd.f32 %v4783, %v4895
      %4897 = vmatmul.f32.gmra.mxu0 %v4387
      %v4898 = vpop.f32.mrf.mxu0
      %v4899 = vadd.f32 %v4786, %v4898
      %4900 = vdwg.mxu0
      %4901 = vmatpush.msra.mxu0 %v4453
      %4902 = vmatpush.msra.mxu0 %v4452
      %4903 = vmatpush.msra.mxu0 %v4451
      %4904 = vmatpush.msra.mxu0 %v4450
      %4905 = vmatpush.msra.mxu0 %v4449
      %4906 = vmatpush.msra.mxu0 %v4448
      %4907 = vmatpush.msra.mxu0 %v4447
      %4908 = vmatpush.msra.mxu0 %v4446
      %4909 = vmatpush.msra.mxu0 %v4445
      %4910 = vmatpush.msra.mxu0 %v4444
      %4911 = vmatpush.msra.mxu0 %v4443
      %4912 = vmatpush.msra.mxu0 %v4442
      %4913 = vmatpush.msra.mxu0 %v4441
      %4914 = vmatpush.msra.mxu0 %v4440
      %4915 = vmatpush.msra.mxu0 %v4439
      %4916 = vmatpush.msra.mxu0 %v4438
      %4917 = vmatmul.f32.gmra.mxu0 %v4233
      %v4918 = vpop.f32.mrf.mxu0
      %v4919 = vadd.f32 %v4806, %v4918
      %4920 = vmatmul.f32.gmra.mxu0 %v4238
      %v4921 = vpop.f32.mrf.mxu0
      %v4922 = vadd.f32 %v4809, %v4921
      %4923 = vmatmul.f32.gmra.mxu0 %v4243
      %v4924 = vpop.f32.mrf.mxu0
      %v4925 = vadd.f32 %v4812, %v4924
      %4926 = vmatmul.f32.gmra.mxu0 %v4248
      %v4927 = vpop.f32.mrf.mxu0
      %v4928 = vadd.f32 %v4815, %v4927
      %4929 = vmatmul.f32.gmra.mxu0 %v4253
      %v4930 = vpop.f32.mrf.mxu0
      %v4931 = vadd.f32 %v4818, %v4930
      %4932 = vmatmul.f32.gmra.mxu0 %v4258
      %v4933 = vpop.f32.mrf.mxu0
      %v4934 = vadd.f32 %v4821, %v4933
      %4935 = vmatmul.f32.gmra.mxu0 %v4263
      %v4936 = vpop.f32.mrf.mxu0
      %v4937 = vadd.f32 %v4824, %v4936
      %4938 = vmatmul.f32.gmra.mxu0 %v4268
      %v4939 = vpop.f32.mrf.mxu0
      %v4940 = vadd.f32 %v4827, %v4939
      %4941 = vmatmul.f32.gmra.mxu0 %v4273
      %v4942 = vpop.f32.mrf.mxu0
      %v4943 = vadd.f32 %v4830, %v4942
      %4944 = vmatmul.f32.gmra.mxu0 %v4278
      %v4945 = vpop.f32.mrf.mxu0
      %v4946 = vadd.f32 %v4833, %v4945
      %4947 = vmatmul.f32.gmra.mxu0 %v4283
      %v4948 = vpop.f32.mrf.mxu0
      %v4949 = vadd.f32 %v4836, %v4948
      %4950 = vmatmul.f32.gmra.mxu0 %v4288
      %v4951 = vpop.f32.mrf.mxu0
      %v4952 = vadd.f32 %v4839, %v4951
      %4953 = vmatmul.f32.gmra.mxu0 %v4293
      %v4954 = vpop.f32.mrf.mxu0
      %v4955 = vadd.f32 %v4842, %v4954
      %4956 = vmatmul.f32.gmra.mxu0 %v4298
      %v4957 = vpop.f32.mrf.mxu0
      %v4958 = vadd.f32 %v4845, %v4957
      %4959 = vmatmul.f32.gmra.mxu0 %v4303
      %v4960 = vpop.f32.mrf.mxu0
      %v4961 = vadd.f32 %v4848, %v4960
      %4962 = vmatmul.f32.gmra.mxu0 %v4308
      %v4963 = vpop.f32.mrf.mxu0
      %v4964 = vadd.f32 %v4851, %v4963
      %4965 = vmatmul.f32.gmra.mxu0 %v4313
      %v4966 = vpop.f32.mrf.mxu0
      %v4967 = vadd.f32 %v4854, %v4966
      %4968 = vmatmul.f32.gmra.mxu0 %v4318
      %v4969 = vpop.f32.mrf.mxu0
      %v4970 = vadd.f32 %v4857, %v4969
      %4971 = vmatmul.f32.gmra.mxu0 %v4323
      %v4972 = vpop.f32.mrf.mxu0
      %v4973 = vadd.f32 %v4860, %v4972
      %4974 = vmatmul.f32.gmra.mxu0 %v4328
      %v4975 = vpop.f32.mrf.mxu0
      %v4976 = vadd.f32 %v4863, %v4975
      %4977 = vmatmul.f32.gmra.mxu0 %v4333
      %v4978 = vpop.f32.mrf.mxu0
      %v4979 = vadd.f32 %v4866, %v4978
      %4980 = vmatmul.f32.gmra.mxu0 %v4338
      %v4981 = vpop.f32.mrf.mxu0
      %v4982 = vadd.f32 %v4869, %v4981
      %4983 = vmatmul.f32.gmra.mxu0 %v4343
      %v4984 = vpop.f32.mrf.mxu0
      %v4985 = vadd.f32 %v4872, %v4984
      %4986 = vmatmul.f32.gmra.mxu0 %v4348
      %v4987 = vpop.f32.mrf.mxu0
      %v4988 = vadd.f32 %v4875, %v4987
      %4989 = vmatmul.f32.gmra.mxu0 %v4353
      %v4990 = vpop.f32.mrf.mxu0
      %v4991 = vadd.f32 %v4878, %v4990
      %4992 = vmatmul.f32.gmra.mxu0 %v4358
      %v4993 = vpop.f32.mrf.mxu0
      %v4994 = vadd.f32 %v4881, %v4993
      %4995 = vmatmul.f32.gmra.mxu0 %v4363
      %v4996 = vpop.f32.mrf.mxu0
      %v4997 = vadd.f32 %v4884, %v4996
      %4998 = vmatmul.f32.gmra.mxu0 %v4368
      %v4999 = vpop.f32.mrf.mxu0
      %v5000 = vadd.f32 %v4887, %v4999
      %5001 = vmatmul.f32.gmra.mxu0 %v4373
      %v5002 = vpop.f32.mrf.mxu0
      %v5003 = vadd.f32 %v4890, %v5002
      %5004 = vmatmul.f32.gmra.mxu0 %v4378
      %v5005 = vpop.f32.mrf.mxu0
      %v5006 = vadd.f32 %v4893, %v5005
      %5007 = vmatmul.f32.gmra.mxu0 %v4383
      %v5008 = vpop.f32.mrf.mxu0
      %v5009 = vadd.f32 %v4896, %v5008
      %5010 = vmatmul.f32.gmra.mxu0 %v4388
      %v5011 = vpop.f32.mrf.mxu0
      %v5012 = vadd.f32 %v4899, %v5011
      %5013 = vdwg.mxu0
      %5014 = vmatpush.msra.mxu0 0.0
      %5015 = vmatpush.msra.mxu0 0.0
      %5016 = vmatpush.msra.mxu0 0.0
      %5017 = vmatpush.msra.mxu0 0.0
      %5018 = vmatpush.msra.mxu0 0.0
      %5019 = vmatpush.msra.mxu0 0.0
      %5020 = vmatpush.msra.mxu0 0.0
      %5021 = vmatpush.msra.mxu0 0.0
      %5022 = vmatpush.msra.mxu0 %v4461
      %5023 = vmatpush.msra.mxu0 %v4460
      %5024 = vmatpush.msra.mxu0 %v4459
      %5025 = vmatpush.msra.mxu0 %v4458
      %5026 = vmatpush.msra.mxu0 %v4457
      %5027 = vmatpush.msra.mxu0 %v4456
      %5028 = vmatpush.msra.mxu0 %v4455
      %5029 = vmatpush.msra.mxu0 %v4454
      %5030 = vmatmul.f32.gmra.mxu0 %v4467
      %v5031 = vpop.f32.mrf.mxu0
      %v5032 = vadd.f32 %v4919, %v5031
      %5033 = vmatmul.f32.gmra.mxu0 %v4470
      %v5034 = vpop.f32.mrf.mxu0
      %v5035 = vadd.f32 %v4922, %v5034
      %5036 = vmatmul.f32.gmra.mxu0 %v4473
      %v5037 = vpop.f32.mrf.mxu0
      %v5038 = vadd.f32 %v4925, %v5037
      %5039 = vmatmul.f32.gmra.mxu0 %v4476
      %v5040 = vpop.f32.mrf.mxu0
      %v5041 = vadd.f32 %v4928, %v5040
      %5042 = vmatmul.f32.gmra.mxu0 %v4479
      %v5043 = vpop.f32.mrf.mxu0
      %v5044 = vadd.f32 %v4931, %v5043
      %5045 = vmatmul.f32.gmra.mxu0 %v4482
      %v5046 = vpop.f32.mrf.mxu0
      %v5047 = vadd.f32 %v4934, %v5046
      %5048 = vmatmul.f32.gmra.mxu0 %v4485
      %v5049 = vpop.f32.mrf.mxu0
      %v5050 = vadd.f32 %v4937, %v5049
      %5051 = vmatmul.f32.gmra.mxu0 %v4488
      %v5052 = vpop.f32.mrf.mxu0
      %v5053 = vadd.f32 %v4940, %v5052
      %5054 = vmatmul.f32.gmra.mxu0 %v4491
      %v5055 = vpop.f32.mrf.mxu0
      %v5056 = vadd.f32 %v4943, %v5055
      %5057 = vmatmul.f32.gmra.mxu0 %v4494
      %v5058 = vpop.f32.mrf.mxu0
      %v5059 = vadd.f32 %v4946, %v5058
      %5060 = vmatmul.f32.gmra.mxu0 %v4497
      %v5061 = vpop.f32.mrf.mxu0
      %v5062 = vadd.f32 %v4949, %v5061
      %5063 = vmatmul.f32.gmra.mxu0 %v4500
      %v5064 = vpop.f32.mrf.mxu0
      %v5065 = vadd.f32 %v4952, %v5064
      %5066 = vmatmul.f32.gmra.mxu0 %v4503
      %v5067 = vpop.f32.mrf.mxu0
      %v5068 = vadd.f32 %v4955, %v5067
      %5069 = vmatmul.f32.gmra.mxu0 %v4506
      %v5070 = vpop.f32.mrf.mxu0
      %v5071 = vadd.f32 %v4958, %v5070
      %5072 = vmatmul.f32.gmra.mxu0 %v4509
      %v5073 = vpop.f32.mrf.mxu0
      %v5074 = vadd.f32 %v4961, %v5073
      %5075 = vmatmul.f32.gmra.mxu0 %v4512
      %v5076 = vpop.f32.mrf.mxu0
      %v5077 = vadd.f32 %v4964, %v5076
      %5078 = vmatmul.f32.gmra.mxu0 %v4515
      %v5079 = vpop.f32.mrf.mxu0
      %v5080 = vadd.f32 %v4967, %v5079
      %5081 = vmatmul.f32.gmra.mxu0 %v4518
      %v5082 = vpop.f32.mrf.mxu0
      %v5083 = vadd.f32 %v4970, %v5082
      %5084 = vmatmul.f32.gmra.mxu0 %v4521
      %v5085 = vpop.f32.mrf.mxu0
      %v5086 = vadd.f32 %v4973, %v5085
      %5087 = vmatmul.f32.gmra.mxu0 %v4524
      %v5088 = vpop.f32.mrf.mxu0
      %v5089 = vadd.f32 %v4976, %v5088
      %5090 = vmatmul.f32.gmra.mxu0 %v4527
      %v5091 = vpop.f32.mrf.mxu0
      %v5092 = vadd.f32 %v4979, %v5091
      %5093 = vmatmul.f32.gmra.mxu0 %v4530
      %v5094 = vpop.f32.mrf.mxu0
      %v5095 = vadd.f32 %v4982, %v5094
      %5096 = vmatmul.f32.gmra.mxu0 %v4533
      %v5097 = vpop.f32.mrf.mxu0
      %v5098 = vadd.f32 %v4985, %v5097
      %5099 = vmatmul.f32.gmra.mxu0 %v4536
      %v5100 = vpop.f32.mrf.mxu0
      %v5101 = vadd.f32 %v4988, %v5100
      %5102 = vmatmul.f32.gmra.mxu0 %v4539
      %v5103 = vpop.f32.mrf.mxu0
      %v5104 = vadd.f32 %v4991, %v5103
      %5105 = vmatmul.f32.gmra.mxu0 %v4542
      %v5106 = vpop.f32.mrf.mxu0
      %v5107 = vadd.f32 %v4994, %v5106
      %5108 = vmatmul.f32.gmra.mxu0 %v4545
      %v5109 = vpop.f32.mrf.mxu0
      %v5110 = vadd.f32 %v4997, %v5109
      %5111 = vmatmul.f32.gmra.mxu0 %v4548
      %v5112 = vpop.f32.mrf.mxu0
      %v5113 = vadd.f32 %v5000, %v5112
      %5114 = vmatmul.f32.gmra.mxu0 %v4551
      %v5115 = vpop.f32.mrf.mxu0
      %v5116 = vadd.f32 %v5003, %v5115
      %5117 = vmatmul.f32.gmra.mxu0 %v4554
      %v5118 = vpop.f32.mrf.mxu0
      %v5119 = vadd.f32 %v5006, %v5118
      %5120 = vmatmul.f32.gmra.mxu0 %v4557
      %v5121 = vpop.f32.mrf.mxu0
      %v5122 = vadd.f32 %v5009, %v5121
      %5123 = vmatmul.f32.gmra.mxu0 %v4560
      %v5124 = vpop.f32.mrf.mxu0
      %v5125 = vadd.f32 %v5012, %v5124
      %5126 = vdwg.mxu0
      %v5127 = vxor.u32 %v5032, 2147483648
      %v5128 = vxor.u32 %v5035, 2147483648
      %v5129 = vxor.u32 %v5038, 2147483648
      %v5130 = vxor.u32 %v5041, 2147483648
      %v5131 = vxor.u32 %v5044, 2147483648
      %v5132 = vxor.u32 %v5047, 2147483648
      %v5133 = vxor.u32 %v5050, 2147483648
      %v5134 = vxor.u32 %v5053, 2147483648
      %v5135 = vxor.u32 %v5056, 2147483648
      %v5136 = vxor.u32 %v5059, 2147483648
      %v5137 = vxor.u32 %v5062, 2147483648
      %v5138 = vxor.u32 %v5065, 2147483648
      %v5139 = vxor.u32 %v5068, 2147483648
      %v5140 = vxor.u32 %v5071, 2147483648
      %v5141 = vxor.u32 %v5074, 2147483648
      %v5142 = vxor.u32 %v5077, 2147483648
      %v5143 = vxor.u32 %v5080, 2147483648
      %v5144 = vxor.u32 %v5083, 2147483648
      %v5145 = vxor.u32 %v5086, 2147483648
      %v5146 = vxor.u32 %v5089, 2147483648
      %v5147 = vxor.u32 %v5092, 2147483648
      %v5148 = vxor.u32 %v5095, 2147483648
      %v5149 = vxor.u32 %v5098, 2147483648
      %v5150 = vxor.u32 %v5101, 2147483648
      %v5151 = vxor.u32 %v5104, 2147483648
      %v5152 = vxor.u32 %v5107, 2147483648
      %v5153 = vxor.u32 %v5110, 2147483648
      %v5154 = vxor.u32 %v5113, 2147483648
      %v5155 = vxor.u32 %v5116, 2147483648
      %v5156 = vxor.u32 %v5119, 2147483648
      %v5157 = vxor.u32 %v5122, 2147483648
      %v5158 = vxor.u32 %v5125, 2147483648
      %v5159 = vmul.f32 %v5127, 1.442695
      %v5160 = vpow.pop %v5159
      %v5161 = vmul.f32 %v5128, 1.442695
      %v5162 = vpow.pop %v5161
      %v5163 = vmul.f32 %v5129, 1.442695
      %v5164 = vpow.pop %v5163
      %v5165 = vmul.f32 %v5130, 1.442695
      %v5166 = vpow.pop %v5165
      %v5167 = vmul.f32 %v5131, 1.442695
      %v5168 = vpow.pop %v5167
      %v5169 = vmul.f32 %v5132, 1.442695
      %v5170 = vpow.pop %v5169
      %v5171 = vmul.f32 %v5133, 1.442695
      %v5172 = vpow.pop %v5171
      %v5173 = vmul.f32 %v5134, 1.442695
      %v5174 = vpow.pop %v5173
      %v5175 = vmul.f32 %v5135, 1.442695
      %v5176 = vpow.pop %v5175
      %v5177 = vmul.f32 %v5136, 1.442695
      %v5178 = vpow.pop %v5177
      %v5179 = vmul.f32 %v5137, 1.442695
      %v5180 = vpow.pop %v5179
      %v5181 = vmul.f32 %v5138, 1.442695
      %v5182 = vpow.pop %v5181
      %v5183 = vmul.f32 %v5139, 1.442695
      %v5184 = vpow.pop %v5183
      %v5185 = vmul.f32 %v5140, 1.442695
      %v5186 = vpow.pop %v5185
      %v5187 = vmul.f32 %v5141, 1.442695
      %v5188 = vpow.pop %v5187
      %v5189 = vmul.f32 %v5142, 1.442695
      %v5190 = vpow.pop %v5189
      %v5191 = vmul.f32 %v5143, 1.442695
      %v5192 = vpow.pop %v5191
      %v5193 = vmul.f32 %v5144, 1.442695
      %v5194 = vpow.pop %v5193
      %v5195 = vmul.f32 %v5145, 1.442695
      %v5196 = vpow.pop %v5195
      %v5197 = vmul.f32 %v5146, 1.442695
      %v5198 = vpow.pop %v5197
      %v5199 = vmul.f32 %v5147, 1.442695
      %v5200 = vpow.pop %v5199
      %v5201 = vmul.f32 %v5148, 1.442695
      %v5202 = vpow.pop %v5201
      %v5203 = vmul.f32 %v5149, 1.442695
      %v5204 = vpow.pop %v5203
      %v5205 = vmul.f32 %v5150, 1.442695
      %v5206 = vpow.pop %v5205
      %v5207 = vmul.f32 %v5151, 1.442695
      %v5208 = vpow.pop %v5207
      %v5209 = vmul.f32 %v5152, 1.442695
      %v5210 = vpow.pop %v5209
      %v5211 = vmul.f32 %v5153, 1.442695
      %v5212 = vpow.pop %v5211
      %v5213 = vmul.f32 %v5154, 1.442695
      %v5214 = vpow.pop %v5213
      %v5215 = vmul.f32 %v5155, 1.442695
      %v5216 = vpow.pop %v5215
      %v5217 = vmul.f32 %v5156, 1.442695
      %v5218 = vpow.pop %v5217
      %v5219 = vmul.f32 %v5157, 1.442695
      %v5220 = vpow.pop %v5219
      %v5221 = vmul.f32 %v5158, 1.442695
      %v5222 = vpow.pop %v5221
      %v5223 = vadd.f32 %v5160, 1.0
      %v5224 = vadd.f32 %v5162, 1.0
      %v5225 = vadd.f32 %v5164, 1.0
      %v5226 = vadd.f32 %v5166, 1.0
      %v5227 = vadd.f32 %v5168, 1.0
      %v5228 = vadd.f32 %v5170, 1.0
      %v5229 = vadd.f32 %v5172, 1.0
      %v5230 = vadd.f32 %v5174, 1.0
      %v5231 = vadd.f32 %v5176, 1.0
      %v5232 = vadd.f32 %v5178, 1.0
      %v5233 = vadd.f32 %v5180, 1.0
      %v5234 = vadd.f32 %v5182, 1.0
      %v5235 = vadd.f32 %v5184, 1.0
      %v5236 = vadd.f32 %v5186, 1.0
      %v5237 = vadd.f32 %v5188, 1.0
      %v5238 = vadd.f32 %v5190, 1.0
      %v5239 = vadd.f32 %v5192, 1.0
      %v5240 = vadd.f32 %v5194, 1.0
      %v5241 = vadd.f32 %v5196, 1.0
      %v5242 = vadd.f32 %v5198, 1.0
      %v5243 = vadd.f32 %v5200, 1.0
      %v5244 = vadd.f32 %v5202, 1.0
      %v5245 = vadd.f32 %v5204, 1.0
      %v5246 = vadd.f32 %v5206, 1.0
      %v5247 = vadd.f32 %v5208, 1.0
      %v5248 = vadd.f32 %v5210, 1.0
      %v5249 = vadd.f32 %v5212, 1.0
      %v5250 = vadd.f32 %v5214, 1.0
      %v5251 = vadd.f32 %v5216, 1.0
      %v5252 = vadd.f32 %v5218, 1.0
      %v5253 = vadd.f32 %v5220, 1.0
      %v5254 = vadd.f32 %v5222, 1.0
      %v5255 = vrcp.pop %v5223
      %v5256 = vmul.f32 %v5223, %v5255
      %v5257 = vsub.f32 1.0, %v5256
      %v5258 = vmul.f32 %v5255, %v5257
      %v5259 = vadd.f32 %v5255, %v5258
      %vm5260 = vweird.f32 %v5223
      %vm5261 = vweird.f32 %v5255
      %vm5262 = vmor %vm5260, %vm5261
      %v5263 = vsel %vm5262, %v5255, %v5259
      %v5264 = vand.u32 2147483647, %v5223
      %vm5265 = vcmp.eq.f32.partialorder %v5264, 8.507059e+37
      %v5266 = vand.u32 %v5223, 2147483648
      %v5267 = vor.u32 1.1754944e-38, %v5266
      %v5268 = vsel %vm5265, %v5267, %v5263
      %v5269 = vmul.f32 1.0, %v5268
      %v5270 = vrcp.pop %v5224
      %v5271 = vmul.f32 %v5224, %v5270
      %v5272 = vsub.f32 1.0, %v5271
      %v5273 = vmul.f32 %v5270, %v5272
      %v5274 = vadd.f32 %v5270, %v5273
      %vm5275 = vweird.f32 %v5224
      %vm5276 = vweird.f32 %v5270
      %vm5277 = vmor %vm5275, %vm5276
      %v5278 = vsel %vm5277, %v5270, %v5274
      %v5279 = vand.u32 2147483647, %v5224
      %vm5280 = vcmp.eq.f32.partialorder %v5279, 8.507059e+37
      %v5281 = vand.u32 %v5224, 2147483648
      %v5282 = vor.u32 1.1754944e-38, %v5281
      %v5283 = vsel %vm5280, %v5282, %v5278
      %v5284 = vmul.f32 1.0, %v5283
      %v5285 = vrcp.pop %v5225
      %v5286 = vmul.f32 %v5225, %v5285
      %v5287 = vsub.f32 1.0, %v5286
      %v5288 = vmul.f32 %v5285, %v5287
      %v5289 = vadd.f32 %v5285, %v5288
      %vm5290 = vweird.f32 %v5225
      %vm5291 = vweird.f32 %v5285
      %vm5292 = vmor %vm5290, %vm5291
      %v5293 = vsel %vm5292, %v5285, %v5289
      %v5294 = vand.u32 2147483647, %v5225
      %vm5295 = vcmp.eq.f32.partialorder %v5294, 8.507059e+37
      %v5296 = vand.u32 %v5225, 2147483648
      %v5297 = vor.u32 1.1754944e-38, %v5296
      %v5298 = vsel %vm5295, %v5297, %v5293
      %v5299 = vmul.f32 1.0, %v5298
      %v5300 = vrcp.pop %v5226
      %v5301 = vmul.f32 %v5226, %v5300
      %v5302 = vsub.f32 1.0, %v5301
      %v5303 = vmul.f32 %v5300, %v5302
      %v5304 = vadd.f32 %v5300, %v5303
      %vm5305 = vweird.f32 %v5226
      %vm5306 = vweird.f32 %v5300
      %vm5307 = vmor %vm5305, %vm5306
      %v5308 = vsel %vm5307, %v5300, %v5304
      %v5309 = vand.u32 2147483647, %v5226
      %vm5310 = vcmp.eq.f32.partialorder %v5309, 8.507059e+37
      %v5311 = vand.u32 %v5226, 2147483648
      %v5312 = vor.u32 1.1754944e-38, %v5311
      %v5313 = vsel %vm5310, %v5312, %v5308
      %v5314 = vmul.f32 1.0, %v5313
      %v5315 = vrcp.pop %v5227
      %v5316 = vmul.f32 %v5227, %v5315
      %v5317 = vsub.f32 1.0, %v5316
      %v5318 = vmul.f32 %v5315, %v5317
      %v5319 = vadd.f32 %v5315, %v5318
      %vm5320 = vweird.f32 %v5227
      %vm5321 = vweird.f32 %v5315
      %vm5322 = vmor %vm5320, %vm5321
      %v5323 = vsel %vm5322, %v5315, %v5319
      %v5324 = vand.u32 2147483647, %v5227
      %vm5325 = vcmp.eq.f32.partialorder %v5324, 8.507059e+37
      %v5326 = vand.u32 %v5227, 2147483648
      %v5327 = vor.u32 1.1754944e-38, %v5326
      %v5328 = vsel %vm5325, %v5327, %v5323
      %v5329 = vmul.f32 1.0, %v5328
      %v5330 = vrcp.pop %v5228
      %v5331 = vmul.f32 %v5228, %v5330
      %v5332 = vsub.f32 1.0, %v5331
      %v5333 = vmul.f32 %v5330, %v5332
      %v5334 = vadd.f32 %v5330, %v5333
      %vm5335 = vweird.f32 %v5228
      %vm5336 = vweird.f32 %v5330
      %vm5337 = vmor %vm5335, %vm5336
      %v5338 = vsel %vm5337, %v5330, %v5334
      %v5339 = vand.u32 2147483647, %v5228
      %vm5340 = vcmp.eq.f32.partialorder %v5339, 8.507059e+37
      %v5341 = vand.u32 %v5228, 2147483648
      %v5342 = vor.u32 1.1754944e-38, %v5341
      %v5343 = vsel %vm5340, %v5342, %v5338
      %v5344 = vmul.f32 1.0, %v5343
      %v5345 = vrcp.pop %v5229
      %v5346 = vmul.f32 %v5229, %v5345
      %v5347 = vsub.f32 1.0, %v5346
      %v5348 = vmul.f32 %v5345, %v5347
      %v5349 = vadd.f32 %v5345, %v5348
      %vm5350 = vweird.f32 %v5229
      %vm5351 = vweird.f32 %v5345
      %vm5352 = vmor %vm5350, %vm5351
      %v5353 = vsel %vm5352, %v5345, %v5349
      %v5354 = vand.u32 2147483647, %v5229
      %vm5355 = vcmp.eq.f32.partialorder %v5354, 8.507059e+37
      %v5356 = vand.u32 %v5229, 2147483648
      %v5357 = vor.u32 1.1754944e-38, %v5356
      %v5358 = vsel %vm5355, %v5357, %v5353
      %v5359 = vmul.f32 1.0, %v5358
      %v5360 = vrcp.pop %v5230
      %v5361 = vmul.f32 %v5230, %v5360
      %v5362 = vsub.f32 1.0, %v5361
      %v5363 = vmul.f32 %v5360, %v5362
      %v5364 = vadd.f32 %v5360, %v5363
      %vm5365 = vweird.f32 %v5230
      %vm5366 = vweird.f32 %v5360
      %vm5367 = vmor %vm5365, %vm5366
      %v5368 = vsel %vm5367, %v5360, %v5364
      %v5369 = vand.u32 2147483647, %v5230
      %vm5370 = vcmp.eq.f32.partialorder %v5369, 8.507059e+37
      %v5371 = vand.u32 %v5230, 2147483648
      %v5372 = vor.u32 1.1754944e-38, %v5371
      %v5373 = vsel %vm5370, %v5372, %v5368
      %v5374 = vmul.f32 1.0, %v5373
      %v5375 = vrcp.pop %v5231
      %v5376 = vmul.f32 %v5231, %v5375
      %v5377 = vsub.f32 1.0, %v5376
      %v5378 = vmul.f32 %v5375, %v5377
      %v5379 = vadd.f32 %v5375, %v5378
      %vm5380 = vweird.f32 %v5231
      %vm5381 = vweird.f32 %v5375
      %vm5382 = vmor %vm5380, %vm5381
      %v5383 = vsel %vm5382, %v5375, %v5379
      %v5384 = vand.u32 2147483647, %v5231
      %vm5385 = vcmp.eq.f32.partialorder %v5384, 8.507059e+37
      %v5386 = vand.u32 %v5231, 2147483648
      %v5387 = vor.u32 1.1754944e-38, %v5386
      %v5388 = vsel %vm5385, %v5387, %v5383
      %v5389 = vmul.f32 1.0, %v5388
      %v5390 = vrcp.pop %v5232
      %v5391 = vmul.f32 %v5232, %v5390
      %v5392 = vsub.f32 1.0, %v5391
      %v5393 = vmul.f32 %v5390, %v5392
      %v5394 = vadd.f32 %v5390, %v5393
      %vm5395 = vweird.f32 %v5232
      %vm5396 = vweird.f32 %v5390
      %vm5397 = vmor %vm5395, %vm5396
      %v5398 = vsel %vm5397, %v5390, %v5394
      %v5399 = vand.u32 2147483647, %v5232
      %vm5400 = vcmp.eq.f32.partialorder %v5399, 8.507059e+37
      %v5401 = vand.u32 %v5232, 2147483648
      %v5402 = vor.u32 1.1754944e-38, %v5401
      %v5403 = vsel %vm5400, %v5402, %v5398
      %v5404 = vmul.f32 1.0, %v5403
      %v5405 = vrcp.pop %v5233
      %v5406 = vmul.f32 %v5233, %v5405
      %v5407 = vsub.f32 1.0, %v5406
      %v5408 = vmul.f32 %v5405, %v5407
      %v5409 = vadd.f32 %v5405, %v5408
      %vm5410 = vweird.f32 %v5233
      %vm5411 = vweird.f32 %v5405
      %vm5412 = vmor %vm5410, %vm5411
      %v5413 = vsel %vm5412, %v5405, %v5409
      %v5414 = vand.u32 2147483647, %v5233
      %vm5415 = vcmp.eq.f32.partialorder %v5414, 8.507059e+37
      %v5416 = vand.u32 %v5233, 2147483648
      %v5417 = vor.u32 1.1754944e-38, %v5416
      %v5418 = vsel %vm5415, %v5417, %v5413
      %v5419 = vmul.f32 1.0, %v5418
      %v5420 = vrcp.pop %v5234
      %v5421 = vmul.f32 %v5234, %v5420
      %v5422 = vsub.f32 1.0, %v5421
      %v5423 = vmul.f32 %v5420, %v5422
      %v5424 = vadd.f32 %v5420, %v5423
      %vm5425 = vweird.f32 %v5234
      %vm5426 = vweird.f32 %v5420
      %vm5427 = vmor %vm5425, %vm5426
      %v5428 = vsel %vm5427, %v5420, %v5424
      %v5429 = vand.u32 2147483647, %v5234
      %vm5430 = vcmp.eq.f32.partialorder %v5429, 8.507059e+37
      %v5431 = vand.u32 %v5234, 2147483648
      %v5432 = vor.u32 1.1754944e-38, %v5431
      %v5433 = vsel %vm5430, %v5432, %v5428
      %v5434 = vmul.f32 1.0, %v5433
      %v5435 = vrcp.pop %v5235
      %v5436 = vmul.f32 %v5235, %v5435
      %v5437 = vsub.f32 1.0, %v5436
      %v5438 = vmul.f32 %v5435, %v5437
      %v5439 = vadd.f32 %v5435, %v5438
      %vm5440 = vweird.f32 %v5235
      %vm5441 = vweird.f32 %v5435
      %vm5442 = vmor %vm5440, %vm5441
      %v5443 = vsel %vm5442, %v5435, %v5439
      %v5444 = vand.u32 2147483647, %v5235
      %vm5445 = vcmp.eq.f32.partialorder %v5444, 8.507059e+37
      %v5446 = vand.u32 %v5235, 2147483648
      %v5447 = vor.u32 1.1754944e-38, %v5446
      %v5448 = vsel %vm5445, %v5447, %v5443
      %v5449 = vmul.f32 1.0, %v5448
      %v5450 = vrcp.pop %v5236
      %v5451 = vmul.f32 %v5236, %v5450
      %v5452 = vsub.f32 1.0, %v5451
      %v5453 = vmul.f32 %v5450, %v5452
      %v5454 = vadd.f32 %v5450, %v5453
      %vm5455 = vweird.f32 %v5236
      %vm5456 = vweird.f32 %v5450
      %vm5457 = vmor %vm5455, %vm5456
      %v5458 = vsel %vm5457, %v5450, %v5454
      %v5459 = vand.u32 2147483647, %v5236
      %vm5460 = vcmp.eq.f32.partialorder %v5459, 8.507059e+37
      %v5461 = vand.u32 %v5236, 2147483648
      %v5462 = vor.u32 1.1754944e-38, %v5461
      %v5463 = vsel %vm5460, %v5462, %v5458
      %v5464 = vmul.f32 1.0, %v5463
      %v5465 = vrcp.pop %v5237
      %v5466 = vmul.f32 %v5237, %v5465
      %v5467 = vsub.f32 1.0, %v5466
      %v5468 = vmul.f32 %v5465, %v5467
      %v5469 = vadd.f32 %v5465, %v5468
      %vm5470 = vweird.f32 %v5237
      %vm5471 = vweird.f32 %v5465
      %vm5472 = vmor %vm5470, %vm5471
      %v5473 = vsel %vm5472, %v5465, %v5469
      %v5474 = vand.u32 2147483647, %v5237
      %vm5475 = vcmp.eq.f32.partialorder %v5474, 8.507059e+37
      %v5476 = vand.u32 %v5237, 2147483648
      %v5477 = vor.u32 1.1754944e-38, %v5476
      %v5478 = vsel %vm5475, %v5477, %v5473
      %v5479 = vmul.f32 1.0, %v5478
      %v5480 = vrcp.pop %v5238
      %v5481 = vmul.f32 %v5238, %v5480
      %v5482 = vsub.f32 1.0, %v5481
      %v5483 = vmul.f32 %v5480, %v5482
      %v5484 = vadd.f32 %v5480, %v5483
      %vm5485 = vweird.f32 %v5238
      %vm5486 = vweird.f32 %v5480
      %vm5487 = vmor %vm5485, %vm5486
      %v5488 = vsel %vm5487, %v5480, %v5484
      %v5489 = vand.u32 2147483647, %v5238
      %vm5490 = vcmp.eq.f32.partialorder %v5489, 8.507059e+37
      %v5491 = vand.u32 %v5238, 2147483648
      %v5492 = vor.u32 1.1754944e-38, %v5491
      %v5493 = vsel %vm5490, %v5492, %v5488
      %v5494 = vmul.f32 1.0, %v5493
      %v5495 = vrcp.pop %v5239
      %v5496 = vmul.f32 %v5239, %v5495
      %v5497 = vsub.f32 1.0, %v5496
      %v5498 = vmul.f32 %v5495, %v5497
      %v5499 = vadd.f32 %v5495, %v5498
      %vm5500 = vweird.f32 %v5239
      %vm5501 = vweird.f32 %v5495
      %vm5502 = vmor %vm5500, %vm5501
      %v5503 = vsel %vm5502, %v5495, %v5499
      %v5504 = vand.u32 2147483647, %v5239
      %vm5505 = vcmp.eq.f32.partialorder %v5504, 8.507059e+37
      %v5506 = vand.u32 %v5239, 2147483648
      %v5507 = vor.u32 1.1754944e-38, %v5506
      %v5508 = vsel %vm5505, %v5507, %v5503
      %v5509 = vmul.f32 1.0, %v5508
      %v5510 = vrcp.pop %v5240
      %v5511 = vmul.f32 %v5240, %v5510
      %v5512 = vsub.f32 1.0, %v5511
      %v5513 = vmul.f32 %v5510, %v5512
      %v5514 = vadd.f32 %v5510, %v5513
      %vm5515 = vweird.f32 %v5240
      %vm5516 = vweird.f32 %v5510
      %vm5517 = vmor %vm5515, %vm5516
      %v5518 = vsel %vm5517, %v5510, %v5514
      %v5519 = vand.u32 2147483647, %v5240
      %vm5520 = vcmp.eq.f32.partialorder %v5519, 8.507059e+37
      %v5521 = vand.u32 %v5240, 2147483648
      %v5522 = vor.u32 1.1754944e-38, %v5521
      %v5523 = vsel %vm5520, %v5522, %v5518
      %v5524 = vmul.f32 1.0, %v5523
      %v5525 = vrcp.pop %v5241
      %v5526 = vmul.f32 %v5241, %v5525
      %v5527 = vsub.f32 1.0, %v5526
      %v5528 = vmul.f32 %v5525, %v5527
      %v5529 = vadd.f32 %v5525, %v5528
      %vm5530 = vweird.f32 %v5241
      %vm5531 = vweird.f32 %v5525
      %vm5532 = vmor %vm5530, %vm5531
      %v5533 = vsel %vm5532, %v5525, %v5529
      %v5534 = vand.u32 2147483647, %v5241
      %vm5535 = vcmp.eq.f32.partialorder %v5534, 8.507059e+37
      %v5536 = vand.u32 %v5241, 2147483648
      %v5537 = vor.u32 1.1754944e-38, %v5536
      %v5538 = vsel %vm5535, %v5537, %v5533
      %v5539 = vmul.f32 1.0, %v5538
      %v5540 = vrcp.pop %v5242
      %v5541 = vmul.f32 %v5242, %v5540
      %v5542 = vsub.f32 1.0, %v5541
      %v5543 = vmul.f32 %v5540, %v5542
      %v5544 = vadd.f32 %v5540, %v5543
      %vm5545 = vweird.f32 %v5242
      %vm5546 = vweird.f32 %v5540
      %vm5547 = vmor %vm5545, %vm5546
      %v5548 = vsel %vm5547, %v5540, %v5544
      %v5549 = vand.u32 2147483647, %v5242
      %vm5550 = vcmp.eq.f32.partialorder %v5549, 8.507059e+37
      %v5551 = vand.u32 %v5242, 2147483648
      %v5552 = vor.u32 1.1754944e-38, %v5551
      %v5553 = vsel %vm5550, %v5552, %v5548
      %v5554 = vmul.f32 1.0, %v5553
      %v5555 = vrcp.pop %v5243
      %v5556 = vmul.f32 %v5243, %v5555
      %v5557 = vsub.f32 1.0, %v5556
      %v5558 = vmul.f32 %v5555, %v5557
      %v5559 = vadd.f32 %v5555, %v5558
      %vm5560 = vweird.f32 %v5243
      %vm5561 = vweird.f32 %v5555
      %vm5562 = vmor %vm5560, %vm5561
      %v5563 = vsel %vm5562, %v5555, %v5559
      %v5564 = vand.u32 2147483647, %v5243
      %vm5565 = vcmp.eq.f32.partialorder %v5564, 8.507059e+37
      %v5566 = vand.u32 %v5243, 2147483648
      %v5567 = vor.u32 1.1754944e-38, %v5566
      %v5568 = vsel %vm5565, %v5567, %v5563
      %v5569 = vmul.f32 1.0, %v5568
      %v5570 = vrcp.pop %v5244
      %v5571 = vmul.f32 %v5244, %v5570
      %v5572 = vsub.f32 1.0, %v5571
      %v5573 = vmul.f32 %v5570, %v5572
      %v5574 = vadd.f32 %v5570, %v5573
      %vm5575 = vweird.f32 %v5244
      %vm5576 = vweird.f32 %v5570
      %vm5577 = vmor %vm5575, %vm5576
      %v5578 = vsel %vm5577, %v5570, %v5574
      %v5579 = vand.u32 2147483647, %v5244
      %vm5580 = vcmp.eq.f32.partialorder %v5579, 8.507059e+37
      %v5581 = vand.u32 %v5244, 2147483648
      %v5582 = vor.u32 1.1754944e-38, %v5581
      %v5583 = vsel %vm5580, %v5582, %v5578
      %v5584 = vmul.f32 1.0, %v5583
      %v5585 = vrcp.pop %v5245
      %v5586 = vmul.f32 %v5245, %v5585
      %v5587 = vsub.f32 1.0, %v5586
      %v5588 = vmul.f32 %v5585, %v5587
      %v5589 = vadd.f32 %v5585, %v5588
      %vm5590 = vweird.f32 %v5245
      %vm5591 = vweird.f32 %v5585
      %vm5592 = vmor %vm5590, %vm5591
      %v5593 = vsel %vm5592, %v5585, %v5589
      %v5594 = vand.u32 2147483647, %v5245
      %vm5595 = vcmp.eq.f32.partialorder %v5594, 8.507059e+37
      %v5596 = vand.u32 %v5245, 2147483648
      %v5597 = vor.u32 1.1754944e-38, %v5596
      %v5598 = vsel %vm5595, %v5597, %v5593
      %v5599 = vmul.f32 1.0, %v5598
      %v5600 = vrcp.pop %v5246
      %v5601 = vmul.f32 %v5246, %v5600
      %v5602 = vsub.f32 1.0, %v5601
      %v5603 = vmul.f32 %v5600, %v5602
      %v5604 = vadd.f32 %v5600, %v5603
      %vm5605 = vweird.f32 %v5246
      %vm5606 = vweird.f32 %v5600
      %vm5607 = vmor %vm5605, %vm5606
      %v5608 = vsel %vm5607, %v5600, %v5604
      %v5609 = vand.u32 2147483647, %v5246
      %vm5610 = vcmp.eq.f32.partialorder %v5609, 8.507059e+37
      %v5611 = vand.u32 %v5246, 2147483648
      %v5612 = vor.u32 1.1754944e-38, %v5611
      %v5613 = vsel %vm5610, %v5612, %v5608
      %v5614 = vmul.f32 1.0, %v5613
      %v5615 = vrcp.pop %v5247
      %v5616 = vmul.f32 %v5247, %v5615
      %v5617 = vsub.f32 1.0, %v5616
      %v5618 = vmul.f32 %v5615, %v5617
      %v5619 = vadd.f32 %v5615, %v5618
      %vm5620 = vweird.f32 %v5247
      %vm5621 = vweird.f32 %v5615
      %vm5622 = vmor %vm5620, %vm5621
      %v5623 = vsel %vm5622, %v5615, %v5619
      %v5624 = vand.u32 2147483647, %v5247
      %vm5625 = vcmp.eq.f32.partialorder %v5624, 8.507059e+37
      %v5626 = vand.u32 %v5247, 2147483648
      %v5627 = vor.u32 1.1754944e-38, %v5626
      %v5628 = vsel %vm5625, %v5627, %v5623
      %v5629 = vmul.f32 1.0, %v5628
      %v5630 = vrcp.pop %v5248
      %v5631 = vmul.f32 %v5248, %v5630
      %v5632 = vsub.f32 1.0, %v5631
      %v5633 = vmul.f32 %v5630, %v5632
      %v5634 = vadd.f32 %v5630, %v5633
      %vm5635 = vweird.f32 %v5248
      %vm5636 = vweird.f32 %v5630
      %vm5637 = vmor %vm5635, %vm5636
      %v5638 = vsel %vm5637, %v5630, %v5634
      %v5639 = vand.u32 2147483647, %v5248
      %vm5640 = vcmp.eq.f32.partialorder %v5639, 8.507059e+37
      %v5641 = vand.u32 %v5248, 2147483648
      %v5642 = vor.u32 1.1754944e-38, %v5641
      %v5643 = vsel %vm5640, %v5642, %v5638
      %v5644 = vmul.f32 1.0, %v5643
      %v5645 = vrcp.pop %v5249
      %v5646 = vmul.f32 %v5249, %v5645
      %v5647 = vsub.f32 1.0, %v5646
      %v5648 = vmul.f32 %v5645, %v5647
      %v5649 = vadd.f32 %v5645, %v5648
      %vm5650 = vweird.f32 %v5249
      %vm5651 = vweird.f32 %v5645
      %vm5652 = vmor %vm5650, %vm5651
      %v5653 = vsel %vm5652, %v5645, %v5649
      %v5654 = vand.u32 2147483647, %v5249
      %vm5655 = vcmp.eq.f32.partialorder %v5654, 8.507059e+37
      %v5656 = vand.u32 %v5249, 2147483648
      %v5657 = vor.u32 1.1754944e-38, %v5656
      %v5658 = vsel %vm5655, %v5657, %v5653
      %v5659 = vmul.f32 1.0, %v5658
      %v5660 = vrcp.pop %v5250
      %v5661 = vmul.f32 %v5250, %v5660
      %v5662 = vsub.f32 1.0, %v5661
      %v5663 = vmul.f32 %v5660, %v5662
      %v5664 = vadd.f32 %v5660, %v5663
      %vm5665 = vweird.f32 %v5250
      %vm5666 = vweird.f32 %v5660
      %vm5667 = vmor %vm5665, %vm5666
      %v5668 = vsel %vm5667, %v5660, %v5664
      %v5669 = vand.u32 2147483647, %v5250
      %vm5670 = vcmp.eq.f32.partialorder %v5669, 8.507059e+37
      %v5671 = vand.u32 %v5250, 2147483648
      %v5672 = vor.u32 1.1754944e-38, %v5671
      %v5673 = vsel %vm5670, %v5672, %v5668
      %v5674 = vmul.f32 1.0, %v5673
      %v5675 = vrcp.pop %v5251
      %v5676 = vmul.f32 %v5251, %v5675
      %v5677 = vsub.f32 1.0, %v5676
      %v5678 = vmul.f32 %v5675, %v5677
      %v5679 = vadd.f32 %v5675, %v5678
      %vm5680 = vweird.f32 %v5251
      %vm5681 = vweird.f32 %v5675
      %vm5682 = vmor %vm5680, %vm5681
      %v5683 = vsel %vm5682, %v5675, %v5679
      %v5684 = vand.u32 2147483647, %v5251
      %vm5685 = vcmp.eq.f32.partialorder %v5684, 8.507059e+37
      %v5686 = vand.u32 %v5251, 2147483648
      %v5687 = vor.u32 1.1754944e-38, %v5686
      %v5688 = vsel %vm5685, %v5687, %v5683
      %v5689 = vmul.f32 1.0, %v5688
      %v5690 = vrcp.pop %v5252
      %v5691 = vmul.f32 %v5252, %v5690
      %v5692 = vsub.f32 1.0, %v5691
      %v5693 = vmul.f32 %v5690, %v5692
      %v5694 = vadd.f32 %v5690, %v5693
      %vm5695 = vweird.f32 %v5252
      %vm5696 = vweird.f32 %v5690
      %vm5697 = vmor %vm5695, %vm5696
      %v5698 = vsel %vm5697, %v5690, %v5694
      %v5699 = vand.u32 2147483647, %v5252
      %vm5700 = vcmp.eq.f32.partialorder %v5699, 8.507059e+37
      %v5701 = vand.u32 %v5252, 2147483648
      %v5702 = vor.u32 1.1754944e-38, %v5701
      %v5703 = vsel %vm5700, %v5702, %v5698
      %v5704 = vmul.f32 1.0, %v5703
      %v5705 = vrcp.pop %v5253
      %v5706 = vmul.f32 %v5253, %v5705
      %v5707 = vsub.f32 1.0, %v5706
      %v5708 = vmul.f32 %v5705, %v5707
      %v5709 = vadd.f32 %v5705, %v5708
      %vm5710 = vweird.f32 %v5253
      %vm5711 = vweird.f32 %v5705
      %vm5712 = vmor %vm5710, %vm5711
      %v5713 = vsel %vm5712, %v5705, %v5709
      %v5714 = vand.u32 2147483647, %v5253
      %vm5715 = vcmp.eq.f32.partialorder %v5714, 8.507059e+37
      %v5716 = vand.u32 %v5253, 2147483648
      %v5717 = vor.u32 1.1754944e-38, %v5716
      %v5718 = vsel %vm5715, %v5717, %v5713
      %v5719 = vmul.f32 1.0, %v5718
      %v5720 = vrcp.pop %v5254
      %v5721 = vmul.f32 %v5254, %v5720
      %v5722 = vsub.f32 1.0, %v5721
      %v5723 = vmul.f32 %v5720, %v5722
      %v5724 = vadd.f32 %v5720, %v5723
      %vm5725 = vweird.f32 %v5254
      %vm5726 = vweird.f32 %v5720
      %vm5727 = vmor %vm5725, %vm5726
      %v5728 = vsel %vm5727, %v5720, %v5724
      %v5729 = vand.u32 2147483647, %v5254
      %vm5730 = vcmp.eq.f32.partialorder %v5729, 8.507059e+37
      %v5731 = vand.u32 %v5254, 2147483648
      %v5732 = vor.u32 1.1754944e-38, %v5731
      %v5733 = vsel %vm5730, %v5732, %v5728
      %v5734 = vmul.f32 1.0, %v5733
      %vm5735 = vcmask 7168
      %5736 = vst.msk [vmem:[%s525] sm:$0xff] %vm5735, %v5269
      %5737 = vst.msk [vmem:[%s525 + $0x8] sm:$0xff] %vm5735, %v5284
      %5738 = vst.msk [vmem:[%s525 + $0x10] sm:$0xff] %vm5735, %v5299
      %5739 = vst.msk [vmem:[%s525 + $0x18] sm:$0xff] %vm5735, %v5314
      %5740 = vst.msk [vmem:[%s525 + $0x20] sm:$0xff] %vm5735, %v5329
      %5741 = vst.msk [vmem:[%s525 + $0x28] sm:$0xff] %vm5735, %v5344
      %5742 = vst.msk [vmem:[%s525 + $0x30] sm:$0xff] %vm5735, %v5359
      %5743 = vst.msk [vmem:[%s525 + $0x38] sm:$0xff] %vm5735, %v5374
      %5744 = vst.msk [vmem:[%s525 + $0x40] sm:$0xff] %vm5735, %v5389
      %5745 = vst.msk [vmem:[%s525 + $0x48] sm:$0xff] %vm5735, %v5404
      %5746 = vst.msk [vmem:[%s525 + $0x50] sm:$0xff] %vm5735, %v5419
      %5747 = vst.msk [vmem:[%s525 + $0x58] sm:$0xff] %vm5735, %v5434
      %5748 = vst.msk [vmem:[%s525 + $0x60] sm:$0xff] %vm5735, %v5449
      %5749 = vst.msk [vmem:[%s525 + $0x68] sm:$0xff] %vm5735, %v5464
      %5750 = vst.msk [vmem:[%s525 + $0x70] sm:$0xff] %vm5735, %v5479
      %5751 = vst.msk [vmem:[%s525 + $0x78] sm:$0xff] %vm5735, %v5494
      %5752 = vst.msk [vmem:[%s525 + $0x80] sm:$0xff] %vm5735, %v5509
      %5753 = vst.msk [vmem:[%s525 + $0x88] sm:$0xff] %vm5735, %v5524
      %5754 = vst.msk [vmem:[%s525 + $0x90] sm:$0xff] %vm5735, %v5539
      %5755 = vst.msk [vmem:[%s525 + $0x98] sm:$0xff] %vm5735, %v5554
      %5756 = vst.msk [vmem:[%s525 + $0xa0] sm:$0xff] %vm5735, %v5569
      %5757 = vst.msk [vmem:[%s525 + $0xa8] sm:$0xff] %vm5735, %v5584
      %5758 = vst.msk [vmem:[%s525 + $0xb0] sm:$0xff] %vm5735, %v5599
      %5759 = vst.msk [vmem:[%s525 + $0xb8] sm:$0xff] %vm5735, %v5614
      %5760 = vst.msk [vmem:[%s525 + $0xc0] sm:$0xff] %vm5735, %v5629
      %5761 = vst.msk [vmem:[%s525 + $0xc8] sm:$0xff] %vm5735, %v5644
      %5762 = vst.msk [vmem:[%s525 + $0xd0] sm:$0xff] %vm5735, %v5659
      %5763 = vst.msk [vmem:[%s525 + $0xd8] sm:$0xff] %vm5735, %v5674
      %5764 = vst.msk [vmem:[%s525 + $0xe0] sm:$0xff] %vm5735, %v5689
      %5765 = vst.msk [vmem:[%s525 + $0xe8] sm:$0xff] %vm5735, %v5704
      %5766 = vst.msk [vmem:[%s525 + $0xf0] sm:$0xff] %vm5735, %v5719
      %5767 = vst.msk [vmem:[%s525 + $0xf8] sm:$0xff] %vm5735, %v5734
      %s5768 = smul.u32 32, %s29
      %p5769 = scmp.lt.s32.totalorder %s5768, 63
      %s5770 = scalar_select %p5769, %s5768, 63
      %s5771 = smul.addr %s5770, 8
      %s5772 = scalar_lea.vmem %s16, %s5771
      // Predicated region
      $region85: #{two_stream_forward.1} parent=83 // pred_check
        %p5773 = pneg %p388
      $region86: #{two_stream_forward.1} parent=83 // pred_check_branch
        %5775 = sbr.rel (%p5773) target = $region88
      $region87: #{two_stream_forward.1} parent=83 // pred_region
        %s5776 = smul.u32 32, %s29
      $region88: #{two_stream_forward.1} parent=83 // pred_fallthru
        _
    $region84: #{two_stream_forward.1} parent=5 // pred_fallthru
      _
    %p5777 = scmp.le.s32.totalorder 2, %s24
    // Predicated region
    $region89: #{two_stream_forward.1} parent=5 // pred_check
      %p5778 = pneg %p5777
    $region90: #{two_stream_forward.1} parent=5 // pred_check_branch
      %5780 = sbr.rel (%p5778) target = $region92
    $region91: #{two_stream_forward.1} parent=5 // pred_region
      %s5781 = ssub.s32 %s24, 2
      // Predicated region
      $region93: #{two_stream_forward.1} parent=91 // pred_check
        %p5782 = pneg %p394
      $region94: #{two_stream_forward.1} parent=91 // pred_check_branch
        %5784 = sbr.rel (%p5782) target = $region96
      $region95: #{two_stream_forward.1} parent=91 // pred_region
        %s5785 = smul.u32 32, %s30
        %p5786 = scmp.lt.s32.totalorder %s5785, 63
        %s5787 = scalar_select %p5786, %s5785, 63
        %s5788 = smul.addr %s5787, 8
        %s5789 = scalar_lea.vmem %s16, %s5788
      $region96: #{two_stream_forward.1} parent=91 // pred_fallthru
        _
    $region92: #{two_stream_forward.1} parent=5 // pred_fallthru
      _
  $region6: #{two_stream_forward.1} parent=0 // loop_footer
    %s28 = sadd.s32 1, %s24
  $region7: #{two_stream_forward.1} parent=0 // loop_footer_branch
    %23 = sbr.rel target = $region3
  $region8: #{two_stream_forward.1} parent=0 // loop_exit
    _

</llo_original>
